<compile_context>
chip_gen: v6e
topology: v6e:2x2x1
jax: 0.10.0
libtpu: 0.0.40
codegen_flags: <defaults>
</compile_context>

<pallas_src>
import numpy as np
import jax
import jax.numpy as jnp
from jax import lax
from jax.experimental import pallas as pl
from jax.experimental.pallas import tpu as pltpu

_PREC = lax.Precision.HIGHEST


# ------------------------------------------------------------------
# Static 0/1 gather matrices (numpy, built at trace time).
# G[t, h*W + w, oh*OW + ow] == 1 iff input pixel (h, w) feeds output (oh, ow) at tap t.
# ------------------------------------------------------------------

def _conv_gather(H, W, KH, KW, stride, padding):
    OH = (H + 2 * padding - KH) // stride + 1
    OW = (W + 2 * padding - KW) // stride + 1
    G = np.zeros((KH * KW, H * W, OH * OW), np.float32)
    for i in range(KH):
        for j in range(KW):
            t = i * KW + j
            for oh in range(OH):
                h = stride * oh + i - padding
                if h < 0 or h >= H:
                    continue
                for ow in range(OW):
                    w = stride * ow + j - padding
                    if w < 0 or w >= W:
                        continue
                    G[t, h * W + w, oh * OW + ow] = 1.0
    return G, OH, OW


def _convT_gather(H, W, KH, KW, stride, padding):
    # ConvTranspose == stride-1 conv over the stride-dilated, (K-1-p)-padded input with
    # the spatially flipped kernel; dilation + padding are folded into G.
    OH = (H - 1) * stride - 2 * padding + KH
    OW = (W - 1) * stride - 2 * padding + KW
    pe_h = KH - 1 - padding
    pe_w = KW - 1 - padding
    G = np.zeros((KH * KW, H * W, OH * OW), np.float32)
    for i in range(KH):
        for j in range(KW):
            t = i * KW + j
            for oh in range(OH):
                r = oh + i - pe_h
                if r < 0 or (r % stride) != 0 or (r // stride) >= H:
                    continue
                h = r // stride
                for ow in range(OW):
                    cc = ow + j - pe_w
                    if cc < 0 or (cc % stride) != 0 or (cc // stride) >= W:
                        continue
                    w = cc // stride
                    G[t, h * W + w, oh * OW + ow] = 1.0
    return G, OH, OW


def _pool_scatter(C, H, W, k, s, pad):
    """Per-tap 0/1 selection [k*k, C*H*W, pad] for MaxPool2d(k, stride=s).
    Output layout per tap: channel-major c*OH*OW + oh*OW + ow, lane-padded to `pad`."""
    OH = (H - k) // s + 1
    OW = (W - k) // s + 1
    assert C * OH * OW <= pad
    S = np.zeros((k * k, C * H * W, pad), np.float32)
    for i in range(k):
        for j in range(k):
            t = i * k + j
            for c in range(C):
                for oh in range(OH):
                    for ow in range(OW):
                        S[t, c * H * W + (s * oh + i) * W + (s * ow + j),
                          c * OH * OW + oh * OW + ow] = 1.0
    return S, OH, OW


# ------------------------------------------------------------------
# Trace-time weight preprocessing: fold every layer into a dense linear map.
# Layouts are always channel-major: feature index = c * (H*W) + h*W + w.
# ------------------------------------------------------------------

def _conv_matrix(w, H, W, stride, padding):
    """w: [OC, C, KH, KW] -> M [C*H*W, OC*OH*OW]."""
    OC, C, KH, KW = w.shape
    G, OH, OW = _conv_gather(H, W, KH, KW, stride, padding)
    Wt = jnp.transpose(w, (2, 3, 0, 1)).reshape(KH * KW, OC, C)
    M = jnp.einsum('toc,tpq->cpoq', Wt, jnp.asarray(G), precision=_PREC)
    return M.reshape(C * H * W, OC * OH * OW), OH, OW


def _convT_matrix(w, H, W, stride, padding):
    """w: [IC, OC, KH, KW] (PyTorch ConvTranspose layout) -> M [IC*H*W, OC*OH*OW]."""
    IC, OC, KH, KW = w.shape
    G, OH, OW = _convT_gather(H, W, KH, KW, stride, padding)
    Wt = jnp.flip(w, (2, 3)).transpose(2, 3, 1, 0).reshape(KH * KW, OC, IC)
    M = jnp.einsum('toc,tpq->cpoq', Wt, jnp.asarray(G), precision=_PREC)
    return M.reshape(IC * H * W, OC * OH * OW), OH, OW


def _fold_pool(M, bias, C, H, W, k, s, pad):
    """Compose a conv map M [in, C*H*W] with MaxPool tap gathers; each tap's output
    is lane-padded to `pad`. Returns (M_all [in, k*k*pad], bias_pad [1, pad], OH, OW)."""
    S, OH, OW = _pool_scatter(C, H, W, k, s, pad)
    M_all = jnp.einsum('im,tmo->ito', M, jnp.asarray(S), precision=_PREC)
    M_all = M_all.reshape(M.shape[0], k * k * pad)
    b_pad = jnp.zeros((pad,), jnp.float32).at[: C * OH * OW].set(
        jnp.repeat(bias.astype(jnp.float32), OH * OW))
    return M_all, b_pad.reshape(1, pad), OH, OW


def _build_folded_params(params):
    # ---- encoder layer 1: Conv2d(1,16,3,s=3,p=1) on 28x28 + MaxPool2d(2,2) ----
    M1, oh1, ow1 = _conv_matrix(params["enc_conv1_w"], 28, 28, 3, 1)       # [784, 1600]  -> 10x10
    M1_all, b1_pad, ph1, pw1 = _fold_pool(M1, params["enc_conv1_b"],
                                          16, oh1, ow1, 2, 2, pad=512)     # [784, 2048], 5x5
    # ---- encoder layer 2: Conv2d(16,8,3,s=2,p=1) on 5x5 + MaxPool2d(2,1) ------
    M2, oh2, ow2 = _conv_matrix(params["enc_conv2_w"], ph1, pw1, 2, 1)     # [400, 72]    -> 3x3
    M2_all, b2_pad, ph2, pw2 = _fold_pool(M2, params["enc_conv2_b"],
                                          8, oh2, ow2, 2, 1, pad=128)      # [400, 512], 2x2
    M2_all = jnp.pad(M2_all, ((0, 512 - M2_all.shape[0]), (0, 0)))         # rows padded to 512
    # ---- decoder: 3 activation-free ConvTranspose layers composed exactly -----
    MT1, h1, w1 = _convT_matrix(params["dec_deconv1_w"], ph2, pw2, 2, 0)   # [32, 400]    -> 5x5
    MT2, h2, w2 = _convT_matrix(params["dec_deconv2_w"], h1, w1, 3, 1)     # [400, 1800]  -> 15x15
    MT3, h3, w3 = _convT_matrix(params["dec_deconv3_w"], h2, w2, 2, 1)     # [1800, 784]  -> 28x28
    assert (h3, w3) == (28, 28)
    Mdec = jnp.dot(jnp.dot(MT1, MT2, precision=_PREC), MT3, precision=_PREC)   # [32, 784]
    b1v = jnp.repeat(params["dec_deconv1_b"].astype(jnp.float32), h1 * w1)
    b2v = jnp.repeat(params["dec_deconv2_b"].astype(jnp.float32), h2 * w2)
    b3v = jnp.repeat(params["dec_deconv3_b"].astype(jnp.float32), h3 * w3)
    bdec = (jnp.dot(jnp.dot(b1v, MT2, precision=_PREC), MT3, precision=_PREC)
            + jnp.dot(b2v, MT3, precision=_PREC) + b3v).reshape(1, 784)
    Mdec = jnp.pad(Mdec, ((0, 128 - Mdec.shape[0]), (0, 0)))               # [128, 784]
    return (M1_all.astype(jnp.float32), b1_pad.astype(jnp.float32),
            M2_all.astype(jnp.float32), b2_pad.astype(jnp.float32),
            Mdec.astype(jnp.float32), bdec.astype(jnp.float32))


# ------------------------------------------------------------------
# Fused Pallas kernel: one grid step == one batch block of Bblk samples.
# Activations are [Bblk, features] (batch on sublanes, lane-dense features).
# ------------------------------------------------------------------

def _ae_kernel(x_ref, m1_ref, b1_ref, m2_ref, b2_ref, md_ref, bd_ref, o_ref):
    x = x_ref[...]                                                        # [B, 784]
    # Conv1 + MaxPool1: one matmul producing all 4 pool taps, then a VPU max tree.
    y1 = jnp.dot(x, m1_ref[...], preferred_element_type=jnp.float32)      # [B, 2048]
    a1 = jnp.maximum(jnp.maximum(y1[:, 0:512], y1[:, 512:1024]),
                     jnp.maximum(y1[:, 1024:1536], y1[:, 1536:2048]))
    a1 = a1 + b1_ref[...]                                                 # [B, 512] (400 live)
    # Conv2 + MaxPool2.
    y2 = jnp.dot(a1, m2_ref[...], preferred_element_type=jnp.float32)     # [B, 512]
    a2 = jnp.maximum(jnp.maximum(y2[:, 0:128], y2[:, 128:256]),
                     jnp.maximum(y2[:, 256:384], y2[:, 384:512]))
    a2 = a2 + b2_ref[...]                                                 # [B, 128] (32 live latent)
    # Decoder: the 3 ConvTranspose layers as one composed affine map.
    o_ref[...] = (jnp.dot(a2, md_ref[...], preferred_element_type=jnp.float32)
                  + bd_ref[...])                                          # [B, 784]


def _round_up(x, m):
    return (x + m - 1) // m * m


def ae_forward(params, x, *, block_batch=128):
    """x: [N, 1, 28, 28] float32 -> [N, 1, 28, 28] float32."""
    N, C, H, W = x.shape
    assert (C, H, W) == (1, 28, 28), (C, H, W)

    # Trace-time weight preprocessing (would be cached across calls in a real deployment).
    m1, b1, m2, b2, md, bd = _build_folded_params(params)

    Bblk = _round_up(min(block_batch, _round_up(N, 8)), 8)
    N_pad = _round_up(N, Bblk)
    x_flat = x.reshape(N, H * W).astype(jnp.float32)
    if N_pad != N:
        x_flat = jnp.pad(x_flat, ((0, N_pad - N), (0, 0)))

    out = pl.pallas_call(
        _ae_kernel,
        out_shape=jax.ShapeDtypeStruct((N_pad, 784), jnp.float32),
        grid=(N_pad // Bblk,),
        in_specs=[
            pl.BlockSpec((Bblk, 784), lambda n: (n, 0)),
            pl.BlockSpec((784, 2048), lambda n: (0, 0)),
            pl.BlockSpec((1, 512), lambda n: (0, 0)),
            pl.BlockSpec((512, 512), lambda n: (0, 0)),
            pl.BlockSpec((1, 128), lambda n: (0, 0)),
            pl.BlockSpec((128, 784), lambda n: (0, 0)),
            pl.BlockSpec((1, 784), lambda n: (0, 0)),
        ],
        out_specs=pl.BlockSpec((Bblk, 784), lambda n: (n, 0)),
        compiler_params=pltpu.CompilerParams(
            dimension_semantics=("parallel",),
            vmem_limit_bytes=40 * 1024 * 1024),
    )(x_flat, m1, b1, m2, b2, md, bd)
    return out[:N].reshape(N, 1, 28, 28)


# ------------------------------------------------------------------
# Parameters (PyTorch-style layout / init) and a pure-XLA reference.
# ------------------------------------------------------------------

def init_params(key):
    def init(k, shape, fan_in):
        bound = 1.0 / (fan_in ** 0.5)
        return jax.random.uniform(k, shape, jnp.float32, -bound, bound)

    ks = jax.random.split(key, 10)
    return {
        "enc_conv1_w": init(ks[0], (16, 1, 3, 3), 1 * 9),
        "enc_conv1_b": init(ks[1], (16,), 1 * 9),
        "enc_conv2_w": init(ks[2], (8, 16, 3, 3), 16 * 9),
        "enc_conv2_b": init(ks[3], (8,), 16 * 9),
        "dec_deconv1_w": init(ks[4], (8, 16, 3, 3), 8 * 9),
        "dec_deconv1_b": init(ks[5], (16,), 8 * 9),
        "dec_deconv2_w": init(ks[6], (16, 8, 5, 5), 16 * 25),
        "dec_deconv2_b": init(ks[7], (8,), 16 * 25),
        "dec_deconv3_w": init(ks[8], (8, 1, 2, 2), 8 * 4),
        "dec_deconv3_b": init(ks[9], (1,), 8 * 4),
    }


def ae_reference(params, x):
    """Pure-XLA reference of the same PyTorch module (correctness check)."""
    dn = ("NCHW", "OIHW", "NCHW")

    def conv(x, w, b, s, p):
        y = lax.conv_general_dilated(x, w, (s, s), [(p, p), (p, p)],
                                     dimension_numbers=dn, precision=_PREC)
        return y + b.reshape(1, -1, 1, 1)

    def pool(x, k, s):
        return lax.reduce_window(x, -jnp.inf, lax.max,
                                 (1, 1, k, k), (1, 1, s, s), "VALID")

    def convT(x, w, b, s, p):
        k = w.shape[2]
        wf = jnp.flip(w, (2, 3)).transpose(1, 0, 2, 3)
        q = k - 1 - p
        y = lax.conv_general_dilated(x, wf, (1, 1), [(q, q), (q, q)],
                                     lhs_dilation=(s, s),
                                     dimension_numbers=dn, precision=_PREC)
        return y + b.reshape(1, -1, 1, 1)

    x = conv(x, params["enc_conv1_w"], params["enc_conv1_b"], 3, 1)
    x = pool(x, 2, 2)
    x = conv(x, params["enc_conv2_w"], params["enc_conv2_b"], 2, 1)
    x = pool(x, 2, 1)
    x = convT(x, params["dec_deconv1_w"], params["dec_deconv1_b"], 2, 0)
    x = convT(x, params["dec_deconv2_w"], params["dec_deconv2_b"], 3, 1)
    x = convT(x, params["dec_deconv3_w"], params["dec_deconv3_b"], 2, 1)
    return x


if __name__ == "__main__":
    key = jax.random.PRNGKey(0)
    pkey, xkey = jax.random.split(key)
    params = init_params(pkey)
    # MNIST-like input implied by Conv2d(1, ...) / 28x28 round trip: [N=2, 1, 28, 28]
    x = jax.random.normal(xkey, (2, 1, 28, 28), jnp.float32)

    y = jax.block_until_ready(jax.jit(ae_forward)(params, x))
    assert y.shape == (2, 1, 28, 28), y.shape
    assert bool(jnp.all(jnp.isfinite(y)))

    ref = jax.block_until_ready(jax.jit(ae_reference)(params, x))
    err = float(jnp.max(jnp.abs(y - ref)))
    assert err < 1e-2, f"mismatch vs reference: max abs err = {err}"

    print("KERNEL_OK")
</pallas_src>

<mosaic_0001>
module attributes {stable_mosaic.version = 11 : i64} {
  func.func @_ae_kernel(%arg0: i32, %arg1: memref<8x784xf32, #tpu.memory_space<vmem>>, %arg2: memref<784x2048xf32, #tpu.memory_space<vmem>>, %arg3: memref<1x512xf32, #tpu.memory_space<vmem>>, %arg4: memref<512x512xf32, #tpu.memory_space<vmem>>, %arg5: memref<1x128xf32, #tpu.memory_space<vmem>>, %arg6: memref<128x784xf32, #tpu.memory_space<vmem>>, %arg7: memref<1x784xf32, #tpu.memory_space<vmem>>, %arg8: memref<8x784xf32, #tpu.memory_space<vmem>>) attributes {dimension_semantics = [#tpu.dimension_semantics<parallel>], iteration_bounds = array<i64: 1>, scalar_prefetch = 0 : i64, scratch_operands = 0 : i64, tpu.core_type = #tpu.core_type<tc>, window_params = [{transform_indices = @transform_0, window_bounds = array<i64: 8, 784>}, {pipeline_mode = #tpu.pipeline_mode<synchronous>, transform_indices = @transform_1, window_bounds = array<i64: 784, 2048>}, {pipeline_mode = #tpu.pipeline_mode<synchronous>, transform_indices = @transform_2, window_bounds = array<i64: 1, 512>}, {pipeline_mode = #tpu.pipeline_mode<synchronous>, transform_indices = @transform_3, window_bounds = array<i64: 512, 512>}, {pipeline_mode = #tpu.pipeline_mode<synchronous>, transform_indices = @transform_4, window_bounds = array<i64: 1, 128>}, {pipeline_mode = #tpu.pipeline_mode<synchronous>, transform_indices = @transform_5, window_bounds = array<i64: 128, 784>}, {pipeline_mode = #tpu.pipeline_mode<synchronous>, transform_indices = @transform_6, window_bounds = array<i64: 1, 784>}, {transform_indices = @transform_7, window_bounds = array<i64: 8, 784>}]} {
    %c0 = arith.constant 0 : index
    %c0_0 = arith.constant 0 : index
    %0 = vector.load %arg1[%c0, %c0_0] : memref<8x784xf32, #tpu.memory_space<vmem>>, vector<8x784xf32>
    %c0_1 = arith.constant 0 : index
    %c0_2 = arith.constant 0 : index
    %1 = vector.load %arg2[%c0_1, %c0_2] : memref<784x2048xf32, #tpu.memory_space<vmem>>, vector<784x2048xf32>
    %cst = arith.constant dense<0.000000e+00> : vector<8x2048xf32>
    %2 = tpu.matmul %0, %1, %cst {dimension_numbers = #tpu.dot_dimension_numbers<[1], [0], [0], [1], [0, 0, 1, 1], [], []>} : vector<8x784xf32>, vector<784x2048xf32>, vector<8x2048xf32> -> vector<8x2048xf32>
    %3 = vector.extract_strided_slice %2 {offsets = [0, 0], sizes = [8, 512], strides = [1, 1]} : vector<8x2048xf32> to vector<8x512xf32>
    %4 = vector.extract_strided_slice %2 {offsets = [0, 512], sizes = [8, 512], strides = [1, 1]} : vector<8x2048xf32> to vector<8x512xf32>
    %5 = arith.maximumf %3, %4 : vector<8x512xf32>
    %6 = vector.extract_strided_slice %2 {offsets = [0, 1024], sizes = [8, 512], strides = [1, 1]} : vector<8x2048xf32> to vector<8x512xf32>
    %7 = vector.extract_strided_slice %2 {offsets = [0, 1536], sizes = [8, 512], strides = [1, 1]} : vector<8x2048xf32> to vector<8x512xf32>
    %8 = arith.maximumf %6, %7 : vector<8x512xf32>
    %9 = arith.maximumf %5, %8 : vector<8x512xf32>
    %c0_3 = arith.constant 0 : index
    %c0_4 = arith.constant 0 : index
    %10 = vector.load %arg3[%c0_3, %c0_4] : memref<1x512xf32, #tpu.memory_space<vmem>>, vector<1x512xf32>
    %11 = vector.broadcast %10 : vector<1x512xf32> to vector<8x512xf32>
    %12 = arith.addf %9, %11 : vector<8x512xf32>
    %c0_5 = arith.constant 0 : index
    %c0_6 = arith.constant 0 : index
    %13 = vector.load %arg4[%c0_5, %c0_6] : memref<512x512xf32, #tpu.memory_space<vmem>>, vector<512x512xf32>
    %cst_7 = arith.constant dense<0.000000e+00> : vector<8x512xf32>
    %14 = tpu.matmul %12, %13, %cst_7 {dimension_numbers = #tpu.dot_dimension_numbers<[1], [0], [0], [1], [0, 0, 1, 1], [], []>} : vector<8x512xf32>, vector<512x512xf32>, vector<8x512xf32> -> vector<8x512xf32>
    %15 = vector.extract_strided_slice %14 {offsets = [0, 0], sizes = [8, 128], strides = [1, 1]} : vector<8x512xf32> to vector<8x128xf32>
    %16 = vector.extract_strided_slice %14 {offsets = [0, 128], sizes = [8, 128], strides = [1, 1]} : vector<8x512xf32> to vector<8x128xf32>
    %17 = arith.maximumf %15, %16 : vector<8x128xf32>
    %18 = vector.extract_strided_slice %14 {offsets = [0, 256], sizes = [8, 128], strides = [1, 1]} : vector<8x512xf32> to vector<8x128xf32>
    %19 = vector.extract_strided_slice %14 {offsets = [0, 384], sizes = [8, 128], strides = [1, 1]} : vector<8x512xf32> to vector<8x128xf32>
    %20 = arith.maximumf %18, %19 : vector<8x128xf32>
    %21 = arith.maximumf %17, %20 : vector<8x128xf32>
    %c0_8 = arith.constant 0 : index
    %c0_9 = arith.constant 0 : index
    %22 = vector.load %arg5[%c0_8, %c0_9] : memref<1x128xf32, #tpu.memory_space<vmem>>, vector<1x128xf32>
    %23 = vector.broadcast %22 : vector<1x128xf32> to vector<8x128xf32>
    %24 = arith.addf %21, %23 : vector<8x128xf32>
    %c0_10 = arith.constant 0 : index
    %c0_11 = arith.constant 0 : index
    %25 = vector.load %arg6[%c0_10, %c0_11] : memref<128x784xf32, #tpu.memory_space<vmem>>, vector<128x784xf32>
    %cst_12 = arith.constant dense<0.000000e+00> : vector<8x784xf32>
    %26 = tpu.matmul %24, %25, %cst_12 {dimension_numbers = #tpu.dot_dimension_numbers<[1], [0], [0], [1], [0, 0, 1, 1], [], []>} : vector<8x128xf32>, vector<128x784xf32>, vector<8x784xf32> -> vector<8x784xf32>
    %c0_13 = arith.constant 0 : index
    %c0_14 = arith.constant 0 : index
    %27 = vector.load %arg7[%c0_13, %c0_14] : memref<1x784xf32, #tpu.memory_space<vmem>>, vector<1x784xf32>
    %28 = vector.broadcast %27 : vector<1x784xf32> to vector<8x784xf32>
    %29 = arith.addf %26, %28 : vector<8x784xf32>
    %c0_15 = arith.constant 0 : index
    %c0_16 = arith.constant 0 : index
    %30 = vector.load %arg8[%c0_15, %c0_16] : memref<8x784xf32, #tpu.memory_space<vmem>>, vector<8x784xf32>
    tpu.vector_store %arg8[%c0_15, %c0_16], %29 {strides = array<i32>} : memref<8x784xf32, #tpu.memory_space<vmem>>, vector<8x784xf32>,
    return
  }
  func.func @transform_0(%arg0: i32) -> (i32, i32) {
    %c0_i32 = arith.constant 0 : i32
    %c0_i32_0 = arith.constant 0 : i32
    return %arg0, %c0_i32 : i32, i32
  }
  func.func @transform_1(%arg0: i32) -> (i32, i32) {
    %c0_i32 = arith.constant 0 : i32
    %c0_i32_0 = arith.constant 0 : i32
    %c0_i32_1 = arith.constant 0 : i32
    return %c0_i32, %c0_i32_0 : i32, i32
  }
  func.func @transform_2(%arg0: i32) -> (i32, i32) {
    %c0_i32 = arith.constant 0 : i32
    %c0_i32_0 = arith.constant 0 : i32
    %c0_i32_1 = arith.constant 0 : i32
    return %c0_i32, %c0_i32_0 : i32, i32
  }
  func.func @transform_3(%arg0: i32) -> (i32, i32) {
    %c0_i32 = arith.constant 0 : i32
    %c0_i32_0 = arith.constant 0 : i32
    %c0_i32_1 = arith.constant 0 : i32
    return %c0_i32, %c0_i32_0 : i32, i32
  }
  func.func @transform_4(%arg0: i32) -> (i32, i32) {
    %c0_i32 = arith.constant 0 : i32
    %c0_i32_0 = arith.constant 0 : i32
    %c0_i32_1 = arith.constant 0 : i32
    return %c0_i32, %c0_i32_0 : i32, i32
  }
  func.func @transform_5(%arg0: i32) -> (i32, i32) {
    %c0_i32 = arith.constant 0 : i32
    %c0_i32_0 = arith.constant 0 : i32
    %c0_i32_1 = arith.constant 0 : i32
    return %c0_i32, %c0_i32_0 : i32, i32
  }
  func.func @transform_6(%arg0: i32) -> (i32, i32) {
    %c0_i32 = arith.constant 0 : i32
    %c0_i32_0 = arith.constant 0 : i32
    %c0_i32_1 = arith.constant 0 : i32
    return %c0_i32, %c0_i32_0 : i32, i32
  }
  func.func @transform_7(%arg0: i32) -> (i32, i32) {
    %c0_i32 = arith.constant 0 : i32
    %c0_i32_0 = arith.constant 0 : i32
    return %arg0, %c0_i32 : i32, i32
  }
}

</mosaic_0001>

<llo_original>
// kernel: ae_forward.1
$region0: #{ae_forward.1}
  #allocation0 [shape = 'u32[]', space=smem, size = 0x4, offset = 0x4, fixed_abs, tag = 'smem constant byte address 0x4 - core index']
  #allocation1 [shape = 'u32[144,128]{1,0:T(1,128)}', space=vmem, size = 0x12000, scoped, tag = 'internal scratch']
  %s0 = inlined_call_operand.vmem [shape: f32[8,784], index: 0, kind: input, shape index: {}]
  %s1 = inlined_call_operand.vmem [shape: f32[784,2048], index: 1, kind: input, shape index: {}]
  %s2 = inlined_call_operand.vmem [shape: f32[1,512], index: 2, kind: input, shape index: {}]
  %s3 = inlined_call_operand.vmem [shape: f32[512,512], index: 3, kind: input, shape index: {}]
  %s4 = inlined_call_operand.vmem [shape: f32[1,128], index: 4, kind: input, shape index: {}]
  %s5 = inlined_call_operand.vmem [shape: f32[128,784], index: 5, kind: input, shape index: {}]
  %s6 = inlined_call_operand.vmem [shape: f32[1,784], index: 6, kind: input, shape index: {}]
  %s7 = inlined_call_operand.vmem [shape: f32[8,784], index: 7, kind: output, shape index: {}]
  %s8 = sld [smem:[#allocation0]]
  $region38: #{ae_forward.1} parent=0
    _
  %s10 = ssub.s32 1, %s8
  %s11 = scalar_select 0, %s10, %s8
  // Predicated region
  $region2: #{ae_forward.1} parent=0 // pred_check
    _
  $region3: #{ae_forward.1} parent=0 // pred_check_branch
    %13 = sbr.rel (0) target = $region5
  $region4: #{ae_forward.1} parent=0 // pred_region
    _
  $region5: #{ae_forward.1} parent=0 // pred_fallthru
    _
  // Predicated region
  $region6: #{ae_forward.1} parent=0 // pred_check
    _
  $region7: #{ae_forward.1} parent=0 // pred_check_branch
    %15 = sbr.rel (0) target = $region9
  $region8: #{ae_forward.1} parent=0 // pred_region
    _
  $region9: #{ae_forward.1} parent=0 // pred_fallthru
    _
  // Predicated region
  $region10: #{ae_forward.1} parent=0 // pred_check
    _
  $region11: #{ae_forward.1} parent=0 // pred_check_branch
    %17 = sbr.rel (0) target = $region13
  $region12: #{ae_forward.1} parent=0 // pred_region
    _
  $region13: #{ae_forward.1} parent=0 // pred_fallthru
    _
  // Predicated region
  $region14: #{ae_forward.1} parent=0 // pred_check
    _
  $region15: #{ae_forward.1} parent=0 // pred_check_branch
    %19 = sbr.rel (0) target = $region17
  $region16: #{ae_forward.1} parent=0 // pred_region
    _
  $region17: #{ae_forward.1} parent=0 // pred_fallthru
    _
  // Predicated region
  $region18: #{ae_forward.1} parent=0 // pred_check
    _
  $region19: #{ae_forward.1} parent=0 // pred_check_branch
    %21 = sbr.rel (0) target = $region21
  $region20: #{ae_forward.1} parent=0 // pred_region
    _
  $region21: #{ae_forward.1} parent=0 // pred_fallthru
    _
  // Predicated region
  $region22: #{ae_forward.1} parent=0 // pred_check
    _
  $region23: #{ae_forward.1} parent=0 // pred_check_branch
    %23 = sbr.rel (0) target = $region25
  $region24: #{ae_forward.1} parent=0 // pred_region
    _
  $region25: #{ae_forward.1} parent=0 // pred_fallthru
    _
  // Predicated region
  $region26: #{ae_forward.1} parent=0 // pred_check
    _
  $region27: #{ae_forward.1} parent=0 // pred_check_branch
    %25 = sbr.rel (0) target = $region29
  $region28: #{ae_forward.1} parent=0 // pred_region
    _
  $region29: #{ae_forward.1} parent=0 // pred_fallthru
    _
  %v26 = vld [vmem:[%s0] sm:$0xff]
  %v27 = vld [vmem:[%s0 + $0x8] sm:$0xff]
  %v28 = vld [vmem:[%s0 + $0x10] sm:$0xff]
  %v29 = vld [vmem:[%s0 + $0x18] sm:$0xff]
  %v30 = vld [vmem:[%s0 + $0x20] sm:$0xff]
  %v31 = vld [vmem:[%s0 + $0x28] sm:$0xff]
  %v32 = vld [vmem:[%s0 + $0x30] sm:$0xff]
  %v33 = vld [vmem:[%s1] sm:$0xff]
  %v34 = vld [vmem:[%s1 + $0x8] sm:$0xff]
  %v35 = vld [vmem:[%s1 + $0x10] sm:$0xff]
  %v36 = vld [vmem:[%s1 + $0x18] sm:$0xff]
  %v37 = vld [vmem:[%s1 + $0x20] sm:$0xff]
  %v38 = vld [vmem:[%s1 + $0x28] sm:$0xff]
  %v39 = vld [vmem:[%s1 + $0x30] sm:$0xff]
  %v40 = vld [vmem:[%s1 + $0x38] sm:$0xff]
  %v41 = vld [vmem:[%s1 + $0x40] sm:$0xff]
  %v42 = vld [vmem:[%s1 + $0x48] sm:$0xff]
  %v43 = vld [vmem:[%s1 + $0x50] sm:$0xff]
  %v44 = vld [vmem:[%s1 + $0x58] sm:$0xff]
  %v45 = vld [vmem:[%s1 + $0x60] sm:$0xff]
  %v46 = vld [vmem:[%s1 + $0x68] sm:$0xff]
  %v47 = vld [vmem:[%s1 + $0x70] sm:$0xff]
  %v48 = vld [vmem:[%s1 + $0x78] sm:$0xff]
  %v49 = vld [vmem:[%s1 + $0x80] sm:$0xff]
  %v50 = vld [vmem:[%s1 + $0x88] sm:$0xff]
  %v51 = vld [vmem:[%s1 + $0x90] sm:$0xff]
  %v52 = vld [vmem:[%s1 + $0x98] sm:$0xff]
  %v53 = vld [vmem:[%s1 + $0xa0] sm:$0xff]
  %v54 = vld [vmem:[%s1 + $0xa8] sm:$0xff]
  %v55 = vld [vmem:[%s1 + $0xb0] sm:$0xff]
  %v56 = vld [vmem:[%s1 + $0xb8] sm:$0xff]
  %v57 = vld [vmem:[%s1 + $0xc0] sm:$0xff]
  %v58 = vld [vmem:[%s1 + $0xc8] sm:$0xff]
  %v59 = vld [vmem:[%s1 + $0xd0] sm:$0xff]
  %v60 = vld [vmem:[%s1 + $0xd8] sm:$0xff]
  %v61 = vld [vmem:[%s1 + $0xe0] sm:$0xff]
  %v62 = vld [vmem:[%s1 + $0xe8] sm:$0xff]
  %v63 = vld [vmem:[%s1 + $0xf0] sm:$0xff]
  %v64 = vld [vmem:[%s1 + $0xf8] sm:$0xff]
  %v65 = vld [vmem:[%s1 + $0x100] sm:$0xff]
  %v66 = vld [vmem:[%s1 + $0x108] sm:$0xff]
  %v67 = vld [vmem:[%s1 + $0x110] sm:$0xff]
  %v68 = vld [vmem:[%s1 + $0x118] sm:$0xff]
  %v69 = vld [vmem:[%s1 + $0x120] sm:$0xff]
  %v70 = vld [vmem:[%s1 + $0x128] sm:$0xff]
  %v71 = vld [vmem:[%s1 + $0x130] sm:$0xff]
  %v72 = vld [vmem:[%s1 + $0x138] sm:$0xff]
  %v73 = vld [vmem:[%s1 + $0x140] sm:$0xff]
  %v74 = vld [vmem:[%s1 + $0x148] sm:$0xff]
  %v75 = vld [vmem:[%s1 + $0x150] sm:$0xff]
  %v76 = vld [vmem:[%s1 + $0x158] sm:$0xff]
  %v77 = vld [vmem:[%s1 + $0x160] sm:$0xff]
  %v78 = vld [vmem:[%s1 + $0x168] sm:$0xff]
  %v79 = vld [vmem:[%s1 + $0x170] sm:$0xff]
  %v80 = vld [vmem:[%s1 + $0x178] sm:$0xff]
  %v81 = vld [vmem:[%s1 + $0x180] sm:$0xff]
  %v82 = vld [vmem:[%s1 + $0x188] sm:$0xff]
  %v83 = vld [vmem:[%s1 + $0x190] sm:$0xff]
  %v84 = vld [vmem:[%s1 + $0x198] sm:$0xff]
  %v85 = vld [vmem:[%s1 + $0x1a0] sm:$0xff]
  %v86 = vld [vmem:[%s1 + $0x1a8] sm:$0xff]
  %v87 = vld [vmem:[%s1 + $0x1b0] sm:$0xff]
  %v88 = vld [vmem:[%s1 + $0x1b8] sm:$0xff]
  %v89 = vld [vmem:[%s1 + $0x1c0] sm:$0xff]
  %v90 = vld [vmem:[%s1 + $0x1c8] sm:$0xff]
  %v91 = vld [vmem:[%s1 + $0x1d0] sm:$0xff]
  %v92 = vld [vmem:[%s1 + $0x1d8] sm:$0xff]
  %v93 = vld [vmem:[%s1 + $0x1e0] sm:$0xff]
  %v94 = vld [vmem:[%s1 + $0x1e8] sm:$0xff]
  %v95 = vld [vmem:[%s1 + $0x1f0] sm:$0xff]
  %v96 = vld [vmem:[%s1 + $0x1f8] sm:$0xff]
  %v97 = vld [vmem:[%s1 + $0x200] sm:$0xff]
  %v98 = vld [vmem:[%s1 + $0x208] sm:$0xff]
  %v99 = vld [vmem:[%s1 + $0x210] sm:$0xff]
  %v100 = vld [vmem:[%s1 + $0x218] sm:$0xff]
  %v101 = vld [vmem:[%s1 + $0x220] sm:$0xff]
  %v102 = vld [vmem:[%s1 + $0x228] sm:$0xff]
  %v103 = vld [vmem:[%s1 + $0x230] sm:$0xff]
  %v104 = vld [vmem:[%s1 + $0x238] sm:$0xff]
  %v105 = vld [vmem:[%s1 + $0x240] sm:$0xff]
  %v106 = vld [vmem:[%s1 + $0x248] sm:$0xff]
  %v107 = vld [vmem:[%s1 + $0x250] sm:$0xff]
  %v108 = vld [vmem:[%s1 + $0x258] sm:$0xff]
  %v109 = vld [vmem:[%s1 + $0x260] sm:$0xff]
  %v110 = vld [vmem:[%s1 + $0x268] sm:$0xff]
  %v111 = vld [vmem:[%s1 + $0x270] sm:$0xff]
  %v112 = vld [vmem:[%s1 + $0x278] sm:$0xff]
  %v113 = vld [vmem:[%s1 + $0x280] sm:$0xff]
  %v114 = vld [vmem:[%s1 + $0x288] sm:$0xff]
  %v115 = vld [vmem:[%s1 + $0x290] sm:$0xff]
  %v116 = vld [vmem:[%s1 + $0x298] sm:$0xff]
  %v117 = vld [vmem:[%s1 + $0x2a0] sm:$0xff]
  %v118 = vld [vmem:[%s1 + $0x2a8] sm:$0xff]
  %v119 = vld [vmem:[%s1 + $0x2b0] sm:$0xff]
  %v120 = vld [vmem:[%s1 + $0x2b8] sm:$0xff]
  %v121 = vld [vmem:[%s1 + $0x2c0] sm:$0xff]
  %v122 = vld [vmem:[%s1 + $0x2c8] sm:$0xff]
  %v123 = vld [vmem:[%s1 + $0x2d0] sm:$0xff]
  %v124 = vld [vmem:[%s1 + $0x2d8] sm:$0xff]
  %v125 = vld [vmem:[%s1 + $0x2e0] sm:$0xff]
  %v126 = vld [vmem:[%s1 + $0x2e8] sm:$0xff]
  %v127 = vld [vmem:[%s1 + $0x2f0] sm:$0xff]
  %v128 = vld [vmem:[%s1 + $0x2f8] sm:$0xff]
  %v129 = vld [vmem:[%s1 + $0x300] sm:$0xff]
  %v130 = vld [vmem:[%s1 + $0x308] sm:$0xff]
  %v131 = vld [vmem:[%s1 + $0x310] sm:$0xff]
  %v132 = vld [vmem:[%s1 + $0x318] sm:$0xff]
  %v133 = vld [vmem:[%s1 + $0x320] sm:$0xff]
  %v134 = vld [vmem:[%s1 + $0x328] sm:$0xff]
  %v135 = vld [vmem:[%s1 + $0x330] sm:$0xff]
  %v136 = vld [vmem:[%s1 + $0x338] sm:$0xff]
  %v137 = vld [vmem:[%s1 + $0x340] sm:$0xff]
  %v138 = vld [vmem:[%s1 + $0x348] sm:$0xff]
  %v139 = vld [vmem:[%s1 + $0x350] sm:$0xff]
  %v140 = vld [vmem:[%s1 + $0x358] sm:$0xff]
  %v141 = vld [vmem:[%s1 + $0x360] sm:$0xff]
  %v142 = vld [vmem:[%s1 + $0x368] sm:$0xff]
  %v143 = vld [vmem:[%s1 + $0x370] sm:$0xff]
  %v144 = vld [vmem:[%s1 + $0x378] sm:$0xff]
  %v145 = vld [vmem:[%s1 + $0x380] sm:$0xff]
  %v146 = vld [vmem:[%s1 + $0x388] sm:$0xff]
  %v147 = vld [vmem:[%s1 + $0x390] sm:$0xff]
  %v148 = vld [vmem:[%s1 + $0x398] sm:$0xff]
  %v149 = vld [vmem:[%s1 + $0x3a0] sm:$0xff]
  %v150 = vld [vmem:[%s1 + $0x3a8] sm:$0xff]
  %v151 = vld [vmem:[%s1 + $0x3b0] sm:$0xff]
  %v152 = vld [vmem:[%s1 + $0x3b8] sm:$0xff]
  %v153 = vld [vmem:[%s1 + $0x3c0] sm:$0xff]
  %v154 = vld [vmem:[%s1 + $0x3c8] sm:$0xff]
  %v155 = vld [vmem:[%s1 + $0x3d0] sm:$0xff]
  %v156 = vld [vmem:[%s1 + $0x3d8] sm:$0xff]
  %v157 = vld [vmem:[%s1 + $0x3e0] sm:$0xff]
  %v158 = vld [vmem:[%s1 + $0x3e8] sm:$0xff]
  %v159 = vld [vmem:[%s1 + $0x3f0] sm:$0xff]
  %v160 = vld [vmem:[%s1 + $0x3f8] sm:$0xff]
  %v161 = vld [vmem:[%s1 + $0x400] sm:$0xff]
  %v162 = vld [vmem:[%s1 + $0x408] sm:$0xff]
  %v163 = vld [vmem:[%s1 + $0x410] sm:$0xff]
  %v164 = vld [vmem:[%s1 + $0x418] sm:$0xff]
  %v165 = vld [vmem:[%s1 + $0x420] sm:$0xff]
  %v166 = vld [vmem:[%s1 + $0x428] sm:$0xff]
  %v167 = vld [vmem:[%s1 + $0x430] sm:$0xff]
  %v168 = vld [vmem:[%s1 + $0x438] sm:$0xff]
  %v169 = vld [vmem:[%s1 + $0x440] sm:$0xff]
  %v170 = vld [vmem:[%s1 + $0x448] sm:$0xff]
  %v171 = vld [vmem:[%s1 + $0x450] sm:$0xff]
  %v172 = vld [vmem:[%s1 + $0x458] sm:$0xff]
  %v173 = vld [vmem:[%s1 + $0x460] sm:$0xff]
  %v174 = vld [vmem:[%s1 + $0x468] sm:$0xff]
  %v175 = vld [vmem:[%s1 + $0x470] sm:$0xff]
  %v176 = vld [vmem:[%s1 + $0x478] sm:$0xff]
  %v177 = vld [vmem:[%s1 + $0x480] sm:$0xff]
  %v178 = vld [vmem:[%s1 + $0x488] sm:$0xff]
  %v179 = vld [vmem:[%s1 + $0x490] sm:$0xff]
  %v180 = vld [vmem:[%s1 + $0x498] sm:$0xff]
  %v181 = vld [vmem:[%s1 + $0x4a0] sm:$0xff]
  %v182 = vld [vmem:[%s1 + $0x4a8] sm:$0xff]
  %v183 = vld [vmem:[%s1 + $0x4b0] sm:$0xff]
  %v184 = vld [vmem:[%s1 + $0x4b8] sm:$0xff]
  %v185 = vld [vmem:[%s1 + $0x4c0] sm:$0xff]
  %v186 = vld [vmem:[%s1 + $0x4c8] sm:$0xff]
  %v187 = vld [vmem:[%s1 + $0x4d0] sm:$0xff]
  %v188 = vld [vmem:[%s1 + $0x4d8] sm:$0xff]
  %v189 = vld [vmem:[%s1 + $0x4e0] sm:$0xff]
  %v190 = vld [vmem:[%s1 + $0x4e8] sm:$0xff]
  %v191 = vld [vmem:[%s1 + $0x4f0] sm:$0xff]
  %v192 = vld [vmem:[%s1 + $0x4f8] sm:$0xff]
  %v193 = vld [vmem:[%s1 + $0x500] sm:$0xff]
  %v194 = vld [vmem:[%s1 + $0x508] sm:$0xff]
  %v195 = vld [vmem:[%s1 + $0x510] sm:$0xff]
  %v196 = vld [vmem:[%s1 + $0x518] sm:$0xff]
  %v197 = vld [vmem:[%s1 + $0x520] sm:$0xff]
  %v198 = vld [vmem:[%s1 + $0x528] sm:$0xff]
  %v199 = vld [vmem:[%s1 + $0x530] sm:$0xff]
  %v200 = vld [vmem:[%s1 + $0x538] sm:$0xff]
  %v201 = vld [vmem:[%s1 + $0x540] sm:$0xff]
  %v202 = vld [vmem:[%s1 + $0x548] sm:$0xff]
  %v203 = vld [vmem:[%s1 + $0x550] sm:$0xff]
  %v204 = vld [vmem:[%s1 + $0x558] sm:$0xff]
  %v205 = vld [vmem:[%s1 + $0x560] sm:$0xff]
  %v206 = vld [vmem:[%s1 + $0x568] sm:$0xff]
  %v207 = vld [vmem:[%s1 + $0x570] sm:$0xff]
  %v208 = vld [vmem:[%s1 + $0x578] sm:$0xff]
  %v209 = vld [vmem:[%s1 + $0x580] sm:$0xff]
  %v210 = vld [vmem:[%s1 + $0x588] sm:$0xff]
  %v211 = vld [vmem:[%s1 + $0x590] sm:$0xff]
  %v212 = vld [vmem:[%s1 + $0x598] sm:$0xff]
  %v213 = vld [vmem:[%s1 + $0x5a0] sm:$0xff]
  %v214 = vld [vmem:[%s1 + $0x5a8] sm:$0xff]
  %v215 = vld [vmem:[%s1 + $0x5b0] sm:$0xff]
  %v216 = vld [vmem:[%s1 + $0x5b8] sm:$0xff]
  %v217 = vld [vmem:[%s1 + $0x5c0] sm:$0xff]
  %v218 = vld [vmem:[%s1 + $0x5c8] sm:$0xff]
  %v219 = vld [vmem:[%s1 + $0x5d0] sm:$0xff]
  %v220 = vld [vmem:[%s1 + $0x5d8] sm:$0xff]
  %v221 = vld [vmem:[%s1 + $0x5e0] sm:$0xff]
  %v222 = vld [vmem:[%s1 + $0x5e8] sm:$0xff]
  %v223 = vld [vmem:[%s1 + $0x5f0] sm:$0xff]
  %v224 = vld [vmem:[%s1 + $0x5f8] sm:$0xff]
  %v225 = vld [vmem:[%s1 + $0x600] sm:$0xff]
  %v226 = vld [vmem:[%s1 + $0x608] sm:$0xff]
  %v227 = vld [vmem:[%s1 + $0x610] sm:$0xff]
  %v228 = vld [vmem:[%s1 + $0x618] sm:$0xff]
  %v229 = vld [vmem:[%s1 + $0x620] sm:$0xff]
  %v230 = vld [vmem:[%s1 + $0x628] sm:$0xff]
  %v231 = vld [vmem:[%s1 + $0x630] sm:$0xff]
  %v232 = vld [vmem:[%s1 + $0x638] sm:$0xff]
  %v233 = vld [vmem:[%s1 + $0x640] sm:$0xff]
  %v234 = vld [vmem:[%s1 + $0x648] sm:$0xff]
  %v235 = vld [vmem:[%s1 + $0x650] sm:$0xff]
  %v236 = vld [vmem:[%s1 + $0x658] sm:$0xff]
  %v237 = vld [vmem:[%s1 + $0x660] sm:$0xff]
  %v238 = vld [vmem:[%s1 + $0x668] sm:$0xff]
  %v239 = vld [vmem:[%s1 + $0x670] sm:$0xff]
  %v240 = vld [vmem:[%s1 + $0x678] sm:$0xff]
  %v241 = vld [vmem:[%s1 + $0x680] sm:$0xff]
  %v242 = vld [vmem:[%s1 + $0x688] sm:$0xff]
  %v243 = vld [vmem:[%s1 + $0x690] sm:$0xff]
  %v244 = vld [vmem:[%s1 + $0x698] sm:$0xff]
  %v245 = vld [vmem:[%s1 + $0x6a0] sm:$0xff]
  %v246 = vld [vmem:[%s1 + $0x6a8] sm:$0xff]
  %v247 = vld [vmem:[%s1 + $0x6b0] sm:$0xff]
  %v248 = vld [vmem:[%s1 + $0x6b8] sm:$0xff]
  %v249 = vld [vmem:[%s1 + $0x6c0] sm:$0xff]
  %v250 = vld [vmem:[%s1 + $0x6c8] sm:$0xff]
  %v251 = vld [vmem:[%s1 + $0x6d0] sm:$0xff]
  %v252 = vld [vmem:[%s1 + $0x6d8] sm:$0xff]
  %v253 = vld [vmem:[%s1 + $0x6e0] sm:$0xff]
  %v254 = vld [vmem:[%s1 + $0x6e8] sm:$0xff]
  %v255 = vld [vmem:[%s1 + $0x6f0] sm:$0xff]
  %v256 = vld [vmem:[%s1 + $0x6f8] sm:$0xff]
  %v257 = vld [vmem:[%s1 + $0x700] sm:$0xff]
  %v258 = vld [vmem:[%s1 + $0x708] sm:$0xff]
  %v259 = vld [vmem:[%s1 + $0x710] sm:$0xff]
  %v260 = vld [vmem:[%s1 + $0x718] sm:$0xff]
  %v261 = vld [vmem:[%s1 + $0x720] sm:$0xff]
  %v262 = vld [vmem:[%s1 + $0x728] sm:$0xff]
  %v263 = vld [vmem:[%s1 + $0x730] sm:$0xff]
  %v264 = vld [vmem:[%s1 + $0x738] sm:$0xff]
  %v265 = vld [vmem:[%s1 + $0x740] sm:$0xff]
  %v266 = vld [vmem:[%s1 + $0x748] sm:$0xff]
  %v267 = vld [vmem:[%s1 + $0x750] sm:$0xff]
  %v268 = vld [vmem:[%s1 + $0x758] sm:$0xff]
  %v269 = vld [vmem:[%s1 + $0x760] sm:$0xff]
  %v270 = vld [vmem:[%s1 + $0x768] sm:$0xff]
  %v271 = vld [vmem:[%s1 + $0x770] sm:$0xff]
  %v272 = vld [vmem:[%s1 + $0x778] sm:$0xff]
  %v273 = vld [vmem:[%s1 + $0x780] sm:$0xff]
  %v274 = vld [vmem:[%s1 + $0x788] sm:$0xff]
  %v275 = vld [vmem:[%s1 + $0x790] sm:$0xff]
  %v276 = vld [vmem:[%s1 + $0x798] sm:$0xff]
  %v277 = vld [vmem:[%s1 + $0x7a0] sm:$0xff]
  %v278 = vld [vmem:[%s1 + $0x7a8] sm:$0xff]
  %v279 = vld [vmem:[%s1 + $0x7b0] sm:$0xff]
  %v280 = vld [vmem:[%s1 + $0x7b8] sm:$0xff]
  %v281 = vld [vmem:[%s1 + $0x7c0] sm:$0xff]
  %v282 = vld [vmem:[%s1 + $0x7c8] sm:$0xff]
  %v283 = vld [vmem:[%s1 + $0x7d0] sm:$0xff]
  %v284 = vld [vmem:[%s1 + $0x7d8] sm:$0xff]
  %v285 = vld [vmem:[%s1 + $0x7e0] sm:$0xff]
  %v286 = vld [vmem:[%s1 + $0x7e8] sm:$0xff]
  %v287 = vld [vmem:[%s1 + $0x7f0] sm:$0xff]
  %v288 = vld [vmem:[%s1 + $0x7f8] sm:$0xff]
  %v289 = vld [vmem:[%s1 + $0x800] sm:$0xff]
  %v290 = vld [vmem:[%s1 + $0x808] sm:$0xff]
  %v291 = vld [vmem:[%s1 + $0x810] sm:$0xff]
  %v292 = vld [vmem:[%s1 + $0x818] sm:$0xff]
  %v293 = vld [vmem:[%s1 + $0x820] sm:$0xff]
  %v294 = vld [vmem:[%s1 + $0x828] sm:$0xff]
  %v295 = vld [vmem:[%s1 + $0x830] sm:$0xff]
  %v296 = vld [vmem:[%s1 + $0x838] sm:$0xff]
  %v297 = vld [vmem:[%s1 + $0x840] sm:$0xff]
  %v298 = vld [vmem:[%s1 + $0x848] sm:$0xff]
  %v299 = vld [vmem:[%s1 + $0x850] sm:$0xff]
  %v300 = vld [vmem:[%s1 + $0x858] sm:$0xff]
  %v301 = vld [vmem:[%s1 + $0x860] sm:$0xff]
  %v302 = vld [vmem:[%s1 + $0x868] sm:$0xff]
  %v303 = vld [vmem:[%s1 + $0x870] sm:$0xff]
  %v304 = vld [vmem:[%s1 + $0x878] sm:$0xff]
  %v305 = vld [vmem:[%s1 + $0x880] sm:$0xff]
  %v306 = vld [vmem:[%s1 + $0x888] sm:$0xff]
  %v307 = vld [vmem:[%s1 + $0x890] sm:$0xff]
  %v308 = vld [vmem:[%s1 + $0x898] sm:$0xff]
  %v309 = vld [vmem:[%s1 + $0x8a0] sm:$0xff]
  %v310 = vld [vmem:[%s1 + $0x8a8] sm:$0xff]
  %v311 = vld [vmem:[%s1 + $0x8b0] sm:$0xff]
  %v312 = vld [vmem:[%s1 + $0x8b8] sm:$0xff]
  %v313 = vld [vmem:[%s1 + $0x8c0] sm:$0xff]
  %v314 = vld [vmem:[%s1 + $0x8c8] sm:$0xff]
  %v315 = vld [vmem:[%s1 + $0x8d0] sm:$0xff]
  %v316 = vld [vmem:[%s1 + $0x8d8] sm:$0xff]
  %v317 = vld [vmem:[%s1 + $0x8e0] sm:$0xff]
  %v318 = vld [vmem:[%s1 + $0x8e8] sm:$0xff]
  %v319 = vld [vmem:[%s1 + $0x8f0] sm:$0xff]
  %v320 = vld [vmem:[%s1 + $0x8f8] sm:$0xff]
  %v321 = vld [vmem:[%s1 + $0x900] sm:$0xff]
  %v322 = vld [vmem:[%s1 + $0x908] sm:$0xff]
  %v323 = vld [vmem:[%s1 + $0x910] sm:$0xff]
  %v324 = vld [vmem:[%s1 + $0x918] sm:$0xff]
  %v325 = vld [vmem:[%s1 + $0x920] sm:$0xff]
  %v326 = vld [vmem:[%s1 + $0x928] sm:$0xff]
  %v327 = vld [vmem:[%s1 + $0x930] sm:$0xff]
  %v328 = vld [vmem:[%s1 + $0x938] sm:$0xff]
  %v329 = vld [vmem:[%s1 + $0x940] sm:$0xff]
  %v330 = vld [vmem:[%s1 + $0x948] sm:$0xff]
  %v331 = vld [vmem:[%s1 + $0x950] sm:$0xff]
  %v332 = vld [vmem:[%s1 + $0x958] sm:$0xff]
  %v333 = vld [vmem:[%s1 + $0x960] sm:$0xff]
  %v334 = vld [vmem:[%s1 + $0x968] sm:$0xff]
  %v335 = vld [vmem:[%s1 + $0x970] sm:$0xff]
  %v336 = vld [vmem:[%s1 + $0x978] sm:$0xff]
  %v337 = vld [vmem:[%s1 + $0x980] sm:$0xff]
  %v338 = vld [vmem:[%s1 + $0x988] sm:$0xff]
  %v339 = vld [vmem:[%s1 + $0x990] sm:$0xff]
  %v340 = vld [vmem:[%s1 + $0x998] sm:$0xff]
  %v341 = vld [vmem:[%s1 + $0x9a0] sm:$0xff]
  %v342 = vld [vmem:[%s1 + $0x9a8] sm:$0xff]
  %v343 = vld [vmem:[%s1 + $0x9b0] sm:$0xff]
  %v344 = vld [vmem:[%s1 + $0x9b8] sm:$0xff]
  %v345 = vld [vmem:[%s1 + $0x9c0] sm:$0xff]
  %v346 = vld [vmem:[%s1 + $0x9c8] sm:$0xff]
  %v347 = vld [vmem:[%s1 + $0x9d0] sm:$0xff]
  %v348 = vld [vmem:[%s1 + $0x9d8] sm:$0xff]
  %v349 = vld [vmem:[%s1 + $0x9e0] sm:$0xff]
  %v350 = vld [vmem:[%s1 + $0x9e8] sm:$0xff]
  %v351 = vld [vmem:[%s1 + $0x9f0] sm:$0xff]
  %v352 = vld [vmem:[%s1 + $0x9f8] sm:$0xff]
  %v353 = vld [vmem:[%s1 + $0xa00] sm:$0xff]
  %v354 = vld [vmem:[%s1 + $0xa08] sm:$0xff]
  %v355 = vld [vmem:[%s1 + $0xa10] sm:$0xff]
  %v356 = vld [vmem:[%s1 + $0xa18] sm:$0xff]
  %v357 = vld [vmem:[%s1 + $0xa20] sm:$0xff]
  %v358 = vld [vmem:[%s1 + $0xa28] sm:$0xff]
  %v359 = vld [vmem:[%s1 + $0xa30] sm:$0xff]
  %v360 = vld [vmem:[%s1 + $0xa38] sm:$0xff]
  %v361 = vld [vmem:[%s1 + $0xa40] sm:$0xff]
  %v362 = vld [vmem:[%s1 + $0xa48] sm:$0xff]
  %v363 = vld [vmem:[%s1 + $0xa50] sm:$0xff]
  %v364 = vld [vmem:[%s1 + $0xa58] sm:$0xff]
  %v365 = vld [vmem:[%s1 + $0xa60] sm:$0xff]
  %v366 = vld [vmem:[%s1 + $0xa68] sm:$0xff]
  %v367 = vld [vmem:[%s1 + $0xa70] sm:$0xff]
  %v368 = vld [vmem:[%s1 + $0xa78] sm:$0xff]
  %v369 = vld [vmem:[%s1 + $0xa80] sm:$0xff]
  %v370 = vld [vmem:[%s1 + $0xa88] sm:$0xff]
  %v371 = vld [vmem:[%s1 + $0xa90] sm:$0xff]
  %v372 = vld [vmem:[%s1 + $0xa98] sm:$0xff]
  %v373 = vld [vmem:[%s1 + $0xaa0] sm:$0xff]
  %v374 = vld [vmem:[%s1 + $0xaa8] sm:$0xff]
  %v375 = vld [vmem:[%s1 + $0xab0] sm:$0xff]
  %v376 = vld [vmem:[%s1 + $0xab8] sm:$0xff]
  %v377 = vld [vmem:[%s1 + $0xac0] sm:$0xff]
  %v378 = vld [vmem:[%s1 + $0xac8] sm:$0xff]
  %v379 = vld [vmem:[%s1 + $0xad0] sm:$0xff]
  %v380 = vld [vmem:[%s1 + $0xad8] sm:$0xff]
  %v381 = vld [vmem:[%s1 + $0xae0] sm:$0xff]
  %v382 = vld [vmem:[%s1 + $0xae8] sm:$0xff]
  %v383 = vld [vmem:[%s1 + $0xaf0] sm:$0xff]
  %v384 = vld [vmem:[%s1 + $0xaf8] sm:$0xff]
  %v385 = vld [vmem:[%s1 + $0xb00] sm:$0xff]
  %v386 = vld [vmem:[%s1 + $0xb08] sm:$0xff]
  %v387 = vld [vmem:[%s1 + $0xb10] sm:$0xff]
  %v388 = vld [vmem:[%s1 + $0xb18] sm:$0xff]
  %v389 = vld [vmem:[%s1 + $0xb20] sm:$0xff]
  %v390 = vld [vmem:[%s1 + $0xb28] sm:$0xff]
  %v391 = vld [vmem:[%s1 + $0xb30] sm:$0xff]
  %v392 = vld [vmem:[%s1 + $0xb38] sm:$0xff]
  %v393 = vld [vmem:[%s1 + $0xb40] sm:$0xff]
  %v394 = vld [vmem:[%s1 + $0xb48] sm:$0xff]
  %v395 = vld [vmem:[%s1 + $0xb50] sm:$0xff]
  %v396 = vld [vmem:[%s1 + $0xb58] sm:$0xff]
  %v397 = vld [vmem:[%s1 + $0xb60] sm:$0xff]
  %v398 = vld [vmem:[%s1 + $0xb68] sm:$0xff]
  %v399 = vld [vmem:[%s1 + $0xb70] sm:$0xff]
  %v400 = vld [vmem:[%s1 + $0xb78] sm:$0xff]
  %v401 = vld [vmem:[%s1 + $0xb80] sm:$0xff]
  %v402 = vld [vmem:[%s1 + $0xb88] sm:$0xff]
  %v403 = vld [vmem:[%s1 + $0xb90] sm:$0xff]
  %v404 = vld [vmem:[%s1 + $0xb98] sm:$0xff]
  %v405 = vld [vmem:[%s1 + $0xba0] sm:$0xff]
  %v406 = vld [vmem:[%s1 + $0xba8] sm:$0xff]
  %v407 = vld [vmem:[%s1 + $0xbb0] sm:$0xff]
  %v408 = vld [vmem:[%s1 + $0xbb8] sm:$0xff]
  %v409 = vld [vmem:[%s1 + $0xbc0] sm:$0xff]
  %v410 = vld [vmem:[%s1 + $0xbc8] sm:$0xff]
  %v411 = vld [vmem:[%s1 + $0xbd0] sm:$0xff]
  %v412 = vld [vmem:[%s1 + $0xbd8] sm:$0xff]
  %v413 = vld [vmem:[%s1 + $0xbe0] sm:$0xff]
  %v414 = vld [vmem:[%s1 + $0xbe8] sm:$0xff]
  %v415 = vld [vmem:[%s1 + $0xbf0] sm:$0xff]
  %v416 = vld [vmem:[%s1 + $0xbf8] sm:$0xff]
  %v417 = vld [vmem:[%s1 + $0xc00] sm:$0xff]
  %v418 = vld [vmem:[%s1 + $0xc08] sm:$0xff]
  %v419 = vld [vmem:[%s1 + $0xc10] sm:$0xff]
  %v420 = vld [vmem:[%s1 + $0xc18] sm:$0xff]
  %v421 = vld [vmem:[%s1 + $0xc20] sm:$0xff]
  %v422 = vld [vmem:[%s1 + $0xc28] sm:$0xff]
  %v423 = vld [vmem:[%s1 + $0xc30] sm:$0xff]
  %v424 = vld [vmem:[%s1 + $0xc38] sm:$0xff]
  %v425 = vld [vmem:[%s1 + $0xc40] sm:$0xff]
  %v426 = vld [vmem:[%s1 + $0xc48] sm:$0xff]
  %v427 = vld [vmem:[%s1 + $0xc50] sm:$0xff]
  %v428 = vld [vmem:[%s1 + $0xc58] sm:$0xff]
  %v429 = vld [vmem:[%s1 + $0xc60] sm:$0xff]
  %v430 = vld [vmem:[%s1 + $0xc68] sm:$0xff]
  %v431 = vld [vmem:[%s1 + $0xc70] sm:$0xff]
  %v432 = vld [vmem:[%s1 + $0xc78] sm:$0xff]
  %v433 = vld [vmem:[%s1 + $0xc80] sm:$0xff]
  %v434 = vld [vmem:[%s1 + $0xc88] sm:$0xff]
  %v435 = vld [vmem:[%s1 + $0xc90] sm:$0xff]
  %v436 = vld [vmem:[%s1 + $0xc98] sm:$0xff]
  %v437 = vld [vmem:[%s1 + $0xca0] sm:$0xff]
  %v438 = vld [vmem:[%s1 + $0xca8] sm:$0xff]
  %v439 = vld [vmem:[%s1 + $0xcb0] sm:$0xff]
  %v440 = vld [vmem:[%s1 + $0xcb8] sm:$0xff]
  %v441 = vld [vmem:[%s1 + $0xcc0] sm:$0xff]
  %v442 = vld [vmem:[%s1 + $0xcc8] sm:$0xff]
  %v443 = vld [vmem:[%s1 + $0xcd0] sm:$0xff]
  %v444 = vld [vmem:[%s1 + $0xcd8] sm:$0xff]
  %v445 = vld [vmem:[%s1 + $0xce0] sm:$0xff]
  %v446 = vld [vmem:[%s1 + $0xce8] sm:$0xff]
  %v447 = vld [vmem:[%s1 + $0xcf0] sm:$0xff]
  %v448 = vld [vmem:[%s1 + $0xcf8] sm:$0xff]
  %v449 = vld [vmem:[%s1 + $0xd00] sm:$0xff]
  %v450 = vld [vmem:[%s1 + $0xd08] sm:$0xff]
  %v451 = vld [vmem:[%s1 + $0xd10] sm:$0xff]
  %v452 = vld [vmem:[%s1 + $0xd18] sm:$0xff]
  %v453 = vld [vmem:[%s1 + $0xd20] sm:$0xff]
  %v454 = vld [vmem:[%s1 + $0xd28] sm:$0xff]
  %v455 = vld [vmem:[%s1 + $0xd30] sm:$0xff]
  %v456 = vld [vmem:[%s1 + $0xd38] sm:$0xff]
  %v457 = vld [vmem:[%s1 + $0xd40] sm:$0xff]
  %v458 = vld [vmem:[%s1 + $0xd48] sm:$0xff]
  %v459 = vld [vmem:[%s1 + $0xd50] sm:$0xff]
  %v460 = vld [vmem:[%s1 + $0xd58] sm:$0xff]
  %v461 = vld [vmem:[%s1 + $0xd60] sm:$0xff]
  %v462 = vld [vmem:[%s1 + $0xd68] sm:$0xff]
  %v463 = vld [vmem:[%s1 + $0xd70] sm:$0xff]
  %v464 = vld [vmem:[%s1 + $0xd78] sm:$0xff]
  %v465 = vld [vmem:[%s1 + $0xd80] sm:$0xff]
  %v466 = vld [vmem:[%s1 + $0xd88] sm:$0xff]
  %v467 = vld [vmem:[%s1 + $0xd90] sm:$0xff]
  %v468 = vld [vmem:[%s1 + $0xd98] sm:$0xff]
  %v469 = vld [vmem:[%s1 + $0xda0] sm:$0xff]
  %v470 = vld [vmem:[%s1 + $0xda8] sm:$0xff]
  %v471 = vld [vmem:[%s1 + $0xdb0] sm:$0xff]
  %v472 = vld [vmem:[%s1 + $0xdb8] sm:$0xff]
  %v473 = vld [vmem:[%s1 + $0xdc0] sm:$0xff]
  %v474 = vld [vmem:[%s1 + $0xdc8] sm:$0xff]
  %v475 = vld [vmem:[%s1 + $0xdd0] sm:$0xff]
  %v476 = vld [vmem:[%s1 + $0xdd8] sm:$0xff]
  %v477 = vld [vmem:[%s1 + $0xde0] sm:$0xff]
  %v478 = vld [vmem:[%s1 + $0xde8] sm:$0xff]
  %v479 = vld [vmem:[%s1 + $0xdf0] sm:$0xff]
  %v480 = vld [vmem:[%s1 + $0xdf8] sm:$0xff]
  %v481 = vld [vmem:[%s1 + $0xe00] sm:$0xff]
  %v482 = vld [vmem:[%s1 + $0xe08] sm:$0xff]
  %v483 = vld [vmem:[%s1 + $0xe10] sm:$0xff]
  %v484 = vld [vmem:[%s1 + $0xe18] sm:$0xff]
  %v485 = vld [vmem:[%s1 + $0xe20] sm:$0xff]
  %v486 = vld [vmem:[%s1 + $0xe28] sm:$0xff]
  %v487 = vld [vmem:[%s1 + $0xe30] sm:$0xff]
  %v488 = vld [vmem:[%s1 + $0xe38] sm:$0xff]
  %v489 = vld [vmem:[%s1 + $0xe40] sm:$0xff]
  %v490 = vld [vmem:[%s1 + $0xe48] sm:$0xff]
  %v491 = vld [vmem:[%s1 + $0xe50] sm:$0xff]
  %v492 = vld [vmem:[%s1 + $0xe58] sm:$0xff]
  %v493 = vld [vmem:[%s1 + $0xe60] sm:$0xff]
  %v494 = vld [vmem:[%s1 + $0xe68] sm:$0xff]
  %v495 = vld [vmem:[%s1 + $0xe70] sm:$0xff]
  %v496 = vld [vmem:[%s1 + $0xe78] sm:$0xff]
  %v497 = vld [vmem:[%s1 + $0xe80] sm:$0xff]
  %v498 = vld [vmem:[%s1 + $0xe88] sm:$0xff]
  %v499 = vld [vmem:[%s1 + $0xe90] sm:$0xff]
  %v500 = vld [vmem:[%s1 + $0xe98] sm:$0xff]
  %v501 = vld [vmem:[%s1 + $0xea0] sm:$0xff]
  %v502 = vld [vmem:[%s1 + $0xea8] sm:$0xff]
  %v503 = vld [vmem:[%s1 + $0xeb0] sm:$0xff]
  %v504 = vld [vmem:[%s1 + $0xeb8] sm:$0xff]
  %v505 = vld [vmem:[%s1 + $0xec0] sm:$0xff]
  %v506 = vld [vmem:[%s1 + $0xec8] sm:$0xff]
  %v507 = vld [vmem:[%s1 + $0xed0] sm:$0xff]
  %v508 = vld [vmem:[%s1 + $0xed8] sm:$0xff]
  %v509 = vld [vmem:[%s1 + $0xee0] sm:$0xff]
  %v510 = vld [vmem:[%s1 + $0xee8] sm:$0xff]
  %v511 = vld [vmem:[%s1 + $0xef0] sm:$0xff]
  %v512 = vld [vmem:[%s1 + $0xef8] sm:$0xff]
  %v513 = vld [vmem:[%s1 + $0xf00] sm:$0xff]
  %v514 = vld [vmem:[%s1 + $0xf08] sm:$0xff]
  %v515 = vld [vmem:[%s1 + $0xf10] sm:$0xff]
  %v516 = vld [vmem:[%s1 + $0xf18] sm:$0xff]
  %v517 = vld [vmem:[%s1 + $0xf20] sm:$0xff]
  %v518 = vld [vmem:[%s1 + $0xf28] sm:$0xff]
  %v519 = vld [vmem:[%s1 + $0xf30] sm:$0xff]
  %v520 = vld [vmem:[%s1 + $0xf38] sm:$0xff]
  %v521 = vld [vmem:[%s1 + $0xf40] sm:$0xff]
  %v522 = vld [vmem:[%s1 + $0xf48] sm:$0xff]
  %v523 = vld [vmem:[%s1 + $0xf50] sm:$0xff]
  %v524 = vld [vmem:[%s1 + $0xf58] sm:$0xff]
  %v525 = vld [vmem:[%s1 + $0xf60] sm:$0xff]
  %v526 = vld [vmem:[%s1 + $0xf68] sm:$0xff]
  %v527 = vld [vmem:[%s1 + $0xf70] sm:$0xff]
  %v528 = vld [vmem:[%s1 + $0xf78] sm:$0xff]
  %v529 = vld [vmem:[%s1 + $0xf80] sm:$0xff]
  %v530 = vld [vmem:[%s1 + $0xf88] sm:$0xff]
  %v531 = vld [vmem:[%s1 + $0xf90] sm:$0xff]
  %v532 = vld [vmem:[%s1 + $0xf98] sm:$0xff]
  %v533 = vld [vmem:[%s1 + $0xfa0] sm:$0xff]
  %v534 = vld [vmem:[%s1 + $0xfa8] sm:$0xff]
  %v535 = vld [vmem:[%s1 + $0xfb0] sm:$0xff]
  %v536 = vld [vmem:[%s1 + $0xfb8] sm:$0xff]
  %v537 = vld [vmem:[%s1 + $0xfc0] sm:$0xff]
  %v538 = vld [vmem:[%s1 + $0xfc8] sm:$0xff]
  %v539 = vld [vmem:[%s1 + $0xfd0] sm:$0xff]
  %v540 = vld [vmem:[%s1 + $0xfd8] sm:$0xff]
  %v541 = vld [vmem:[%s1 + $0xfe0] sm:$0xff]
  %v542 = vld [vmem:[%s1 + $0xfe8] sm:$0xff]
  %v543 = vld [vmem:[%s1 + $0xff0] sm:$0xff]
  %v544 = vld [vmem:[%s1 + $0xff8] sm:$0xff]
  %v545 = vld [vmem:[%s1 + $0x1000] sm:$0xff]
  %v546 = vld [vmem:[%s1 + $0x1008] sm:$0xff]
  %v547 = vld [vmem:[%s1 + $0x1010] sm:$0xff]
  %v548 = vld [vmem:[%s1 + $0x1018] sm:$0xff]
  %v549 = vld [vmem:[%s1 + $0x1020] sm:$0xff]
  %v550 = vld [vmem:[%s1 + $0x1028] sm:$0xff]
  %v551 = vld [vmem:[%s1 + $0x1030] sm:$0xff]
  %v552 = vld [vmem:[%s1 + $0x1038] sm:$0xff]
  %v553 = vld [vmem:[%s1 + $0x1040] sm:$0xff]
  %v554 = vld [vmem:[%s1 + $0x1048] sm:$0xff]
  %v555 = vld [vmem:[%s1 + $0x1050] sm:$0xff]
  %v556 = vld [vmem:[%s1 + $0x1058] sm:$0xff]
  %v557 = vld [vmem:[%s1 + $0x1060] sm:$0xff]
  %v558 = vld [vmem:[%s1 + $0x1068] sm:$0xff]
  %v559 = vld [vmem:[%s1 + $0x1070] sm:$0xff]
  %v560 = vld [vmem:[%s1 + $0x1078] sm:$0xff]
  %v561 = vld [vmem:[%s1 + $0x1080] sm:$0xff]
  %v562 = vld [vmem:[%s1 + $0x1088] sm:$0xff]
  %v563 = vld [vmem:[%s1 + $0x1090] sm:$0xff]
  %v564 = vld [vmem:[%s1 + $0x1098] sm:$0xff]
  %v565 = vld [vmem:[%s1 + $0x10a0] sm:$0xff]
  %v566 = vld [vmem:[%s1 + $0x10a8] sm:$0xff]
  %v567 = vld [vmem:[%s1 + $0x10b0] sm:$0xff]
  %v568 = vld [vmem:[%s1 + $0x10b8] sm:$0xff]
  %v569 = vld [vmem:[%s1 + $0x10c0] sm:$0xff]
  %v570 = vld [vmem:[%s1 + $0x10c8] sm:$0xff]
  %v571 = vld [vmem:[%s1 + $0x10d0] sm:$0xff]
  %v572 = vld [vmem:[%s1 + $0x10d8] sm:$0xff]
  %v573 = vld [vmem:[%s1 + $0x10e0] sm:$0xff]
  %v574 = vld [vmem:[%s1 + $0x10e8] sm:$0xff]
  %v575 = vld [vmem:[%s1 + $0x10f0] sm:$0xff]
  %v576 = vld [vmem:[%s1 + $0x10f8] sm:$0xff]
  %v577 = vld [vmem:[%s1 + $0x1100] sm:$0xff]
  %v578 = vld [vmem:[%s1 + $0x1108] sm:$0xff]
  %v579 = vld [vmem:[%s1 + $0x1110] sm:$0xff]
  %v580 = vld [vmem:[%s1 + $0x1118] sm:$0xff]
  %v581 = vld [vmem:[%s1 + $0x1120] sm:$0xff]
  %v582 = vld [vmem:[%s1 + $0x1128] sm:$0xff]
  %v583 = vld [vmem:[%s1 + $0x1130] sm:$0xff]
  %v584 = vld [vmem:[%s1 + $0x1138] sm:$0xff]
  %v585 = vld [vmem:[%s1 + $0x1140] sm:$0xff]
  %v586 = vld [vmem:[%s1 + $0x1148] sm:$0xff]
  %v587 = vld [vmem:[%s1 + $0x1150] sm:$0xff]
  %v588 = vld [vmem:[%s1 + $0x1158] sm:$0xff]
  %v589 = vld [vmem:[%s1 + $0x1160] sm:$0xff]
  %v590 = vld [vmem:[%s1 + $0x1168] sm:$0xff]
  %v591 = vld [vmem:[%s1 + $0x1170] sm:$0xff]
  %v592 = vld [vmem:[%s1 + $0x1178] sm:$0xff]
  %v593 = vld [vmem:[%s1 + $0x1180] sm:$0xff]
  %v594 = vld [vmem:[%s1 + $0x1188] sm:$0xff]
  %v595 = vld [vmem:[%s1 + $0x1190] sm:$0xff]
  %v596 = vld [vmem:[%s1 + $0x1198] sm:$0xff]
  %v597 = vld [vmem:[%s1 + $0x11a0] sm:$0xff]
  %v598 = vld [vmem:[%s1 + $0x11a8] sm:$0xff]
  %v599 = vld [vmem:[%s1 + $0x11b0] sm:$0xff]
  %v600 = vld [vmem:[%s1 + $0x11b8] sm:$0xff]
  %v601 = vld [vmem:[%s1 + $0x11c0] sm:$0xff]
  %v602 = vld [vmem:[%s1 + $0x11c8] sm:$0xff]
  %v603 = vld [vmem:[%s1 + $0x11d0] sm:$0xff]
  %v604 = vld [vmem:[%s1 + $0x11d8] sm:$0xff]
  %v605 = vld [vmem:[%s1 + $0x11e0] sm:$0xff]
  %v606 = vld [vmem:[%s1 + $0x11e8] sm:$0xff]
  %v607 = vld [vmem:[%s1 + $0x11f0] sm:$0xff]
  %v608 = vld [vmem:[%s1 + $0x11f8] sm:$0xff]
  %v609 = vld [vmem:[%s1 + $0x1200] sm:$0xff]
  %v610 = vld [vmem:[%s1 + $0x1208] sm:$0xff]
  %v611 = vld [vmem:[%s1 + $0x1210] sm:$0xff]
  %v612 = vld [vmem:[%s1 + $0x1218] sm:$0xff]
  %v613 = vld [vmem:[%s1 + $0x1220] sm:$0xff]
  %v614 = vld [vmem:[%s1 + $0x1228] sm:$0xff]
  %v615 = vld [vmem:[%s1 + $0x1230] sm:$0xff]
  %v616 = vld [vmem:[%s1 + $0x1238] sm:$0xff]
  %v617 = vld [vmem:[%s1 + $0x1240] sm:$0xff]
  %v618 = vld [vmem:[%s1 + $0x1248] sm:$0xff]
  %v619 = vld [vmem:[%s1 + $0x1250] sm:$0xff]
  %v620 = vld [vmem:[%s1 + $0x1258] sm:$0xff]
  %v621 = vld [vmem:[%s1 + $0x1260] sm:$0xff]
  %v622 = vld [vmem:[%s1 + $0x1268] sm:$0xff]
  %v623 = vld [vmem:[%s1 + $0x1270] sm:$0xff]
  %v624 = vld [vmem:[%s1 + $0x1278] sm:$0xff]
  %v625 = vld [vmem:[%s1 + $0x1280] sm:$0xff]
  %v626 = vld [vmem:[%s1 + $0x1288] sm:$0xff]
  %v627 = vld [vmem:[%s1 + $0x1290] sm:$0xff]
  %v628 = vld [vmem:[%s1 + $0x1298] sm:$0xff]
  %v629 = vld [vmem:[%s1 + $0x12a0] sm:$0xff]
  %v630 = vld [vmem:[%s1 + $0x12a8] sm:$0xff]
  %v631 = vld [vmem:[%s1 + $0x12b0] sm:$0xff]
  %v632 = vld [vmem:[%s1 + $0x12b8] sm:$0xff]
  %v633 = vld [vmem:[%s1 + $0x12c0] sm:$0xff]
  %v634 = vld [vmem:[%s1 + $0x12c8] sm:$0xff]
  %v635 = vld [vmem:[%s1 + $0x12d0] sm:$0xff]
  %v636 = vld [vmem:[%s1 + $0x12d8] sm:$0xff]
  %v637 = vld [vmem:[%s1 + $0x12e0] sm:$0xff]
  %v638 = vld [vmem:[%s1 + $0x12e8] sm:$0xff]
  %v639 = vld [vmem:[%s1 + $0x12f0] sm:$0xff]
  %v640 = vld [vmem:[%s1 + $0x12f8] sm:$0xff]
  %v641 = vld [vmem:[%s1 + $0x1300] sm:$0xff]
  %v642 = vld [vmem:[%s1 + $0x1308] sm:$0xff]
  %v643 = vld [vmem:[%s1 + $0x1310] sm:$0xff]
  %v644 = vld [vmem:[%s1 + $0x1318] sm:$0xff]
  %v645 = vld [vmem:[%s1 + $0x1320] sm:$0xff]
  %v646 = vld [vmem:[%s1 + $0x1328] sm:$0xff]
  %v647 = vld [vmem:[%s1 + $0x1330] sm:$0xff]
  %v648 = vld [vmem:[%s1 + $0x1338] sm:$0xff]
  %v649 = vld [vmem:[%s1 + $0x1340] sm:$0xff]
  %v650 = vld [vmem:[%s1 + $0x1348] sm:$0xff]
  %v651 = vld [vmem:[%s1 + $0x1350] sm:$0xff]
  %v652 = vld [vmem:[%s1 + $0x1358] sm:$0xff]
  %v653 = vld [vmem:[%s1 + $0x1360] sm:$0xff]
  %v654 = vld [vmem:[%s1 + $0x1368] sm:$0xff]
  %v655 = vld [vmem:[%s1 + $0x1370] sm:$0xff]
  %v656 = vld [vmem:[%s1 + $0x1378] sm:$0xff]
  %v657 = vld [vmem:[%s1 + $0x1380] sm:$0xff]
  %v658 = vld [vmem:[%s1 + $0x1388] sm:$0xff]
  %v659 = vld [vmem:[%s1 + $0x1390] sm:$0xff]
  %v660 = vld [vmem:[%s1 + $0x1398] sm:$0xff]
  %v661 = vld [vmem:[%s1 + $0x13a0] sm:$0xff]
  %v662 = vld [vmem:[%s1 + $0x13a8] sm:$0xff]
  %v663 = vld [vmem:[%s1 + $0x13b0] sm:$0xff]
  %v664 = vld [vmem:[%s1 + $0x13b8] sm:$0xff]
  %v665 = vld [vmem:[%s1 + $0x13c0] sm:$0xff]
  %v666 = vld [vmem:[%s1 + $0x13c8] sm:$0xff]
  %v667 = vld [vmem:[%s1 + $0x13d0] sm:$0xff]
  %v668 = vld [vmem:[%s1 + $0x13d8] sm:$0xff]
  %v669 = vld [vmem:[%s1 + $0x13e0] sm:$0xff]
  %v670 = vld [vmem:[%s1 + $0x13e8] sm:$0xff]
  %v671 = vld [vmem:[%s1 + $0x13f0] sm:$0xff]
  %v672 = vld [vmem:[%s1 + $0x13f8] sm:$0xff]
  %v673 = vld [vmem:[%s1 + $0x1400] sm:$0xff]
  %v674 = vld [vmem:[%s1 + $0x1408] sm:$0xff]
  %v675 = vld [vmem:[%s1 + $0x1410] sm:$0xff]
  %v676 = vld [vmem:[%s1 + $0x1418] sm:$0xff]
  %v677 = vld [vmem:[%s1 + $0x1420] sm:$0xff]
  %v678 = vld [vmem:[%s1 + $0x1428] sm:$0xff]
  %v679 = vld [vmem:[%s1 + $0x1430] sm:$0xff]
  %v680 = vld [vmem:[%s1 + $0x1438] sm:$0xff]
  %v681 = vld [vmem:[%s1 + $0x1440] sm:$0xff]
  %v682 = vld [vmem:[%s1 + $0x1448] sm:$0xff]
  %v683 = vld [vmem:[%s1 + $0x1450] sm:$0xff]
  %v684 = vld [vmem:[%s1 + $0x1458] sm:$0xff]
  %v685 = vld [vmem:[%s1 + $0x1460] sm:$0xff]
  %v686 = vld [vmem:[%s1 + $0x1468] sm:$0xff]
  %v687 = vld [vmem:[%s1 + $0x1470] sm:$0xff]
  %v688 = vld [vmem:[%s1 + $0x1478] sm:$0xff]
  %v689 = vld [vmem:[%s1 + $0x1480] sm:$0xff]
  %v690 = vld [vmem:[%s1 + $0x1488] sm:$0xff]
  %v691 = vld [vmem:[%s1 + $0x1490] sm:$0xff]
  %v692 = vld [vmem:[%s1 + $0x1498] sm:$0xff]
  %v693 = vld [vmem:[%s1 + $0x14a0] sm:$0xff]
  %v694 = vld [vmem:[%s1 + $0x14a8] sm:$0xff]
  %v695 = vld [vmem:[%s1 + $0x14b0] sm:$0xff]
  %v696 = vld [vmem:[%s1 + $0x14b8] sm:$0xff]
  %v697 = vld [vmem:[%s1 + $0x14c0] sm:$0xff]
  %v698 = vld [vmem:[%s1 + $0x14c8] sm:$0xff]
  %v699 = vld [vmem:[%s1 + $0x14d0] sm:$0xff]
  %v700 = vld [vmem:[%s1 + $0x14d8] sm:$0xff]
  %v701 = vld [vmem:[%s1 + $0x14e0] sm:$0xff]
  %v702 = vld [vmem:[%s1 + $0x14e8] sm:$0xff]
  %v703 = vld [vmem:[%s1 + $0x14f0] sm:$0xff]
  %v704 = vld [vmem:[%s1 + $0x14f8] sm:$0xff]
  %v705 = vld [vmem:[%s1 + $0x1500] sm:$0xff]
  %v706 = vld [vmem:[%s1 + $0x1508] sm:$0xff]
  %v707 = vld [vmem:[%s1 + $0x1510] sm:$0xff]
  %v708 = vld [vmem:[%s1 + $0x1518] sm:$0xff]
  %v709 = vld [vmem:[%s1 + $0x1520] sm:$0xff]
  %v710 = vld [vmem:[%s1 + $0x1528] sm:$0xff]
  %v711 = vld [vmem:[%s1 + $0x1530] sm:$0xff]
  %v712 = vld [vmem:[%s1 + $0x1538] sm:$0xff]
  %v713 = vld [vmem:[%s1 + $0x1540] sm:$0xff]
  %v714 = vld [vmem:[%s1 + $0x1548] sm:$0xff]
  %v715 = vld [vmem:[%s1 + $0x1550] sm:$0xff]
  %v716 = vld [vmem:[%s1 + $0x1558] sm:$0xff]
  %v717 = vld [vmem:[%s1 + $0x1560] sm:$0xff]
  %v718 = vld [vmem:[%s1 + $0x1568] sm:$0xff]
  %v719 = vld [vmem:[%s1 + $0x1570] sm:$0xff]
  %v720 = vld [vmem:[%s1 + $0x1578] sm:$0xff]
  %v721 = vld [vmem:[%s1 + $0x1580] sm:$0xff]
  %v722 = vld [vmem:[%s1 + $0x1588] sm:$0xff]
  %v723 = vld [vmem:[%s1 + $0x1590] sm:$0xff]
  %v724 = vld [vmem:[%s1 + $0x1598] sm:$0xff]
  %v725 = vld [vmem:[%s1 + $0x15a0] sm:$0xff]
  %v726 = vld [vmem:[%s1 + $0x15a8] sm:$0xff]
  %v727 = vld [vmem:[%s1 + $0x15b0] sm:$0xff]
  %v728 = vld [vmem:[%s1 + $0x15b8] sm:$0xff]
  %v729 = vld [vmem:[%s1 + $0x15c0] sm:$0xff]
  %v730 = vld [vmem:[%s1 + $0x15c8] sm:$0xff]
  %v731 = vld [vmem:[%s1 + $0x15d0] sm:$0xff]
  %v732 = vld [vmem:[%s1 + $0x15d8] sm:$0xff]
  %v733 = vld [vmem:[%s1 + $0x15e0] sm:$0xff]
  %v734 = vld [vmem:[%s1 + $0x15e8] sm:$0xff]
  %v735 = vld [vmem:[%s1 + $0x15f0] sm:$0xff]
  %v736 = vld [vmem:[%s1 + $0x15f8] sm:$0xff]
  %v737 = vld [vmem:[%s1 + $0x1600] sm:$0xff]
  %v738 = vld [vmem:[%s1 + $0x1608] sm:$0xff]
  %v739 = vld [vmem:[%s1 + $0x1610] sm:$0xff]
  %v740 = vld [vmem:[%s1 + $0x1618] sm:$0xff]
  %v741 = vld [vmem:[%s1 + $0x1620] sm:$0xff]
  %v742 = vld [vmem:[%s1 + $0x1628] sm:$0xff]
  %v743 = vld [vmem:[%s1 + $0x1630] sm:$0xff]
  %v744 = vld [vmem:[%s1 + $0x1638] sm:$0xff]
  %v745 = vld [vmem:[%s1 + $0x1640] sm:$0xff]
  %v746 = vld [vmem:[%s1 + $0x1648] sm:$0xff]
  %v747 = vld [vmem:[%s1 + $0x1650] sm:$0xff]
  %v748 = vld [vmem:[%s1 + $0x1658] sm:$0xff]
  %v749 = vld [vmem:[%s1 + $0x1660] sm:$0xff]
  %v750 = vld [vmem:[%s1 + $0x1668] sm:$0xff]
  %v751 = vld [vmem:[%s1 + $0x1670] sm:$0xff]
  %v752 = vld [vmem:[%s1 + $0x1678] sm:$0xff]
  %v753 = vld [vmem:[%s1 + $0x1680] sm:$0xff]
  %v754 = vld [vmem:[%s1 + $0x1688] sm:$0xff]
  %v755 = vld [vmem:[%s1 + $0x1690] sm:$0xff]
  %v756 = vld [vmem:[%s1 + $0x1698] sm:$0xff]
  %v757 = vld [vmem:[%s1 + $0x16a0] sm:$0xff]
  %v758 = vld [vmem:[%s1 + $0x16a8] sm:$0xff]
  %v759 = vld [vmem:[%s1 + $0x16b0] sm:$0xff]
  %v760 = vld [vmem:[%s1 + $0x16b8] sm:$0xff]
  %v761 = vld [vmem:[%s1 + $0x16c0] sm:$0xff]
  %v762 = vld [vmem:[%s1 + $0x16c8] sm:$0xff]
  %v763 = vld [vmem:[%s1 + $0x16d0] sm:$0xff]
  %v764 = vld [vmem:[%s1 + $0x16d8] sm:$0xff]
  %v765 = vld [vmem:[%s1 + $0x16e0] sm:$0xff]
  %v766 = vld [vmem:[%s1 + $0x16e8] sm:$0xff]
  %v767 = vld [vmem:[%s1 + $0x16f0] sm:$0xff]
  %v768 = vld [vmem:[%s1 + $0x16f8] sm:$0xff]
  %v769 = vld [vmem:[%s1 + $0x1700] sm:$0xff]
  %v770 = vld [vmem:[%s1 + $0x1708] sm:$0xff]
  %v771 = vld [vmem:[%s1 + $0x1710] sm:$0xff]
  %v772 = vld [vmem:[%s1 + $0x1718] sm:$0xff]
  %v773 = vld [vmem:[%s1 + $0x1720] sm:$0xff]
  %v774 = vld [vmem:[%s1 + $0x1728] sm:$0xff]
  %v775 = vld [vmem:[%s1 + $0x1730] sm:$0xff]
  %v776 = vld [vmem:[%s1 + $0x1738] sm:$0xff]
  %v777 = vld [vmem:[%s1 + $0x1740] sm:$0xff]
  %v778 = vld [vmem:[%s1 + $0x1748] sm:$0xff]
  %v779 = vld [vmem:[%s1 + $0x1750] sm:$0xff]
  %v780 = vld [vmem:[%s1 + $0x1758] sm:$0xff]
  %v781 = vld [vmem:[%s1 + $0x1760] sm:$0xff]
  %v782 = vld [vmem:[%s1 + $0x1768] sm:$0xff]
  %v783 = vld [vmem:[%s1 + $0x1770] sm:$0xff]
  %v784 = vld [vmem:[%s1 + $0x1778] sm:$0xff]
  %v785 = vld [vmem:[%s1 + $0x1780] sm:$0xff]
  %v786 = vld [vmem:[%s1 + $0x1788] sm:$0xff]
  %v787 = vld [vmem:[%s1 + $0x1790] sm:$0xff]
  %v788 = vld [vmem:[%s1 + $0x1798] sm:$0xff]
  %v789 = vld [vmem:[%s1 + $0x17a0] sm:$0xff]
  %v790 = vld [vmem:[%s1 + $0x17a8] sm:$0xff]
  %v791 = vld [vmem:[%s1 + $0x17b0] sm:$0xff]
  %v792 = vld [vmem:[%s1 + $0x17b8] sm:$0xff]
  %v793 = vld [vmem:[%s1 + $0x17c0] sm:$0xff]
  %v794 = vld [vmem:[%s1 + $0x17c8] sm:$0xff]
  %v795 = vld [vmem:[%s1 + $0x17d0] sm:$0xff]
  %v796 = vld [vmem:[%s1 + $0x17d8] sm:$0xff]
  %v797 = vld [vmem:[%s1 + $0x17e0] sm:$0xff]
  %v798 = vld [vmem:[%s1 + $0x17e8] sm:$0xff]
  %v799 = vld [vmem:[%s1 + $0x17f0] sm:$0xff]
  %v800 = vld [vmem:[%s1 + $0x17f8] sm:$0xff]
  %v801 = vld [vmem:[%s1 + $0x1800] sm:$0xff]
  %v802 = vld [vmem:[%s1 + $0x1808] sm:$0xff]
  %v803 = vld [vmem:[%s1 + $0x1810] sm:$0xff]
  %v804 = vld [vmem:[%s1 + $0x1818] sm:$0xff]
  %v805 = vld [vmem:[%s1 + $0x1820] sm:$0xff]
  %v806 = vld [vmem:[%s1 + $0x1828] sm:$0xff]
  %v807 = vld [vmem:[%s1 + $0x1830] sm:$0xff]
  %v808 = vld [vmem:[%s1 + $0x1838] sm:$0xff]
  %v809 = vld [vmem:[%s1 + $0x1840] sm:$0xff]
  %v810 = vld [vmem:[%s1 + $0x1848] sm:$0xff]
  %v811 = vld [vmem:[%s1 + $0x1850] sm:$0xff]
  %v812 = vld [vmem:[%s1 + $0x1858] sm:$0xff]
  %v813 = vld [vmem:[%s1 + $0x1860] sm:$0xff]
  %v814 = vld [vmem:[%s1 + $0x1868] sm:$0xff]
  %v815 = vld [vmem:[%s1 + $0x1870] sm:$0xff]
  %v816 = vld [vmem:[%s1 + $0x1878] sm:$0xff]
  %v817 = vld [vmem:[%s1 + $0x1880] sm:$0xff]
  %v818 = vld [vmem:[%s1 + $0x1888] sm:$0xff]
  %v819 = vld [vmem:[%s1 + $0x1890] sm:$0xff]
  %v820 = vld [vmem:[%s1 + $0x1898] sm:$0xff]
  %v821 = vld [vmem:[%s1 + $0x18a0] sm:$0xff]
  %v822 = vld [vmem:[%s1 + $0x18a8] sm:$0xff]
  %v823 = vld [vmem:[%s1 + $0x18b0] sm:$0xff]
  %v824 = vld [vmem:[%s1 + $0x18b8] sm:$0xff]
  %v825 = vld [vmem:[%s1 + $0x18c0] sm:$0xff]
  %v826 = vld [vmem:[%s1 + $0x18c8] sm:$0xff]
  %v827 = vld [vmem:[%s1 + $0x18d0] sm:$0xff]
  %v828 = vld [vmem:[%s1 + $0x18d8] sm:$0xff]
  %v829 = vld [vmem:[%s1 + $0x18e0] sm:$0xff]
  %v830 = vld [vmem:[%s1 + $0x18e8] sm:$0xff]
  %v831 = vld [vmem:[%s1 + $0x18f0] sm:$0xff]
  %v832 = vld [vmem:[%s1 + $0x18f8] sm:$0xff]
  %v833 = vld [vmem:[%s1 + $0x1900] sm:$0xff]
  %v834 = vld [vmem:[%s1 + $0x1908] sm:$0xff]
  %v835 = vld [vmem:[%s1 + $0x1910] sm:$0xff]
  %v836 = vld [vmem:[%s1 + $0x1918] sm:$0xff]
  %v837 = vld [vmem:[%s1 + $0x1920] sm:$0xff]
  %v838 = vld [vmem:[%s1 + $0x1928] sm:$0xff]
  %v839 = vld [vmem:[%s1 + $0x1930] sm:$0xff]
  %v840 = vld [vmem:[%s1 + $0x1938] sm:$0xff]
  %v841 = vld [vmem:[%s1 + $0x1940] sm:$0xff]
  %v842 = vld [vmem:[%s1 + $0x1948] sm:$0xff]
  %v843 = vld [vmem:[%s1 + $0x1950] sm:$0xff]
  %v844 = vld [vmem:[%s1 + $0x1958] sm:$0xff]
  %v845 = vld [vmem:[%s1 + $0x1960] sm:$0xff]
  %v846 = vld [vmem:[%s1 + $0x1968] sm:$0xff]
  %v847 = vld [vmem:[%s1 + $0x1970] sm:$0xff]
  %v848 = vld [vmem:[%s1 + $0x1978] sm:$0xff]
  %v849 = vld [vmem:[%s1 + $0x1980] sm:$0xff]
  %v850 = vld [vmem:[%s1 + $0x1988] sm:$0xff]
  %v851 = vld [vmem:[%s1 + $0x1990] sm:$0xff]
  %v852 = vld [vmem:[%s1 + $0x1998] sm:$0xff]
  %v853 = vld [vmem:[%s1 + $0x19a0] sm:$0xff]
  %v854 = vld [vmem:[%s1 + $0x19a8] sm:$0xff]
  %v855 = vld [vmem:[%s1 + $0x19b0] sm:$0xff]
  %v856 = vld [vmem:[%s1 + $0x19b8] sm:$0xff]
  %v857 = vld [vmem:[%s1 + $0x19c0] sm:$0xff]
  %v858 = vld [vmem:[%s1 + $0x19c8] sm:$0xff]
  %v859 = vld [vmem:[%s1 + $0x19d0] sm:$0xff]
  %v860 = vld [vmem:[%s1 + $0x19d8] sm:$0xff]
  %v861 = vld [vmem:[%s1 + $0x19e0] sm:$0xff]
  %v862 = vld [vmem:[%s1 + $0x19e8] sm:$0xff]
  %v863 = vld [vmem:[%s1 + $0x19f0] sm:$0xff]
  %v864 = vld [vmem:[%s1 + $0x19f8] sm:$0xff]
  %v865 = vld [vmem:[%s1 + $0x1a00] sm:$0xff]
  %v866 = vld [vmem:[%s1 + $0x1a08] sm:$0xff]
  %v867 = vld [vmem:[%s1 + $0x1a10] sm:$0xff]
  %v868 = vld [vmem:[%s1 + $0x1a18] sm:$0xff]
  %v869 = vld [vmem:[%s1 + $0x1a20] sm:$0xff]
  %v870 = vld [vmem:[%s1 + $0x1a28] sm:$0xff]
  %v871 = vld [vmem:[%s1 + $0x1a30] sm:$0xff]
  %v872 = vld [vmem:[%s1 + $0x1a38] sm:$0xff]
  %v873 = vld [vmem:[%s1 + $0x1a40] sm:$0xff]
  %v874 = vld [vmem:[%s1 + $0x1a48] sm:$0xff]
  %v875 = vld [vmem:[%s1 + $0x1a50] sm:$0xff]
  %v876 = vld [vmem:[%s1 + $0x1a58] sm:$0xff]
  %v877 = vld [vmem:[%s1 + $0x1a60] sm:$0xff]
  %v878 = vld [vmem:[%s1 + $0x1a68] sm:$0xff]
  %v879 = vld [vmem:[%s1 + $0x1a70] sm:$0xff]
  %v880 = vld [vmem:[%s1 + $0x1a78] sm:$0xff]
  %v881 = vld [vmem:[%s1 + $0x1a80] sm:$0xff]
  %v882 = vld [vmem:[%s1 + $0x1a88] sm:$0xff]
  %v883 = vld [vmem:[%s1 + $0x1a90] sm:$0xff]
  %v884 = vld [vmem:[%s1 + $0x1a98] sm:$0xff]
  %v885 = vld [vmem:[%s1 + $0x1aa0] sm:$0xff]
  %v886 = vld [vmem:[%s1 + $0x1aa8] sm:$0xff]
  %v887 = vld [vmem:[%s1 + $0x1ab0] sm:$0xff]
  %v888 = vld [vmem:[%s1 + $0x1ab8] sm:$0xff]
  %v889 = vld [vmem:[%s1 + $0x1ac0] sm:$0xff]
  %v890 = vld [vmem:[%s1 + $0x1ac8] sm:$0xff]
  %v891 = vld [vmem:[%s1 + $0x1ad0] sm:$0xff]
  %v892 = vld [vmem:[%s1 + $0x1ad8] sm:$0xff]
  %v893 = vld [vmem:[%s1 + $0x1ae0] sm:$0xff]
  %v894 = vld [vmem:[%s1 + $0x1ae8] sm:$0xff]
  %v895 = vld [vmem:[%s1 + $0x1af0] sm:$0xff]
  %v896 = vld [vmem:[%s1 + $0x1af8] sm:$0xff]
  %v897 = vld [vmem:[%s1 + $0x1b00] sm:$0xff]
  %v898 = vld [vmem:[%s1 + $0x1b08] sm:$0xff]
  %v899 = vld [vmem:[%s1 + $0x1b10] sm:$0xff]
  %v900 = vld [vmem:[%s1 + $0x1b18] sm:$0xff]
  %v901 = vld [vmem:[%s1 + $0x1b20] sm:$0xff]
  %v902 = vld [vmem:[%s1 + $0x1b28] sm:$0xff]
  %v903 = vld [vmem:[%s1 + $0x1b30] sm:$0xff]
  %v904 = vld [vmem:[%s1 + $0x1b38] sm:$0xff]
  %v905 = vld [vmem:[%s1 + $0x1b40] sm:$0xff]
  %v906 = vld [vmem:[%s1 + $0x1b48] sm:$0xff]
  %v907 = vld [vmem:[%s1 + $0x1b50] sm:$0xff]
  %v908 = vld [vmem:[%s1 + $0x1b58] sm:$0xff]
  %v909 = vld [vmem:[%s1 + $0x1b60] sm:$0xff]
  %v910 = vld [vmem:[%s1 + $0x1b68] sm:$0xff]
  %v911 = vld [vmem:[%s1 + $0x1b70] sm:$0xff]
  %v912 = vld [vmem:[%s1 + $0x1b78] sm:$0xff]
  %v913 = vld [vmem:[%s1 + $0x1b80] sm:$0xff]
  %v914 = vld [vmem:[%s1 + $0x1b88] sm:$0xff]
  %v915 = vld [vmem:[%s1 + $0x1b90] sm:$0xff]
  %v916 = vld [vmem:[%s1 + $0x1b98] sm:$0xff]
  %v917 = vld [vmem:[%s1 + $0x1ba0] sm:$0xff]
  %v918 = vld [vmem:[%s1 + $0x1ba8] sm:$0xff]
  %v919 = vld [vmem:[%s1 + $0x1bb0] sm:$0xff]
  %v920 = vld [vmem:[%s1 + $0x1bb8] sm:$0xff]
  %v921 = vld [vmem:[%s1 + $0x1bc0] sm:$0xff]
  %v922 = vld [vmem:[%s1 + $0x1bc8] sm:$0xff]
  %v923 = vld [vmem:[%s1 + $0x1bd0] sm:$0xff]
  %v924 = vld [vmem:[%s1 + $0x1bd8] sm:$0xff]
  %v925 = vld [vmem:[%s1 + $0x1be0] sm:$0xff]
  %v926 = vld [vmem:[%s1 + $0x1be8] sm:$0xff]
  %v927 = vld [vmem:[%s1 + $0x1bf0] sm:$0xff]
  %v928 = vld [vmem:[%s1 + $0x1bf8] sm:$0xff]
  %v929 = vld [vmem:[%s1 + $0x1c00] sm:$0xff]
  %v930 = vld [vmem:[%s1 + $0x1c08] sm:$0xff]
  %v931 = vld [vmem:[%s1 + $0x1c10] sm:$0xff]
  %v932 = vld [vmem:[%s1 + $0x1c18] sm:$0xff]
  %v933 = vld [vmem:[%s1 + $0x1c20] sm:$0xff]
  %v934 = vld [vmem:[%s1 + $0x1c28] sm:$0xff]
  %v935 = vld [vmem:[%s1 + $0x1c30] sm:$0xff]
  %v936 = vld [vmem:[%s1 + $0x1c38] sm:$0xff]
  %v937 = vld [vmem:[%s1 + $0x1c40] sm:$0xff]
  %v938 = vld [vmem:[%s1 + $0x1c48] sm:$0xff]
  %v939 = vld [vmem:[%s1 + $0x1c50] sm:$0xff]
  %v940 = vld [vmem:[%s1 + $0x1c58] sm:$0xff]
  %v941 = vld [vmem:[%s1 + $0x1c60] sm:$0xff]
  %v942 = vld [vmem:[%s1 + $0x1c68] sm:$0xff]
  %v943 = vld [vmem:[%s1 + $0x1c70] sm:$0xff]
  %v944 = vld [vmem:[%s1 + $0x1c78] sm:$0xff]
  %v945 = vld [vmem:[%s1 + $0x1c80] sm:$0xff]
  %v946 = vld [vmem:[%s1 + $0x1c88] sm:$0xff]
  %v947 = vld [vmem:[%s1 + $0x1c90] sm:$0xff]
  %v948 = vld [vmem:[%s1 + $0x1c98] sm:$0xff]
  %v949 = vld [vmem:[%s1 + $0x1ca0] sm:$0xff]
  %v950 = vld [vmem:[%s1 + $0x1ca8] sm:$0xff]
  %v951 = vld [vmem:[%s1 + $0x1cb0] sm:$0xff]
  %v952 = vld [vmem:[%s1 + $0x1cb8] sm:$0xff]
  %v953 = vld [vmem:[%s1 + $0x1cc0] sm:$0xff]
  %v954 = vld [vmem:[%s1 + $0x1cc8] sm:$0xff]
  %v955 = vld [vmem:[%s1 + $0x1cd0] sm:$0xff]
  %v956 = vld [vmem:[%s1 + $0x1cd8] sm:$0xff]
  %v957 = vld [vmem:[%s1 + $0x1ce0] sm:$0xff]
  %v958 = vld [vmem:[%s1 + $0x1ce8] sm:$0xff]
  %v959 = vld [vmem:[%s1 + $0x1cf0] sm:$0xff]
  %v960 = vld [vmem:[%s1 + $0x1cf8] sm:$0xff]
  %v961 = vld [vmem:[%s1 + $0x1d00] sm:$0xff]
  %v962 = vld [vmem:[%s1 + $0x1d08] sm:$0xff]
  %v963 = vld [vmem:[%s1 + $0x1d10] sm:$0xff]
  %v964 = vld [vmem:[%s1 + $0x1d18] sm:$0xff]
  %v965 = vld [vmem:[%s1 + $0x1d20] sm:$0xff]
  %v966 = vld [vmem:[%s1 + $0x1d28] sm:$0xff]
  %v967 = vld [vmem:[%s1 + $0x1d30] sm:$0xff]
  %v968 = vld [vmem:[%s1 + $0x1d38] sm:$0xff]
  %v969 = vld [vmem:[%s1 + $0x1d40] sm:$0xff]
  %v970 = vld [vmem:[%s1 + $0x1d48] sm:$0xff]
  %v971 = vld [vmem:[%s1 + $0x1d50] sm:$0xff]
  %v972 = vld [vmem:[%s1 + $0x1d58] sm:$0xff]
  %v973 = vld [vmem:[%s1 + $0x1d60] sm:$0xff]
  %v974 = vld [vmem:[%s1 + $0x1d68] sm:$0xff]
  %v975 = vld [vmem:[%s1 + $0x1d70] sm:$0xff]
  %v976 = vld [vmem:[%s1 + $0x1d78] sm:$0xff]
  %v977 = vld [vmem:[%s1 + $0x1d80] sm:$0xff]
  %v978 = vld [vmem:[%s1 + $0x1d88] sm:$0xff]
  %v979 = vld [vmem:[%s1 + $0x1d90] sm:$0xff]
  %v980 = vld [vmem:[%s1 + $0x1d98] sm:$0xff]
  %v981 = vld [vmem:[%s1 + $0x1da0] sm:$0xff]
  %v982 = vld [vmem:[%s1 + $0x1da8] sm:$0xff]
  %v983 = vld [vmem:[%s1 + $0x1db0] sm:$0xff]
  %v984 = vld [vmem:[%s1 + $0x1db8] sm:$0xff]
  %v985 = vld [vmem:[%s1 + $0x1dc0] sm:$0xff]
  %v986 = vld [vmem:[%s1 + $0x1dc8] sm:$0xff]
  %v987 = vld [vmem:[%s1 + $0x1dd0] sm:$0xff]
  %v988 = vld [vmem:[%s1 + $0x1dd8] sm:$0xff]
  %v989 = vld [vmem:[%s1 + $0x1de0] sm:$0xff]
  %v990 = vld [vmem:[%s1 + $0x1de8] sm:$0xff]
  %v991 = vld [vmem:[%s1 + $0x1df0] sm:$0xff]
  %v992 = vld [vmem:[%s1 + $0x1df8] sm:$0xff]
  %v993 = vld [vmem:[%s1 + $0x1e00] sm:$0xff]
  %v994 = vld [vmem:[%s1 + $0x1e08] sm:$0xff]
  %v995 = vld [vmem:[%s1 + $0x1e10] sm:$0xff]
  %v996 = vld [vmem:[%s1 + $0x1e18] sm:$0xff]
  %v997 = vld [vmem:[%s1 + $0x1e20] sm:$0xff]
  %v998 = vld [vmem:[%s1 + $0x1e28] sm:$0xff]
  %v999 = vld [vmem:[%s1 + $0x1e30] sm:$0xff]
  %v1000 = vld [vmem:[%s1 + $0x1e38] sm:$0xff]
  %v1001 = vld [vmem:[%s1 + $0x1e40] sm:$0xff]
  %v1002 = vld [vmem:[%s1 + $0x1e48] sm:$0xff]
  %v1003 = vld [vmem:[%s1 + $0x1e50] sm:$0xff]
  %v1004 = vld [vmem:[%s1 + $0x1e58] sm:$0xff]
  %v1005 = vld [vmem:[%s1 + $0x1e60] sm:$0xff]
  %v1006 = vld [vmem:[%s1 + $0x1e68] sm:$0xff]
  %v1007 = vld [vmem:[%s1 + $0x1e70] sm:$0xff]
  %v1008 = vld [vmem:[%s1 + $0x1e78] sm:$0xff]
  %v1009 = vld [vmem:[%s1 + $0x1e80] sm:$0xff]
  %v1010 = vld [vmem:[%s1 + $0x1e88] sm:$0xff]
  %v1011 = vld [vmem:[%s1 + $0x1e90] sm:$0xff]
  %v1012 = vld [vmem:[%s1 + $0x1e98] sm:$0xff]
  %v1013 = vld [vmem:[%s1 + $0x1ea0] sm:$0xff]
  %v1014 = vld [vmem:[%s1 + $0x1ea8] sm:$0xff]
  %v1015 = vld [vmem:[%s1 + $0x1eb0] sm:$0xff]
  %v1016 = vld [vmem:[%s1 + $0x1eb8] sm:$0xff]
  %v1017 = vld [vmem:[%s1 + $0x1ec0] sm:$0xff]
  %v1018 = vld [vmem:[%s1 + $0x1ec8] sm:$0xff]
  %v1019 = vld [vmem:[%s1 + $0x1ed0] sm:$0xff]
  %v1020 = vld [vmem:[%s1 + $0x1ed8] sm:$0xff]
  %v1021 = vld [vmem:[%s1 + $0x1ee0] sm:$0xff]
  %v1022 = vld [vmem:[%s1 + $0x1ee8] sm:$0xff]
  %v1023 = vld [vmem:[%s1 + $0x1ef0] sm:$0xff]
  %v1024 = vld [vmem:[%s1 + $0x1ef8] sm:$0xff]
  %v1025 = vld [vmem:[%s1 + $0x1f00] sm:$0xff]
  %v1026 = vld [vmem:[%s1 + $0x1f08] sm:$0xff]
  %v1027 = vld [vmem:[%s1 + $0x1f10] sm:$0xff]
  %v1028 = vld [vmem:[%s1 + $0x1f18] sm:$0xff]
  %v1029 = vld [vmem:[%s1 + $0x1f20] sm:$0xff]
  %v1030 = vld [vmem:[%s1 + $0x1f28] sm:$0xff]
  %v1031 = vld [vmem:[%s1 + $0x1f30] sm:$0xff]
  %v1032 = vld [vmem:[%s1 + $0x1f38] sm:$0xff]
  %v1033 = vld [vmem:[%s1 + $0x1f40] sm:$0xff]
  %v1034 = vld [vmem:[%s1 + $0x1f48] sm:$0xff]
  %v1035 = vld [vmem:[%s1 + $0x1f50] sm:$0xff]
  %v1036 = vld [vmem:[%s1 + $0x1f58] sm:$0xff]
  %v1037 = vld [vmem:[%s1 + $0x1f60] sm:$0xff]
  %v1038 = vld [vmem:[%s1 + $0x1f68] sm:$0xff]
  %v1039 = vld [vmem:[%s1 + $0x1f70] sm:$0xff]
  %v1040 = vld [vmem:[%s1 + $0x1f78] sm:$0xff]
  %v1041 = vld [vmem:[%s1 + $0x1f80] sm:$0xff]
  %v1042 = vld [vmem:[%s1 + $0x1f88] sm:$0xff]
  %v1043 = vld [vmem:[%s1 + $0x1f90] sm:$0xff]
  %v1044 = vld [vmem:[%s1 + $0x1f98] sm:$0xff]
  %v1045 = vld [vmem:[%s1 + $0x1fa0] sm:$0xff]
  %v1046 = vld [vmem:[%s1 + $0x1fa8] sm:$0xff]
  %v1047 = vld [vmem:[%s1 + $0x1fb0] sm:$0xff]
  %v1048 = vld [vmem:[%s1 + $0x1fb8] sm:$0xff]
  %v1049 = vld [vmem:[%s1 + $0x1fc0] sm:$0xff]
  %v1050 = vld [vmem:[%s1 + $0x1fc8] sm:$0xff]
  %v1051 = vld [vmem:[%s1 + $0x1fd0] sm:$0xff]
  %v1052 = vld [vmem:[%s1 + $0x1fd8] sm:$0xff]
  %v1053 = vld [vmem:[%s1 + $0x1fe0] sm:$0xff]
  %v1054 = vld [vmem:[%s1 + $0x1fe8] sm:$0xff]
  %v1055 = vld [vmem:[%s1 + $0x1ff0] sm:$0xff]
  %v1056 = vld [vmem:[%s1 + $0x1ff8] sm:$0xff]
  %v1057 = vld [vmem:[%s1 + $0x2000] sm:$0xff]
  %v1058 = vld [vmem:[%s1 + $0x2008] sm:$0xff]
  %v1059 = vld [vmem:[%s1 + $0x2010] sm:$0xff]
  %v1060 = vld [vmem:[%s1 + $0x2018] sm:$0xff]
  %v1061 = vld [vmem:[%s1 + $0x2020] sm:$0xff]
  %v1062 = vld [vmem:[%s1 + $0x2028] sm:$0xff]
  %v1063 = vld [vmem:[%s1 + $0x2030] sm:$0xff]
  %v1064 = vld [vmem:[%s1 + $0x2038] sm:$0xff]
  %v1065 = vld [vmem:[%s1 + $0x2040] sm:$0xff]
  %v1066 = vld [vmem:[%s1 + $0x2048] sm:$0xff]
  %v1067 = vld [vmem:[%s1 + $0x2050] sm:$0xff]
  %v1068 = vld [vmem:[%s1 + $0x2058] sm:$0xff]
  %v1069 = vld [vmem:[%s1 + $0x2060] sm:$0xff]
  %v1070 = vld [vmem:[%s1 + $0x2068] sm:$0xff]
  %v1071 = vld [vmem:[%s1 + $0x2070] sm:$0xff]
  %v1072 = vld [vmem:[%s1 + $0x2078] sm:$0xff]
  %v1073 = vld [vmem:[%s1 + $0x2080] sm:$0xff]
  %v1074 = vld [vmem:[%s1 + $0x2088] sm:$0xff]
  %v1075 = vld [vmem:[%s1 + $0x2090] sm:$0xff]
  %v1076 = vld [vmem:[%s1 + $0x2098] sm:$0xff]
  %v1077 = vld [vmem:[%s1 + $0x20a0] sm:$0xff]
  %v1078 = vld [vmem:[%s1 + $0x20a8] sm:$0xff]
  %v1079 = vld [vmem:[%s1 + $0x20b0] sm:$0xff]
  %v1080 = vld [vmem:[%s1 + $0x20b8] sm:$0xff]
  %v1081 = vld [vmem:[%s1 + $0x20c0] sm:$0xff]
  %v1082 = vld [vmem:[%s1 + $0x20c8] sm:$0xff]
  %v1083 = vld [vmem:[%s1 + $0x20d0] sm:$0xff]
  %v1084 = vld [vmem:[%s1 + $0x20d8] sm:$0xff]
  %v1085 = vld [vmem:[%s1 + $0x20e0] sm:$0xff]
  %v1086 = vld [vmem:[%s1 + $0x20e8] sm:$0xff]
  %v1087 = vld [vmem:[%s1 + $0x20f0] sm:$0xff]
  %v1088 = vld [vmem:[%s1 + $0x20f8] sm:$0xff]
  %v1089 = vld [vmem:[%s1 + $0x2100] sm:$0xff]
  %v1090 = vld [vmem:[%s1 + $0x2108] sm:$0xff]
  %v1091 = vld [vmem:[%s1 + $0x2110] sm:$0xff]
  %v1092 = vld [vmem:[%s1 + $0x2118] sm:$0xff]
  %v1093 = vld [vmem:[%s1 + $0x2120] sm:$0xff]
  %v1094 = vld [vmem:[%s1 + $0x2128] sm:$0xff]
  %v1095 = vld [vmem:[%s1 + $0x2130] sm:$0xff]
  %v1096 = vld [vmem:[%s1 + $0x2138] sm:$0xff]
  %v1097 = vld [vmem:[%s1 + $0x2140] sm:$0xff]
  %v1098 = vld [vmem:[%s1 + $0x2148] sm:$0xff]
  %v1099 = vld [vmem:[%s1 + $0x2150] sm:$0xff]
  %v1100 = vld [vmem:[%s1 + $0x2158] sm:$0xff]
  %v1101 = vld [vmem:[%s1 + $0x2160] sm:$0xff]
  %v1102 = vld [vmem:[%s1 + $0x2168] sm:$0xff]
  %v1103 = vld [vmem:[%s1 + $0x2170] sm:$0xff]
  %v1104 = vld [vmem:[%s1 + $0x2178] sm:$0xff]
  %v1105 = vld [vmem:[%s1 + $0x2180] sm:$0xff]
  %v1106 = vld [vmem:[%s1 + $0x2188] sm:$0xff]
  %v1107 = vld [vmem:[%s1 + $0x2190] sm:$0xff]
  %v1108 = vld [vmem:[%s1 + $0x2198] sm:$0xff]
  %v1109 = vld [vmem:[%s1 + $0x21a0] sm:$0xff]
  %v1110 = vld [vmem:[%s1 + $0x21a8] sm:$0xff]
  %v1111 = vld [vmem:[%s1 + $0x21b0] sm:$0xff]
  %v1112 = vld [vmem:[%s1 + $0x21b8] sm:$0xff]
  %v1113 = vld [vmem:[%s1 + $0x21c0] sm:$0xff]
  %v1114 = vld [vmem:[%s1 + $0x21c8] sm:$0xff]
  %v1115 = vld [vmem:[%s1 + $0x21d0] sm:$0xff]
  %v1116 = vld [vmem:[%s1 + $0x21d8] sm:$0xff]
  %v1117 = vld [vmem:[%s1 + $0x21e0] sm:$0xff]
  %v1118 = vld [vmem:[%s1 + $0x21e8] sm:$0xff]
  %v1119 = vld [vmem:[%s1 + $0x21f0] sm:$0xff]
  %v1120 = vld [vmem:[%s1 + $0x21f8] sm:$0xff]
  %v1121 = vld [vmem:[%s1 + $0x2200] sm:$0xff]
  %v1122 = vld [vmem:[%s1 + $0x2208] sm:$0xff]
  %v1123 = vld [vmem:[%s1 + $0x2210] sm:$0xff]
  %v1124 = vld [vmem:[%s1 + $0x2218] sm:$0xff]
  %v1125 = vld [vmem:[%s1 + $0x2220] sm:$0xff]
  %v1126 = vld [vmem:[%s1 + $0x2228] sm:$0xff]
  %v1127 = vld [vmem:[%s1 + $0x2230] sm:$0xff]
  %v1128 = vld [vmem:[%s1 + $0x2238] sm:$0xff]
  %v1129 = vld [vmem:[%s1 + $0x2240] sm:$0xff]
  %v1130 = vld [vmem:[%s1 + $0x2248] sm:$0xff]
  %v1131 = vld [vmem:[%s1 + $0x2250] sm:$0xff]
  %v1132 = vld [vmem:[%s1 + $0x2258] sm:$0xff]
  %v1133 = vld [vmem:[%s1 + $0x2260] sm:$0xff]
  %v1134 = vld [vmem:[%s1 + $0x2268] sm:$0xff]
  %v1135 = vld [vmem:[%s1 + $0x2270] sm:$0xff]
  %v1136 = vld [vmem:[%s1 + $0x2278] sm:$0xff]
  %v1137 = vld [vmem:[%s1 + $0x2280] sm:$0xff]
  %v1138 = vld [vmem:[%s1 + $0x2288] sm:$0xff]
  %v1139 = vld [vmem:[%s1 + $0x2290] sm:$0xff]
  %v1140 = vld [vmem:[%s1 + $0x2298] sm:$0xff]
  %v1141 = vld [vmem:[%s1 + $0x22a0] sm:$0xff]
  %v1142 = vld [vmem:[%s1 + $0x22a8] sm:$0xff]
  %v1143 = vld [vmem:[%s1 + $0x22b0] sm:$0xff]
  %v1144 = vld [vmem:[%s1 + $0x22b8] sm:$0xff]
  %v1145 = vld [vmem:[%s1 + $0x22c0] sm:$0xff]
  %v1146 = vld [vmem:[%s1 + $0x22c8] sm:$0xff]
  %v1147 = vld [vmem:[%s1 + $0x22d0] sm:$0xff]
  %v1148 = vld [vmem:[%s1 + $0x22d8] sm:$0xff]
  %v1149 = vld [vmem:[%s1 + $0x22e0] sm:$0xff]
  %v1150 = vld [vmem:[%s1 + $0x22e8] sm:$0xff]
  %v1151 = vld [vmem:[%s1 + $0x22f0] sm:$0xff]
  %v1152 = vld [vmem:[%s1 + $0x22f8] sm:$0xff]
  %v1153 = vld [vmem:[%s1 + $0x2300] sm:$0xff]
  %v1154 = vld [vmem:[%s1 + $0x2308] sm:$0xff]
  %v1155 = vld [vmem:[%s1 + $0x2310] sm:$0xff]
  %v1156 = vld [vmem:[%s1 + $0x2318] sm:$0xff]
  %v1157 = vld [vmem:[%s1 + $0x2320] sm:$0xff]
  %v1158 = vld [vmem:[%s1 + $0x2328] sm:$0xff]
  %v1159 = vld [vmem:[%s1 + $0x2330] sm:$0xff]
  %v1160 = vld [vmem:[%s1 + $0x2338] sm:$0xff]
  %v1161 = vld [vmem:[%s1 + $0x2340] sm:$0xff]
  %v1162 = vld [vmem:[%s1 + $0x2348] sm:$0xff]
  %v1163 = vld [vmem:[%s1 + $0x2350] sm:$0xff]
  %v1164 = vld [vmem:[%s1 + $0x2358] sm:$0xff]
  %v1165 = vld [vmem:[%s1 + $0x2360] sm:$0xff]
  %v1166 = vld [vmem:[%s1 + $0x2368] sm:$0xff]
  %v1167 = vld [vmem:[%s1 + $0x2370] sm:$0xff]
  %v1168 = vld [vmem:[%s1 + $0x2378] sm:$0xff]
  %v1169 = vld [vmem:[%s1 + $0x2380] sm:$0xff]
  %v1170 = vld [vmem:[%s1 + $0x2388] sm:$0xff]
  %v1171 = vld [vmem:[%s1 + $0x2390] sm:$0xff]
  %v1172 = vld [vmem:[%s1 + $0x2398] sm:$0xff]
  %v1173 = vld [vmem:[%s1 + $0x23a0] sm:$0xff]
  %v1174 = vld [vmem:[%s1 + $0x23a8] sm:$0xff]
  %v1175 = vld [vmem:[%s1 + $0x23b0] sm:$0xff]
  %v1176 = vld [vmem:[%s1 + $0x23b8] sm:$0xff]
  %v1177 = vld [vmem:[%s1 + $0x23c0] sm:$0xff]
  %v1178 = vld [vmem:[%s1 + $0x23c8] sm:$0xff]
  %v1179 = vld [vmem:[%s1 + $0x23d0] sm:$0xff]
  %v1180 = vld [vmem:[%s1 + $0x23d8] sm:$0xff]
  %v1181 = vld [vmem:[%s1 + $0x23e0] sm:$0xff]
  %v1182 = vld [vmem:[%s1 + $0x23e8] sm:$0xff]
  %v1183 = vld [vmem:[%s1 + $0x23f0] sm:$0xff]
  %v1184 = vld [vmem:[%s1 + $0x23f8] sm:$0xff]
  %v1185 = vld [vmem:[%s1 + $0x2400] sm:$0xff]
  %v1186 = vld [vmem:[%s1 + $0x2408] sm:$0xff]
  %v1187 = vld [vmem:[%s1 + $0x2410] sm:$0xff]
  %v1188 = vld [vmem:[%s1 + $0x2418] sm:$0xff]
  %v1189 = vld [vmem:[%s1 + $0x2420] sm:$0xff]
  %v1190 = vld [vmem:[%s1 + $0x2428] sm:$0xff]
  %v1191 = vld [vmem:[%s1 + $0x2430] sm:$0xff]
  %v1192 = vld [vmem:[%s1 + $0x2438] sm:$0xff]
  %v1193 = vld [vmem:[%s1 + $0x2440] sm:$0xff]
  %v1194 = vld [vmem:[%s1 + $0x2448] sm:$0xff]
  %v1195 = vld [vmem:[%s1 + $0x2450] sm:$0xff]
  %v1196 = vld [vmem:[%s1 + $0x2458] sm:$0xff]
  %v1197 = vld [vmem:[%s1 + $0x2460] sm:$0xff]
  %v1198 = vld [vmem:[%s1 + $0x2468] sm:$0xff]
  %v1199 = vld [vmem:[%s1 + $0x2470] sm:$0xff]
  %v1200 = vld [vmem:[%s1 + $0x2478] sm:$0xff]
  %v1201 = vld [vmem:[%s1 + $0x2480] sm:$0xff]
  %v1202 = vld [vmem:[%s1 + $0x2488] sm:$0xff]
  %v1203 = vld [vmem:[%s1 + $0x2490] sm:$0xff]
  %v1204 = vld [vmem:[%s1 + $0x2498] sm:$0xff]
  %v1205 = vld [vmem:[%s1 + $0x24a0] sm:$0xff]
  %v1206 = vld [vmem:[%s1 + $0x24a8] sm:$0xff]
  %v1207 = vld [vmem:[%s1 + $0x24b0] sm:$0xff]
  %v1208 = vld [vmem:[%s1 + $0x24b8] sm:$0xff]
  %v1209 = vld [vmem:[%s1 + $0x24c0] sm:$0xff]
  %v1210 = vld [vmem:[%s1 + $0x24c8] sm:$0xff]
  %v1211 = vld [vmem:[%s1 + $0x24d0] sm:$0xff]
  %v1212 = vld [vmem:[%s1 + $0x24d8] sm:$0xff]
  %v1213 = vld [vmem:[%s1 + $0x24e0] sm:$0xff]
  %v1214 = vld [vmem:[%s1 + $0x24e8] sm:$0xff]
  %v1215 = vld [vmem:[%s1 + $0x24f0] sm:$0xff]
  %v1216 = vld [vmem:[%s1 + $0x24f8] sm:$0xff]
  %v1217 = vld [vmem:[%s1 + $0x2500] sm:$0xff]
  %v1218 = vld [vmem:[%s1 + $0x2508] sm:$0xff]
  %v1219 = vld [vmem:[%s1 + $0x2510] sm:$0xff]
  %v1220 = vld [vmem:[%s1 + $0x2518] sm:$0xff]
  %v1221 = vld [vmem:[%s1 + $0x2520] sm:$0xff]
  %v1222 = vld [vmem:[%s1 + $0x2528] sm:$0xff]
  %v1223 = vld [vmem:[%s1 + $0x2530] sm:$0xff]
  %v1224 = vld [vmem:[%s1 + $0x2538] sm:$0xff]
  %v1225 = vld [vmem:[%s1 + $0x2540] sm:$0xff]
  %v1226 = vld [vmem:[%s1 + $0x2548] sm:$0xff]
  %v1227 = vld [vmem:[%s1 + $0x2550] sm:$0xff]
  %v1228 = vld [vmem:[%s1 + $0x2558] sm:$0xff]
  %v1229 = vld [vmem:[%s1 + $0x2560] sm:$0xff]
  %v1230 = vld [vmem:[%s1 + $0x2568] sm:$0xff]
  %v1231 = vld [vmem:[%s1 + $0x2570] sm:$0xff]
  %v1232 = vld [vmem:[%s1 + $0x2578] sm:$0xff]
  %v1233 = vld [vmem:[%s1 + $0x2580] sm:$0xff]
  %v1234 = vld [vmem:[%s1 + $0x2588] sm:$0xff]
  %v1235 = vld [vmem:[%s1 + $0x2590] sm:$0xff]
  %v1236 = vld [vmem:[%s1 + $0x2598] sm:$0xff]
  %v1237 = vld [vmem:[%s1 + $0x25a0] sm:$0xff]
  %v1238 = vld [vmem:[%s1 + $0x25a8] sm:$0xff]
  %v1239 = vld [vmem:[%s1 + $0x25b0] sm:$0xff]
  %v1240 = vld [vmem:[%s1 + $0x25b8] sm:$0xff]
  %v1241 = vld [vmem:[%s1 + $0x25c0] sm:$0xff]
  %v1242 = vld [vmem:[%s1 + $0x25c8] sm:$0xff]
  %v1243 = vld [vmem:[%s1 + $0x25d0] sm:$0xff]
  %v1244 = vld [vmem:[%s1 + $0x25d8] sm:$0xff]
  %v1245 = vld [vmem:[%s1 + $0x25e0] sm:$0xff]
  %v1246 = vld [vmem:[%s1 + $0x25e8] sm:$0xff]
  %v1247 = vld [vmem:[%s1 + $0x25f0] sm:$0xff]
  %v1248 = vld [vmem:[%s1 + $0x25f8] sm:$0xff]
  %v1249 = vld [vmem:[%s1 + $0x2600] sm:$0xff]
  %v1250 = vld [vmem:[%s1 + $0x2608] sm:$0xff]
  %v1251 = vld [vmem:[%s1 + $0x2610] sm:$0xff]
  %v1252 = vld [vmem:[%s1 + $0x2618] sm:$0xff]
  %v1253 = vld [vmem:[%s1 + $0x2620] sm:$0xff]
  %v1254 = vld [vmem:[%s1 + $0x2628] sm:$0xff]
  %v1255 = vld [vmem:[%s1 + $0x2630] sm:$0xff]
  %v1256 = vld [vmem:[%s1 + $0x2638] sm:$0xff]
  %v1257 = vld [vmem:[%s1 + $0x2640] sm:$0xff]
  %v1258 = vld [vmem:[%s1 + $0x2648] sm:$0xff]
  %v1259 = vld [vmem:[%s1 + $0x2650] sm:$0xff]
  %v1260 = vld [vmem:[%s1 + $0x2658] sm:$0xff]
  %v1261 = vld [vmem:[%s1 + $0x2660] sm:$0xff]
  %v1262 = vld [vmem:[%s1 + $0x2668] sm:$0xff]
  %v1263 = vld [vmem:[%s1 + $0x2670] sm:$0xff]
  %v1264 = vld [vmem:[%s1 + $0x2678] sm:$0xff]
  %v1265 = vld [vmem:[%s1 + $0x2680] sm:$0xff]
  %v1266 = vld [vmem:[%s1 + $0x2688] sm:$0xff]
  %v1267 = vld [vmem:[%s1 + $0x2690] sm:$0xff]
  %v1268 = vld [vmem:[%s1 + $0x2698] sm:$0xff]
  %v1269 = vld [vmem:[%s1 + $0x26a0] sm:$0xff]
  %v1270 = vld [vmem:[%s1 + $0x26a8] sm:$0xff]
  %v1271 = vld [vmem:[%s1 + $0x26b0] sm:$0xff]
  %v1272 = vld [vmem:[%s1 + $0x26b8] sm:$0xff]
  %v1273 = vld [vmem:[%s1 + $0x26c0] sm:$0xff]
  %v1274 = vld [vmem:[%s1 + $0x26c8] sm:$0xff]
  %v1275 = vld [vmem:[%s1 + $0x26d0] sm:$0xff]
  %v1276 = vld [vmem:[%s1 + $0x26d8] sm:$0xff]
  %v1277 = vld [vmem:[%s1 + $0x26e0] sm:$0xff]
  %v1278 = vld [vmem:[%s1 + $0x26e8] sm:$0xff]
  %v1279 = vld [vmem:[%s1 + $0x26f0] sm:$0xff]
  %v1280 = vld [vmem:[%s1 + $0x26f8] sm:$0xff]
  %v1281 = vld [vmem:[%s1 + $0x2700] sm:$0xff]
  %v1282 = vld [vmem:[%s1 + $0x2708] sm:$0xff]
  %v1283 = vld [vmem:[%s1 + $0x2710] sm:$0xff]
  %v1284 = vld [vmem:[%s1 + $0x2718] sm:$0xff]
  %v1285 = vld [vmem:[%s1 + $0x2720] sm:$0xff]
  %v1286 = vld [vmem:[%s1 + $0x2728] sm:$0xff]
  %v1287 = vld [vmem:[%s1 + $0x2730] sm:$0xff]
  %v1288 = vld [vmem:[%s1 + $0x2738] sm:$0xff]
  %v1289 = vld [vmem:[%s1 + $0x2740] sm:$0xff]
  %v1290 = vld [vmem:[%s1 + $0x2748] sm:$0xff]
  %v1291 = vld [vmem:[%s1 + $0x2750] sm:$0xff]
  %v1292 = vld [vmem:[%s1 + $0x2758] sm:$0xff]
  %v1293 = vld [vmem:[%s1 + $0x2760] sm:$0xff]
  %v1294 = vld [vmem:[%s1 + $0x2768] sm:$0xff]
  %v1295 = vld [vmem:[%s1 + $0x2770] sm:$0xff]
  %v1296 = vld [vmem:[%s1 + $0x2778] sm:$0xff]
  %v1297 = vld [vmem:[%s1 + $0x2780] sm:$0xff]
  %v1298 = vld [vmem:[%s1 + $0x2788] sm:$0xff]
  %v1299 = vld [vmem:[%s1 + $0x2790] sm:$0xff]
  %v1300 = vld [vmem:[%s1 + $0x2798] sm:$0xff]
  %v1301 = vld [vmem:[%s1 + $0x27a0] sm:$0xff]
  %v1302 = vld [vmem:[%s1 + $0x27a8] sm:$0xff]
  %v1303 = vld [vmem:[%s1 + $0x27b0] sm:$0xff]
  %v1304 = vld [vmem:[%s1 + $0x27b8] sm:$0xff]
  %v1305 = vld [vmem:[%s1 + $0x27c0] sm:$0xff]
  %v1306 = vld [vmem:[%s1 + $0x27c8] sm:$0xff]
  %v1307 = vld [vmem:[%s1 + $0x27d0] sm:$0xff]
  %v1308 = vld [vmem:[%s1 + $0x27d8] sm:$0xff]
  %v1309 = vld [vmem:[%s1 + $0x27e0] sm:$0xff]
  %v1310 = vld [vmem:[%s1 + $0x27e8] sm:$0xff]
  %v1311 = vld [vmem:[%s1 + $0x27f0] sm:$0xff]
  %v1312 = vld [vmem:[%s1 + $0x27f8] sm:$0xff]
  %v1313 = vld [vmem:[%s1 + $0x2800] sm:$0xff]
  %v1314 = vld [vmem:[%s1 + $0x2808] sm:$0xff]
  %v1315 = vld [vmem:[%s1 + $0x2810] sm:$0xff]
  %v1316 = vld [vmem:[%s1 + $0x2818] sm:$0xff]
  %v1317 = vld [vmem:[%s1 + $0x2820] sm:$0xff]
  %v1318 = vld [vmem:[%s1 + $0x2828] sm:$0xff]
  %v1319 = vld [vmem:[%s1 + $0x2830] sm:$0xff]
  %v1320 = vld [vmem:[%s1 + $0x2838] sm:$0xff]
  %v1321 = vld [vmem:[%s1 + $0x2840] sm:$0xff]
  %v1322 = vld [vmem:[%s1 + $0x2848] sm:$0xff]
  %v1323 = vld [vmem:[%s1 + $0x2850] sm:$0xff]
  %v1324 = vld [vmem:[%s1 + $0x2858] sm:$0xff]
  %v1325 = vld [vmem:[%s1 + $0x2860] sm:$0xff]
  %v1326 = vld [vmem:[%s1 + $0x2868] sm:$0xff]
  %v1327 = vld [vmem:[%s1 + $0x2870] sm:$0xff]
  %v1328 = vld [vmem:[%s1 + $0x2878] sm:$0xff]
  %v1329 = vld [vmem:[%s1 + $0x2880] sm:$0xff]
  %v1330 = vld [vmem:[%s1 + $0x2888] sm:$0xff]
  %v1331 = vld [vmem:[%s1 + $0x2890] sm:$0xff]
  %v1332 = vld [vmem:[%s1 + $0x2898] sm:$0xff]
  %v1333 = vld [vmem:[%s1 + $0x28a0] sm:$0xff]
  %v1334 = vld [vmem:[%s1 + $0x28a8] sm:$0xff]
  %v1335 = vld [vmem:[%s1 + $0x28b0] sm:$0xff]
  %v1336 = vld [vmem:[%s1 + $0x28b8] sm:$0xff]
  %v1337 = vld [vmem:[%s1 + $0x28c0] sm:$0xff]
  %v1338 = vld [vmem:[%s1 + $0x28c8] sm:$0xff]
  %v1339 = vld [vmem:[%s1 + $0x28d0] sm:$0xff]
  %v1340 = vld [vmem:[%s1 + $0x28d8] sm:$0xff]
  %v1341 = vld [vmem:[%s1 + $0x28e0] sm:$0xff]
  %v1342 = vld [vmem:[%s1 + $0x28e8] sm:$0xff]
  %v1343 = vld [vmem:[%s1 + $0x28f0] sm:$0xff]
  %v1344 = vld [vmem:[%s1 + $0x28f8] sm:$0xff]
  %v1345 = vld [vmem:[%s1 + $0x2900] sm:$0xff]
  %v1346 = vld [vmem:[%s1 + $0x2908] sm:$0xff]
  %v1347 = vld [vmem:[%s1 + $0x2910] sm:$0xff]
  %v1348 = vld [vmem:[%s1 + $0x2918] sm:$0xff]
  %v1349 = vld [vmem:[%s1 + $0x2920] sm:$0xff]
  %v1350 = vld [vmem:[%s1 + $0x2928] sm:$0xff]
  %v1351 = vld [vmem:[%s1 + $0x2930] sm:$0xff]
  %v1352 = vld [vmem:[%s1 + $0x2938] sm:$0xff]
  %v1353 = vld [vmem:[%s1 + $0x2940] sm:$0xff]
  %v1354 = vld [vmem:[%s1 + $0x2948] sm:$0xff]
  %v1355 = vld [vmem:[%s1 + $0x2950] sm:$0xff]
  %v1356 = vld [vmem:[%s1 + $0x2958] sm:$0xff]
  %v1357 = vld [vmem:[%s1 + $0x2960] sm:$0xff]
  %v1358 = vld [vmem:[%s1 + $0x2968] sm:$0xff]
  %v1359 = vld [vmem:[%s1 + $0x2970] sm:$0xff]
  %v1360 = vld [vmem:[%s1 + $0x2978] sm:$0xff]
  %v1361 = vld [vmem:[%s1 + $0x2980] sm:$0xff]
  %v1362 = vld [vmem:[%s1 + $0x2988] sm:$0xff]
  %v1363 = vld [vmem:[%s1 + $0x2990] sm:$0xff]
  %v1364 = vld [vmem:[%s1 + $0x2998] sm:$0xff]
  %v1365 = vld [vmem:[%s1 + $0x29a0] sm:$0xff]
  %v1366 = vld [vmem:[%s1 + $0x29a8] sm:$0xff]
  %v1367 = vld [vmem:[%s1 + $0x29b0] sm:$0xff]
  %v1368 = vld [vmem:[%s1 + $0x29b8] sm:$0xff]
  %v1369 = vld [vmem:[%s1 + $0x29c0] sm:$0xff]
  %v1370 = vld [vmem:[%s1 + $0x29c8] sm:$0xff]
  %v1371 = vld [vmem:[%s1 + $0x29d0] sm:$0xff]
  %v1372 = vld [vmem:[%s1 + $0x29d8] sm:$0xff]
  %v1373 = vld [vmem:[%s1 + $0x29e0] sm:$0xff]
  %v1374 = vld [vmem:[%s1 + $0x29e8] sm:$0xff]
  %v1375 = vld [vmem:[%s1 + $0x29f0] sm:$0xff]
  %v1376 = vld [vmem:[%s1 + $0x29f8] sm:$0xff]
  %v1377 = vld [vmem:[%s1 + $0x2a00] sm:$0xff]
  %v1378 = vld [vmem:[%s1 + $0x2a08] sm:$0xff]
  %v1379 = vld [vmem:[%s1 + $0x2a10] sm:$0xff]
  %v1380 = vld [vmem:[%s1 + $0x2a18] sm:$0xff]
  %v1381 = vld [vmem:[%s1 + $0x2a20] sm:$0xff]
  %v1382 = vld [vmem:[%s1 + $0x2a28] sm:$0xff]
  %v1383 = vld [vmem:[%s1 + $0x2a30] sm:$0xff]
  %v1384 = vld [vmem:[%s1 + $0x2a38] sm:$0xff]
  %v1385 = vld [vmem:[%s1 + $0x2a40] sm:$0xff]
  %v1386 = vld [vmem:[%s1 + $0x2a48] sm:$0xff]
  %v1387 = vld [vmem:[%s1 + $0x2a50] sm:$0xff]
  %v1388 = vld [vmem:[%s1 + $0x2a58] sm:$0xff]
  %v1389 = vld [vmem:[%s1 + $0x2a60] sm:$0xff]
  %v1390 = vld [vmem:[%s1 + $0x2a68] sm:$0xff]
  %v1391 = vld [vmem:[%s1 + $0x2a70] sm:$0xff]
  %v1392 = vld [vmem:[%s1 + $0x2a78] sm:$0xff]
  %v1393 = vld [vmem:[%s1 + $0x2a80] sm:$0xff]
  %v1394 = vld [vmem:[%s1 + $0x2a88] sm:$0xff]
  %v1395 = vld [vmem:[%s1 + $0x2a90] sm:$0xff]
  %v1396 = vld [vmem:[%s1 + $0x2a98] sm:$0xff]
  %v1397 = vld [vmem:[%s1 + $0x2aa0] sm:$0xff]
  %v1398 = vld [vmem:[%s1 + $0x2aa8] sm:$0xff]
  %v1399 = vld [vmem:[%s1 + $0x2ab0] sm:$0xff]
  %v1400 = vld [vmem:[%s1 + $0x2ab8] sm:$0xff]
  %v1401 = vld [vmem:[%s1 + $0x2ac0] sm:$0xff]
  %v1402 = vld [vmem:[%s1 + $0x2ac8] sm:$0xff]
  %v1403 = vld [vmem:[%s1 + $0x2ad0] sm:$0xff]
  %v1404 = vld [vmem:[%s1 + $0x2ad8] sm:$0xff]
  %v1405 = vld [vmem:[%s1 + $0x2ae0] sm:$0xff]
  %v1406 = vld [vmem:[%s1 + $0x2ae8] sm:$0xff]
  %v1407 = vld [vmem:[%s1 + $0x2af0] sm:$0xff]
  %v1408 = vld [vmem:[%s1 + $0x2af8] sm:$0xff]
  %v1409 = vld [vmem:[%s1 + $0x2b00] sm:$0xff]
  %v1410 = vld [vmem:[%s1 + $0x2b08] sm:$0xff]
  %v1411 = vld [vmem:[%s1 + $0x2b10] sm:$0xff]
  %v1412 = vld [vmem:[%s1 + $0x2b18] sm:$0xff]
  %v1413 = vld [vmem:[%s1 + $0x2b20] sm:$0xff]
  %v1414 = vld [vmem:[%s1 + $0x2b28] sm:$0xff]
  %v1415 = vld [vmem:[%s1 + $0x2b30] sm:$0xff]
  %v1416 = vld [vmem:[%s1 + $0x2b38] sm:$0xff]
  %v1417 = vld [vmem:[%s1 + $0x2b40] sm:$0xff]
  %v1418 = vld [vmem:[%s1 + $0x2b48] sm:$0xff]
  %v1419 = vld [vmem:[%s1 + $0x2b50] sm:$0xff]
  %v1420 = vld [vmem:[%s1 + $0x2b58] sm:$0xff]
  %v1421 = vld [vmem:[%s1 + $0x2b60] sm:$0xff]
  %v1422 = vld [vmem:[%s1 + $0x2b68] sm:$0xff]
  %v1423 = vld [vmem:[%s1 + $0x2b70] sm:$0xff]
  %v1424 = vld [vmem:[%s1 + $0x2b78] sm:$0xff]
  %v1425 = vld [vmem:[%s1 + $0x2b80] sm:$0xff]
  %v1426 = vld [vmem:[%s1 + $0x2b88] sm:$0xff]
  %v1427 = vld [vmem:[%s1 + $0x2b90] sm:$0xff]
  %v1428 = vld [vmem:[%s1 + $0x2b98] sm:$0xff]
  %v1429 = vld [vmem:[%s1 + $0x2ba0] sm:$0xff]
  %v1430 = vld [vmem:[%s1 + $0x2ba8] sm:$0xff]
  %v1431 = vld [vmem:[%s1 + $0x2bb0] sm:$0xff]
  %v1432 = vld [vmem:[%s1 + $0x2bb8] sm:$0xff]
  %v1433 = vld [vmem:[%s1 + $0x2bc0] sm:$0xff]
  %v1434 = vld [vmem:[%s1 + $0x2bc8] sm:$0xff]
  %v1435 = vld [vmem:[%s1 + $0x2bd0] sm:$0xff]
  %v1436 = vld [vmem:[%s1 + $0x2bd8] sm:$0xff]
  %v1437 = vld [vmem:[%s1 + $0x2be0] sm:$0xff]
  %v1438 = vld [vmem:[%s1 + $0x2be8] sm:$0xff]
  %v1439 = vld [vmem:[%s1 + $0x2bf0] sm:$0xff]
  %v1440 = vld [vmem:[%s1 + $0x2bf8] sm:$0xff]
  %v1441 = vld [vmem:[%s1 + $0x2c00] sm:$0xff]
  %v1442 = vld [vmem:[%s1 + $0x2c08] sm:$0xff]
  %v1443 = vld [vmem:[%s1 + $0x2c10] sm:$0xff]
  %v1444 = vld [vmem:[%s1 + $0x2c18] sm:$0xff]
  %v1445 = vld [vmem:[%s1 + $0x2c20] sm:$0xff]
  %v1446 = vld [vmem:[%s1 + $0x2c28] sm:$0xff]
  %v1447 = vld [vmem:[%s1 + $0x2c30] sm:$0xff]
  %v1448 = vld [vmem:[%s1 + $0x2c38] sm:$0xff]
  %v1449 = vld [vmem:[%s1 + $0x2c40] sm:$0xff]
  %v1450 = vld [vmem:[%s1 + $0x2c48] sm:$0xff]
  %v1451 = vld [vmem:[%s1 + $0x2c50] sm:$0xff]
  %v1452 = vld [vmem:[%s1 + $0x2c58] sm:$0xff]
  %v1453 = vld [vmem:[%s1 + $0x2c60] sm:$0xff]
  %v1454 = vld [vmem:[%s1 + $0x2c68] sm:$0xff]
  %v1455 = vld [vmem:[%s1 + $0x2c70] sm:$0xff]
  %v1456 = vld [vmem:[%s1 + $0x2c78] sm:$0xff]
  %v1457 = vld [vmem:[%s1 + $0x2c80] sm:$0xff]
  %v1458 = vld [vmem:[%s1 + $0x2c88] sm:$0xff]
  %v1459 = vld [vmem:[%s1 + $0x2c90] sm:$0xff]
  %v1460 = vld [vmem:[%s1 + $0x2c98] sm:$0xff]
  %v1461 = vld [vmem:[%s1 + $0x2ca0] sm:$0xff]
  %v1462 = vld [vmem:[%s1 + $0x2ca8] sm:$0xff]
  %v1463 = vld [vmem:[%s1 + $0x2cb0] sm:$0xff]
  %v1464 = vld [vmem:[%s1 + $0x2cb8] sm:$0xff]
  %v1465 = vld [vmem:[%s1 + $0x2cc0] sm:$0xff]
  %v1466 = vld [vmem:[%s1 + $0x2cc8] sm:$0xff]
  %v1467 = vld [vmem:[%s1 + $0x2cd0] sm:$0xff]
  %v1468 = vld [vmem:[%s1 + $0x2cd8] sm:$0xff]
  %v1469 = vld [vmem:[%s1 + $0x2ce0] sm:$0xff]
  %v1470 = vld [vmem:[%s1 + $0x2ce8] sm:$0xff]
  %v1471 = vld [vmem:[%s1 + $0x2cf0] sm:$0xff]
  %v1472 = vld [vmem:[%s1 + $0x2cf8] sm:$0xff]
  %v1473 = vld [vmem:[%s1 + $0x2d00] sm:$0xff]
  %v1474 = vld [vmem:[%s1 + $0x2d08] sm:$0xff]
  %v1475 = vld [vmem:[%s1 + $0x2d10] sm:$0xff]
  %v1476 = vld [vmem:[%s1 + $0x2d18] sm:$0xff]
  %v1477 = vld [vmem:[%s1 + $0x2d20] sm:$0xff]
  %v1478 = vld [vmem:[%s1 + $0x2d28] sm:$0xff]
  %v1479 = vld [vmem:[%s1 + $0x2d30] sm:$0xff]
  %v1480 = vld [vmem:[%s1 + $0x2d38] sm:$0xff]
  %v1481 = vld [vmem:[%s1 + $0x2d40] sm:$0xff]
  %v1482 = vld [vmem:[%s1 + $0x2d48] sm:$0xff]
  %v1483 = vld [vmem:[%s1 + $0x2d50] sm:$0xff]
  %v1484 = vld [vmem:[%s1 + $0x2d58] sm:$0xff]
  %v1485 = vld [vmem:[%s1 + $0x2d60] sm:$0xff]
  %v1486 = vld [vmem:[%s1 + $0x2d68] sm:$0xff]
  %v1487 = vld [vmem:[%s1 + $0x2d70] sm:$0xff]
  %v1488 = vld [vmem:[%s1 + $0x2d78] sm:$0xff]
  %v1489 = vld [vmem:[%s1 + $0x2d80] sm:$0xff]
  %v1490 = vld [vmem:[%s1 + $0x2d88] sm:$0xff]
  %v1491 = vld [vmem:[%s1 + $0x2d90] sm:$0xff]
  %v1492 = vld [vmem:[%s1 + $0x2d98] sm:$0xff]
  %v1493 = vld [vmem:[%s1 + $0x2da0] sm:$0xff]
  %v1494 = vld [vmem:[%s1 + $0x2da8] sm:$0xff]
  %v1495 = vld [vmem:[%s1 + $0x2db0] sm:$0xff]
  %v1496 = vld [vmem:[%s1 + $0x2db8] sm:$0xff]
  %v1497 = vld [vmem:[%s1 + $0x2dc0] sm:$0xff]
  %v1498 = vld [vmem:[%s1 + $0x2dc8] sm:$0xff]
  %v1499 = vld [vmem:[%s1 + $0x2dd0] sm:$0xff]
  %v1500 = vld [vmem:[%s1 + $0x2dd8] sm:$0xff]
  %v1501 = vld [vmem:[%s1 + $0x2de0] sm:$0xff]
  %v1502 = vld [vmem:[%s1 + $0x2de8] sm:$0xff]
  %v1503 = vld [vmem:[%s1 + $0x2df0] sm:$0xff]
  %v1504 = vld [vmem:[%s1 + $0x2df8] sm:$0xff]
  %v1505 = vld [vmem:[%s1 + $0x2e00] sm:$0xff]
  %v1506 = vld [vmem:[%s1 + $0x2e08] sm:$0xff]
  %v1507 = vld [vmem:[%s1 + $0x2e10] sm:$0xff]
  %v1508 = vld [vmem:[%s1 + $0x2e18] sm:$0xff]
  %v1509 = vld [vmem:[%s1 + $0x2e20] sm:$0xff]
  %v1510 = vld [vmem:[%s1 + $0x2e28] sm:$0xff]
  %v1511 = vld [vmem:[%s1 + $0x2e30] sm:$0xff]
  %v1512 = vld [vmem:[%s1 + $0x2e38] sm:$0xff]
  %v1513 = vld [vmem:[%s1 + $0x2e40] sm:$0xff]
  %v1514 = vld [vmem:[%s1 + $0x2e48] sm:$0xff]
  %v1515 = vld [vmem:[%s1 + $0x2e50] sm:$0xff]
  %v1516 = vld [vmem:[%s1 + $0x2e58] sm:$0xff]
  %v1517 = vld [vmem:[%s1 + $0x2e60] sm:$0xff]
  %v1518 = vld [vmem:[%s1 + $0x2e68] sm:$0xff]
  %v1519 = vld [vmem:[%s1 + $0x2e70] sm:$0xff]
  %v1520 = vld [vmem:[%s1 + $0x2e78] sm:$0xff]
  %v1521 = vld [vmem:[%s1 + $0x2e80] sm:$0xff]
  %v1522 = vld [vmem:[%s1 + $0x2e88] sm:$0xff]
  %v1523 = vld [vmem:[%s1 + $0x2e90] sm:$0xff]
  %v1524 = vld [vmem:[%s1 + $0x2e98] sm:$0xff]
  %v1525 = vld [vmem:[%s1 + $0x2ea0] sm:$0xff]
  %v1526 = vld [vmem:[%s1 + $0x2ea8] sm:$0xff]
  %v1527 = vld [vmem:[%s1 + $0x2eb0] sm:$0xff]
  %v1528 = vld [vmem:[%s1 + $0x2eb8] sm:$0xff]
  %v1529 = vld [vmem:[%s1 + $0x2ec0] sm:$0xff]
  %v1530 = vld [vmem:[%s1 + $0x2ec8] sm:$0xff]
  %v1531 = vld [vmem:[%s1 + $0x2ed0] sm:$0xff]
  %v1532 = vld [vmem:[%s1 + $0x2ed8] sm:$0xff]
  %v1533 = vld [vmem:[%s1 + $0x2ee0] sm:$0xff]
  %v1534 = vld [vmem:[%s1 + $0x2ee8] sm:$0xff]
  %v1535 = vld [vmem:[%s1 + $0x2ef0] sm:$0xff]
  %v1536 = vld [vmem:[%s1 + $0x2ef8] sm:$0xff]
  %v1537 = vld [vmem:[%s1 + $0x2f00] sm:$0xff]
  %v1538 = vld [vmem:[%s1 + $0x2f08] sm:$0xff]
  %v1539 = vld [vmem:[%s1 + $0x2f10] sm:$0xff]
  %v1540 = vld [vmem:[%s1 + $0x2f18] sm:$0xff]
  %v1541 = vld [vmem:[%s1 + $0x2f20] sm:$0xff]
  %v1542 = vld [vmem:[%s1 + $0x2f28] sm:$0xff]
  %v1543 = vld [vmem:[%s1 + $0x2f30] sm:$0xff]
  %v1544 = vld [vmem:[%s1 + $0x2f38] sm:$0xff]
  %v1545 = vld [vmem:[%s1 + $0x2f40] sm:$0xff]
  %v1546 = vld [vmem:[%s1 + $0x2f48] sm:$0xff]
  %v1547 = vld [vmem:[%s1 + $0x2f50] sm:$0xff]
  %v1548 = vld [vmem:[%s1 + $0x2f58] sm:$0xff]
  %v1549 = vld [vmem:[%s1 + $0x2f60] sm:$0xff]
  %v1550 = vld [vmem:[%s1 + $0x2f68] sm:$0xff]
  %v1551 = vld [vmem:[%s1 + $0x2f70] sm:$0xff]
  %v1552 = vld [vmem:[%s1 + $0x2f78] sm:$0xff]
  %v1553 = vld [vmem:[%s1 + $0x2f80] sm:$0xff]
  %v1554 = vld [vmem:[%s1 + $0x2f88] sm:$0xff]
  %v1555 = vld [vmem:[%s1 + $0x2f90] sm:$0xff]
  %v1556 = vld [vmem:[%s1 + $0x2f98] sm:$0xff]
  %v1557 = vld [vmem:[%s1 + $0x2fa0] sm:$0xff]
  %v1558 = vld [vmem:[%s1 + $0x2fa8] sm:$0xff]
  %v1559 = vld [vmem:[%s1 + $0x2fb0] sm:$0xff]
  %v1560 = vld [vmem:[%s1 + $0x2fb8] sm:$0xff]
  %v1561 = vld [vmem:[%s1 + $0x2fc0] sm:$0xff]
  %v1562 = vld [vmem:[%s1 + $0x2fc8] sm:$0xff]
  %v1563 = vld [vmem:[%s1 + $0x2fd0] sm:$0xff]
  %v1564 = vld [vmem:[%s1 + $0x2fd8] sm:$0xff]
  %v1565 = vld [vmem:[%s1 + $0x2fe0] sm:$0xff]
  %v1566 = vld [vmem:[%s1 + $0x2fe8] sm:$0xff]
  %v1567 = vld [vmem:[%s1 + $0x2ff0] sm:$0xff]
  %v1568 = vld [vmem:[%s1 + $0x2ff8] sm:$0xff]
  %v1569 = vld [vmem:[%s1 + $0x3000] sm:$0xff]
  %v1570 = vld [vmem:[%s1 + $0x3008] sm:$0xff]
  %v1571 = vld [vmem:[%s1 + $0x3010] sm:$0xff]
  %v1572 = vld [vmem:[%s1 + $0x3018] sm:$0xff]
  %v1573 = vld [vmem:[%s1 + $0x3020] sm:$0xff]
  %v1574 = vld [vmem:[%s1 + $0x3028] sm:$0xff]
  %v1575 = vld [vmem:[%s1 + $0x3030] sm:$0xff]
  %v1576 = vld [vmem:[%s1 + $0x3038] sm:$0xff]
  %v1577 = vld [vmem:[%s1 + $0x3040] sm:$0xff]
  %v1578 = vld [vmem:[%s1 + $0x3048] sm:$0xff]
  %v1579 = vld [vmem:[%s1 + $0x3050] sm:$0xff]
  %v1580 = vld [vmem:[%s1 + $0x3058] sm:$0xff]
  %v1581 = vld [vmem:[%s1 + $0x3060] sm:$0xff]
  %v1582 = vld [vmem:[%s1 + $0x3068] sm:$0xff]
  %v1583 = vld [vmem:[%s1 + $0x3070] sm:$0xff]
  %v1584 = vld [vmem:[%s1 + $0x3078] sm:$0xff]
  %v1585 = vld [vmem:[%s1 + $0x3080] sm:$0xff]
  %v1586 = vld [vmem:[%s1 + $0x3088] sm:$0xff]
  %v1587 = vld [vmem:[%s1 + $0x3090] sm:$0xff]
  %v1588 = vld [vmem:[%s1 + $0x3098] sm:$0xff]
  %v1589 = vld [vmem:[%s1 + $0x30a0] sm:$0xff]
  %v1590 = vld [vmem:[%s1 + $0x30a8] sm:$0xff]
  %v1591 = vld [vmem:[%s1 + $0x30b0] sm:$0xff]
  %v1592 = vld [vmem:[%s1 + $0x30b8] sm:$0xff]
  %v1593 = vld [vmem:[%s1 + $0x30c0] sm:$0xff]
  %v1594 = vld [vmem:[%s1 + $0x30c8] sm:$0xff]
  %v1595 = vld [vmem:[%s1 + $0x30d0] sm:$0xff]
  %v1596 = vld [vmem:[%s1 + $0x30d8] sm:$0xff]
  %v1597 = vld [vmem:[%s1 + $0x30e0] sm:$0xff]
  %v1598 = vld [vmem:[%s1 + $0x30e8] sm:$0xff]
  %v1599 = vld [vmem:[%s1 + $0x30f0] sm:$0xff]
  %v1600 = vld [vmem:[%s1 + $0x30f8] sm:$0xff]
  %vm1601 = vcmask 130048
  %v1603 = vsel %vm1601, %v32, 0
  %1605 = vmatprep.subr.mxu0 %v274
  %1606 = vmatpush1.msra.mxu0 %v273
  %1607 = vmatprep.subr.mxu0 %v258
  %1608 = vmatpush1.msra.mxu0 %v257
  %1609 = vmatprep.subr.mxu0 %v242
  %1610 = vmatpush1.msra.mxu0 %v241
  %1611 = vmatprep.subr.mxu0 %v226
  %1612 = vmatpush1.msra.mxu0 %v225
  %1613 = vmatprep.subr.mxu0 %v210
  %1614 = vmatpush1.msra.mxu0 %v209
  %1615 = vmatprep.subr.mxu0 %v194
  %1616 = vmatpush1.msra.mxu0 %v193
  %1617 = vmatprep.subr.mxu0 %v178
  %1618 = vmatpush1.msra.mxu0 %v177
  %1619 = vmatprep.subr.mxu0 %v162
  %1620 = vmatpush1.msra.mxu0 %v161
  %1621 = vmatprep.subr.mxu0 %v146
  %1622 = vmatpush1.msra.mxu0 %v145
  %1623 = vmatprep.subr.mxu0 %v130
  %1624 = vmatpush1.msra.mxu0 %v129
  %1625 = vmatprep.subr.mxu0 %v114
  %1626 = vmatpush1.msra.mxu0 %v113
  %1627 = vmatprep.subr.mxu0 %v98
  %1628 = vmatpush1.msra.mxu0 %v97
  %1629 = vmatprep.subr.mxu0 %v82
  %1630 = vmatpush1.msra.mxu0 %v81
  %1631 = vmatprep.subr.mxu0 %v66
  %1632 = vmatpush1.msra.mxu0 %v65
  %1633 = vmatprep.subr.mxu0 %v50
  %1634 = vmatpush1.msra.mxu0 %v49
  %1635 = vmatprep.subr.mxu0 %v34
  %1636 = vmatpush1.msra.mxu0 %v33
  %1637 = vmatprep.subr.mxu0 %v530
  %1638 = vmatpush2.msra.mxu0 %v529
  %1639 = vmatprep.subr.mxu0 %v514
  %1640 = vmatpush2.msra.mxu0 %v513
  %1641 = vmatprep.subr.mxu0 %v498
  %1642 = vmatpush2.msra.mxu0 %v497
  %1643 = vmatprep.subr.mxu0 %v482
  %1644 = vmatpush2.msra.mxu0 %v481
  %1645 = vmatprep.subr.mxu0 %v466
  %1646 = vmatpush2.msra.mxu0 %v465
  %1647 = vmatprep.subr.mxu0 %v450
  %1648 = vmatpush2.msra.mxu0 %v449
  %1649 = vmatprep.subr.mxu0 %v434
  %1650 = vmatpush2.msra.mxu0 %v433
  %1651 = vmatprep.subr.mxu0 %v418
  %1652 = vmatpush2.msra.mxu0 %v417
  %1653 = vmatprep.subr.mxu0 %v402
  %1654 = vmatpush2.msra.mxu0 %v401
  %1655 = vmatprep.subr.mxu0 %v386
  %1656 = vmatpush2.msra.mxu0 %v385
  %1657 = vmatprep.subr.mxu0 %v370
  %1658 = vmatpush2.msra.mxu0 %v369
  %1659 = vmatprep.subr.mxu0 %v354
  %1660 = vmatpush2.msra.mxu0 %v353
  %1661 = vmatprep.subr.mxu0 %v338
  %1662 = vmatpush2.msra.mxu0 %v337
  %1663 = vmatprep.subr.mxu0 %v322
  %1664 = vmatpush2.msra.mxu0 %v321
  %1665 = vmatprep.subr.mxu0 %v306
  %1666 = vmatpush2.msra.mxu0 %v305
  %1667 = vmatprep.subr.mxu0 %v290
  %1668 = vmatpush2.msra.mxu0 %v289
  %1669 = vmatprep.mubr.f32.mxu0 %v27
  %1670 = vmatmul.mubr.f32.gmra.mxu0 %v26
  %v1671 = vpop.f32.mrf.mxu0
  %v1672 = vadd.f32 0.0, %v1671
  %v1673 = vpop.f32.mrf.mxu0
  %v1674 = vadd.f32 0.0, %v1673
  %1675 = vdwg.mxu0
  %1676 = vmatprep.subr.mxu0 %v786
  %1677 = vmatpush1.msra.mxu0 %v785
  %1678 = vmatprep.subr.mxu0 %v770
  %1679 = vmatpush1.msra.mxu0 %v769
  %1680 = vmatprep.subr.mxu0 %v754
  %1681 = vmatpush1.msra.mxu0 %v753
  %1682 = vmatprep.subr.mxu0 %v738
  %1683 = vmatpush1.msra.mxu0 %v737
  %1684 = vmatprep.subr.mxu0 %v722
  %1685 = vmatpush1.msra.mxu0 %v721
  %1686 = vmatprep.subr.mxu0 %v706
  %1687 = vmatpush1.msra.mxu0 %v705
  %1688 = vmatprep.subr.mxu0 %v690
  %1689 = vmatpush1.msra.mxu0 %v689
  %1690 = vmatprep.subr.mxu0 %v674
  %1691 = vmatpush1.msra.mxu0 %v673
  %1692 = vmatprep.subr.mxu0 %v658
  %1693 = vmatpush1.msra.mxu0 %v657
  %1694 = vmatprep.subr.mxu0 %v642
  %1695 = vmatpush1.msra.mxu0 %v641
  %1696 = vmatprep.subr.mxu0 %v626
  %1697 = vmatpush1.msra.mxu0 %v625
  %1698 = vmatprep.subr.mxu0 %v610
  %1699 = vmatpush1.msra.mxu0 %v609
  %1700 = vmatprep.subr.mxu0 %v594
  %1701 = vmatpush1.msra.mxu0 %v593
  %1702 = vmatprep.subr.mxu0 %v578
  %1703 = vmatpush1.msra.mxu0 %v577
  %1704 = vmatprep.subr.mxu0 %v562
  %1705 = vmatpush1.msra.mxu0 %v561
  %1706 = vmatprep.subr.mxu0 %v546
  %1707 = vmatpush1.msra.mxu0 %v545
  %1708 = vmatprep.subr.mxu0 %v1042
  %1709 = vmatpush2.msra.mxu0 %v1041
  %1710 = vmatprep.subr.mxu0 %v1026
  %1711 = vmatpush2.msra.mxu0 %v1025
  %1712 = vmatprep.subr.mxu0 %v1010
  %1713 = vmatpush2.msra.mxu0 %v1009
  %1714 = vmatprep.subr.mxu0 %v994
  %1715 = vmatpush2.msra.mxu0 %v993
  %1716 = vmatprep.subr.mxu0 %v978
  %1717 = vmatpush2.msra.mxu0 %v977
  %1718 = vmatprep.subr.mxu0 %v962
  %1719 = vmatpush2.msra.mxu0 %v961
  %1720 = vmatprep.subr.mxu0 %v946
  %1721 = vmatpush2.msra.mxu0 %v945
  %1722 = vmatprep.subr.mxu0 %v930
  %1723 = vmatpush2.msra.mxu0 %v929
  %1724 = vmatprep.subr.mxu0 %v914
  %1725 = vmatpush2.msra.mxu0 %v913
  %1726 = vmatprep.subr.mxu0 %v898
  %1727 = vmatpush2.msra.mxu0 %v897
  %1728 = vmatprep.subr.mxu0 %v882
  %1729 = vmatpush2.msra.mxu0 %v881
  %1730 = vmatprep.subr.mxu0 %v866
  %1731 = vmatpush2.msra.mxu0 %v865
  %1732 = vmatprep.subr.mxu0 %v850
  %1733 = vmatpush2.msra.mxu0 %v849
  %1734 = vmatprep.subr.mxu0 %v834
  %1735 = vmatpush2.msra.mxu0 %v833
  %1736 = vmatprep.subr.mxu0 %v818
  %1737 = vmatpush2.msra.mxu0 %v817
  %1738 = vmatprep.subr.mxu0 %v802
  %1739 = vmatpush2.msra.mxu0 %v801
  %1740 = vmatprep.mubr.f32.mxu0 %v29
  %1741 = vmatmul.mubr.f32.gmra.mxu0 %v28
  %v1742 = vpop.f32.mrf.mxu0
  %v1743 = vadd.f32 %v1672, %v1742
  %v1744 = vpop.f32.mrf.mxu0
  %v1745 = vadd.f32 %v1674, %v1744
  %1746 = vdwg.mxu0
  %1747 = vmatprep.subr.mxu0 %v1298
  %1748 = vmatpush1.msra.mxu0 %v1297
  %1749 = vmatprep.subr.mxu0 %v1282
  %1750 = vmatpush1.msra.mxu0 %v1281
  %1751 = vmatprep.subr.mxu0 %v1266
  %1752 = vmatpush1.msra.mxu0 %v1265
  %1753 = vmatprep.subr.mxu0 %v1250
  %1754 = vmatpush1.msra.mxu0 %v1249
  %1755 = vmatprep.subr.mxu0 %v1234
  %1756 = vmatpush1.msra.mxu0 %v1233
  %1757 = vmatprep.subr.mxu0 %v1218
  %1758 = vmatpush1.msra.mxu0 %v1217
  %1759 = vmatprep.subr.mxu0 %v1202
  %1760 = vmatpush1.msra.mxu0 %v1201
  %1761 = vmatprep.subr.mxu0 %v1186
  %1762 = vmatpush1.msra.mxu0 %v1185
  %1763 = vmatprep.subr.mxu0 %v1170
  %1764 = vmatpush1.msra.mxu0 %v1169
  %1765 = vmatprep.subr.mxu0 %v1154
  %1766 = vmatpush1.msra.mxu0 %v1153
  %1767 = vmatprep.subr.mxu0 %v1138
  %1768 = vmatpush1.msra.mxu0 %v1137
  %1769 = vmatprep.subr.mxu0 %v1122
  %1770 = vmatpush1.msra.mxu0 %v1121
  %1771 = vmatprep.subr.mxu0 %v1106
  %1772 = vmatpush1.msra.mxu0 %v1105
  %1773 = vmatprep.subr.mxu0 %v1090
  %1774 = vmatpush1.msra.mxu0 %v1089
  %1775 = vmatprep.subr.mxu0 %v1074
  %1776 = vmatpush1.msra.mxu0 %v1073
  %1777 = vmatprep.subr.mxu0 %v1058
  %1778 = vmatpush1.msra.mxu0 %v1057
  %1779 = vmatprep.subr.mxu0 %v1554
  %1780 = vmatpush2.msra.mxu0 %v1553
  %1781 = vmatprep.subr.mxu0 %v1538
  %1782 = vmatpush2.msra.mxu0 %v1537
  %1783 = vmatprep.subr.mxu0 %v1522
  %1784 = vmatpush2.msra.mxu0 %v1521
  %1785 = vmatprep.subr.mxu0 %v1506
  %1786 = vmatpush2.msra.mxu0 %v1505
  %1787 = vmatprep.subr.mxu0 %v1490
  %1788 = vmatpush2.msra.mxu0 %v1489
  %1789 = vmatprep.subr.mxu0 %v1474
  %1790 = vmatpush2.msra.mxu0 %v1473
  %1791 = vmatprep.subr.mxu0 %v1458
  %1792 = vmatpush2.msra.mxu0 %v1457
  %1793 = vmatprep.subr.mxu0 %v1442
  %1794 = vmatpush2.msra.mxu0 %v1441
  %1795 = vmatprep.subr.mxu0 %v1426
  %1796 = vmatpush2.msra.mxu0 %v1425
  %1797 = vmatprep.subr.mxu0 %v1410
  %1798 = vmatpush2.msra.mxu0 %v1409
  %1799 = vmatprep.subr.mxu0 %v1394
  %1800 = vmatpush2.msra.mxu0 %v1393
  %1801 = vmatprep.subr.mxu0 %v1378
  %1802 = vmatpush2.msra.mxu0 %v1377
  %1803 = vmatprep.subr.mxu0 %v1362
  %1804 = vmatpush2.msra.mxu0 %v1361
  %1805 = vmatprep.subr.mxu0 %v1346
  %1806 = vmatpush2.msra.mxu0 %v1345
  %1807 = vmatprep.subr.mxu0 %v1330
  %1808 = vmatpush2.msra.mxu0 %v1329
  %1809 = vmatprep.subr.mxu0 %v1314
  %1810 = vmatpush2.msra.mxu0 %v1313
  %1811 = vmatprep.mubr.f32.mxu0 %v31
  %1812 = vmatmul.mubr.f32.gmra.mxu0 %v30
  %v1813 = vpop.f32.mrf.mxu0
  %v1814 = vadd.f32 %v1743, %v1813
  %v1815 = vpop.f32.mrf.mxu0
  %v1816 = vadd.f32 %v1745, %v1815
  %1817 = vdwg.mxu0
  %1818 = vmatprep.subr.mxu0 0.0
  %1819 = vmatpush1.msra.mxu0 0.0
  %1820 = vmatprep.subr.mxu0 0.0
  %1821 = vmatpush1.msra.mxu0 0.0
  %1822 = vmatprep.subr.mxu0 0.0
  %1823 = vmatpush1.msra.mxu0 0.0
  %1824 = vmatprep.subr.mxu0 0.0
  %1825 = vmatpush1.msra.mxu0 0.0
  %1826 = vmatprep.subr.mxu0 0.0
  %1827 = vmatpush1.msra.mxu0 0.0
  %1828 = vmatprep.subr.mxu0 0.0
  %1829 = vmatpush1.msra.mxu0 0.0
  %1830 = vmatprep.subr.mxu0 0.0
  %1831 = vmatpush1.msra.mxu0 0.0
  %1832 = vmatprep.subr.mxu0 0.0
  %1833 = vmatpush1.msra.mxu0 0.0
  %1834 = vmatprep.subr.mxu0 0.0
  %1835 = vmatpush1.msra.mxu0 0.0
  %1836 = vmatprep.subr.mxu0 0.0
  %1837 = vmatpush1.msra.mxu0 0.0
  %1838 = vmatprep.subr.mxu0 0.0
  %1839 = vmatpush1.msra.mxu0 0.0
  %1840 = vmatprep.subr.mxu0 0.0
  %1841 = vmatpush1.msra.mxu0 0.0
  %1842 = vmatprep.subr.mxu0 0.0
  %1843 = vmatpush1.msra.mxu0 0.0
  %1844 = vmatprep.subr.mxu0 0.0
  %1845 = vmatpush1.msra.mxu0 0.0
  %1846 = vmatprep.subr.mxu0 %v1586
  %1847 = vmatpush1.msra.mxu0 %v1585
  %1848 = vmatprep.subr.mxu0 %v1570
  %1849 = vmatpush1.msra.mxu0 %v1569
  %1850 = vmatprep.subr.mxu0 0.0
  %1851 = vmatpush2.msra.mxu0 0.0
  %1852 = vmatprep.subr.mxu0 0.0
  %1853 = vmatpush2.msra.mxu0 0.0
  %1854 = vmatprep.subr.mxu0 0.0
  %1855 = vmatpush2.msra.mxu0 0.0
  %1856 = vmatprep.subr.mxu0 0.0
  %1857 = vmatpush2.msra.mxu0 0.0
  %1858 = vmatprep.subr.mxu0 0.0
  %1859 = vmatpush2.msra.mxu0 0.0
  %1860 = vmatprep.subr.mxu0 0.0
  %1861 = vmatpush2.msra.mxu0 0.0
  %1862 = vmatprep.subr.mxu0 0.0
  %1863 = vmatpush2.msra.mxu0 0.0
  %1864 = vmatprep.subr.mxu0 0.0
  %1865 = vmatpush2.msra.mxu0 0.0
  %1866 = vmatprep.subr.mxu0 0.0
  %1867 = vmatpush2.msra.mxu0 0.0
  %1868 = vmatprep.subr.mxu0 0.0
  %1869 = vmatpush2.msra.mxu0 0.0
  %1870 = vmatprep.subr.mxu0 0.0
  %1871 = vmatpush2.msra.mxu0 0.0
  %1872 = vmatprep.subr.mxu0 0.0
  %1873 = vmatpush2.msra.mxu0 0.0
  %1874 = vmatprep.subr.mxu0 0.0
  %1875 = vmatpush2.msra.mxu0 0.0
  %1876 = vmatprep.subr.mxu0 0.0
  %1877 = vmatpush2.msra.mxu0 0.0
  %1878 = vmatprep.subr.mxu0 0.0
  %1879 = vmatpush2.msra.mxu0 0.0
  %1880 = vmatprep.subr.mxu0 0.0
  %1881 = vmatpush2.msra.mxu0 0.0
  %1882 = vmatprep.mubr.f32.mxu0 0.0
  %1883 = vmatmul.mubr.f32.gmra.mxu0 %v1603
  %v1884 = vpop.f32.mrf.mxu0
  %v1885 = vadd.f32 %v1814, %v1884
  %v1886 = vpop.f32.mrf.mxu0
  %v1887 = vadd.f32 %v1816, %v1886
  %1888 = vdwg.mxu0
  %1889 = vmatprep.subr.mxu0 %v276
  %1890 = vmatpush1.msra.mxu0 %v275
  %1891 = vmatprep.subr.mxu0 %v260
  %1892 = vmatpush1.msra.mxu0 %v259
  %1893 = vmatprep.subr.mxu0 %v244
  %1894 = vmatpush1.msra.mxu0 %v243
  %1895 = vmatprep.subr.mxu0 %v228
  %1896 = vmatpush1.msra.mxu0 %v227
  %1897 = vmatprep.subr.mxu0 %v212
  %1898 = vmatpush1.msra.mxu0 %v211
  %1899 = vmatprep.subr.mxu0 %v196
  %1900 = vmatpush1.msra.mxu0 %v195
  %1901 = vmatprep.subr.mxu0 %v180
  %1902 = vmatpush1.msra.mxu0 %v179
  %1903 = vmatprep.subr.mxu0 %v164
  %1904 = vmatpush1.msra.mxu0 %v163
  %1905 = vmatprep.subr.mxu0 %v148
  %1906 = vmatpush1.msra.mxu0 %v147
  %1907 = vmatprep.subr.mxu0 %v132
  %1908 = vmatpush1.msra.mxu0 %v131
  %1909 = vmatprep.subr.mxu0 %v116
  %1910 = vmatpush1.msra.mxu0 %v115
  %1911 = vmatprep.subr.mxu0 %v100
  %1912 = vmatpush1.msra.mxu0 %v99
  %1913 = vmatprep.subr.mxu0 %v84
  %1914 = vmatpush1.msra.mxu0 %v83
  %1915 = vmatprep.subr.mxu0 %v68
  %1916 = vmatpush1.msra.mxu0 %v67
  %1917 = vmatprep.subr.mxu0 %v52
  %1918 = vmatpush1.msra.mxu0 %v51
  %1919 = vmatprep.subr.mxu0 %v36
  %1920 = vmatpush1.msra.mxu0 %v35
  %1921 = vmatprep.subr.mxu0 %v532
  %1922 = vmatpush2.msra.mxu0 %v531
  %1923 = vmatprep.subr.mxu0 %v516
  %1924 = vmatpush2.msra.mxu0 %v515
  %1925 = vmatprep.subr.mxu0 %v500
  %1926 = vmatpush2.msra.mxu0 %v499
  %1927 = vmatprep.subr.mxu0 %v484
  %1928 = vmatpush2.msra.mxu0 %v483
  %1929 = vmatprep.subr.mxu0 %v468
  %1930 = vmatpush2.msra.mxu0 %v467
  %1931 = vmatprep.subr.mxu0 %v452
  %1932 = vmatpush2.msra.mxu0 %v451
  %1933 = vmatprep.subr.mxu0 %v436
  %1934 = vmatpush2.msra.mxu0 %v435
  %1935 = vmatprep.subr.mxu0 %v420
  %1936 = vmatpush2.msra.mxu0 %v419
  %1937 = vmatprep.subr.mxu0 %v404
  %1938 = vmatpush2.msra.mxu0 %v403
  %1939 = vmatprep.subr.mxu0 %v388
  %1940 = vmatpush2.msra.mxu0 %v387
  %1941 = vmatprep.subr.mxu0 %v372
  %1942 = vmatpush2.msra.mxu0 %v371
  %1943 = vmatprep.subr.mxu0 %v356
  %1944 = vmatpush2.msra.mxu0 %v355
  %1945 = vmatprep.subr.mxu0 %v340
  %1946 = vmatpush2.msra.mxu0 %v339
  %1947 = vmatprep.subr.mxu0 %v324
  %1948 = vmatpush2.msra.mxu0 %v323
  %1949 = vmatprep.subr.mxu0 %v308
  %1950 = vmatpush2.msra.mxu0 %v307
  %1951 = vmatprep.subr.mxu0 %v292
  %1952 = vmatpush2.msra.mxu0 %v291
  %1953 = vmatprep.mubr.f32.mxu0 %v27
  %1954 = vmatmul.mubr.f32.gmra.mxu0 %v26
  %v1955 = vpop.f32.mrf.mxu0
  %v1956 = vadd.f32 0.0, %v1955
  %v1957 = vpop.f32.mrf.mxu0
  %v1958 = vadd.f32 0.0, %v1957
  %1959 = vdwg.mxu0
  %1960 = vmatprep.subr.mxu0 %v788
  %1961 = vmatpush1.msra.mxu0 %v787
  %1962 = vmatprep.subr.mxu0 %v772
  %1963 = vmatpush1.msra.mxu0 %v771
  %1964 = vmatprep.subr.mxu0 %v756
  %1965 = vmatpush1.msra.mxu0 %v755
  %1966 = vmatprep.subr.mxu0 %v740
  %1967 = vmatpush1.msra.mxu0 %v739
  %1968 = vmatprep.subr.mxu0 %v724
  %1969 = vmatpush1.msra.mxu0 %v723
  %1970 = vmatprep.subr.mxu0 %v708
  %1971 = vmatpush1.msra.mxu0 %v707
  %1972 = vmatprep.subr.mxu0 %v692
  %1973 = vmatpush1.msra.mxu0 %v691
  %1974 = vmatprep.subr.mxu0 %v676
  %1975 = vmatpush1.msra.mxu0 %v675
  %1976 = vmatprep.subr.mxu0 %v660
  %1977 = vmatpush1.msra.mxu0 %v659
  %1978 = vmatprep.subr.mxu0 %v644
  %1979 = vmatpush1.msra.mxu0 %v643
  %1980 = vmatprep.subr.mxu0 %v628
  %1981 = vmatpush1.msra.mxu0 %v627
  %1982 = vmatprep.subr.mxu0 %v612
  %1983 = vmatpush1.msra.mxu0 %v611
  %1984 = vmatprep.subr.mxu0 %v596
  %1985 = vmatpush1.msra.mxu0 %v595
  %1986 = vmatprep.subr.mxu0 %v580
  %1987 = vmatpush1.msra.mxu0 %v579
  %1988 = vmatprep.subr.mxu0 %v564
  %1989 = vmatpush1.msra.mxu0 %v563
  %1990 = vmatprep.subr.mxu0 %v548
  %1991 = vmatpush1.msra.mxu0 %v547
  %1992 = vmatprep.subr.mxu0 %v1044
  %1993 = vmatpush2.msra.mxu0 %v1043
  %1994 = vmatprep.subr.mxu0 %v1028
  %1995 = vmatpush2.msra.mxu0 %v1027
  %1996 = vmatprep.subr.mxu0 %v1012
  %1997 = vmatpush2.msra.mxu0 %v1011
  %1998 = vmatprep.subr.mxu0 %v996
  %1999 = vmatpush2.msra.mxu0 %v995
  %2000 = vmatprep.subr.mxu0 %v980
  %2001 = vmatpush2.msra.mxu0 %v979
  %2002 = vmatprep.subr.mxu0 %v964
  %2003 = vmatpush2.msra.mxu0 %v963
  %2004 = vmatprep.subr.mxu0 %v948
  %2005 = vmatpush2.msra.mxu0 %v947
  %2006 = vmatprep.subr.mxu0 %v932
  %2007 = vmatpush2.msra.mxu0 %v931
  %2008 = vmatprep.subr.mxu0 %v916
  %2009 = vmatpush2.msra.mxu0 %v915
  %2010 = vmatprep.subr.mxu0 %v900
  %2011 = vmatpush2.msra.mxu0 %v899
  %2012 = vmatprep.subr.mxu0 %v884
  %2013 = vmatpush2.msra.mxu0 %v883
  %2014 = vmatprep.subr.mxu0 %v868
  %2015 = vmatpush2.msra.mxu0 %v867
  %2016 = vmatprep.subr.mxu0 %v852
  %2017 = vmatpush2.msra.mxu0 %v851
  %2018 = vmatprep.subr.mxu0 %v836
  %2019 = vmatpush2.msra.mxu0 %v835
  %2020 = vmatprep.subr.mxu0 %v820
  %2021 = vmatpush2.msra.mxu0 %v819
  %2022 = vmatprep.subr.mxu0 %v804
  %2023 = vmatpush2.msra.mxu0 %v803
  %2024 = vmatprep.mubr.f32.mxu0 %v29
  %2025 = vmatmul.mubr.f32.gmra.mxu0 %v28
  %v2026 = vpop.f32.mrf.mxu0
  %v2027 = vadd.f32 %v1956, %v2026
  %v2028 = vpop.f32.mrf.mxu0
  %v2029 = vadd.f32 %v1958, %v2028
  %2030 = vdwg.mxu0
  %2031 = vmatprep.subr.mxu0 %v1300
  %2032 = vmatpush1.msra.mxu0 %v1299
  %2033 = vmatprep.subr.mxu0 %v1284
  %2034 = vmatpush1.msra.mxu0 %v1283
  %2035 = vmatprep.subr.mxu0 %v1268
  %2036 = vmatpush1.msra.mxu0 %v1267
  %2037 = vmatprep.subr.mxu0 %v1252
  %2038 = vmatpush1.msra.mxu0 %v1251
  %2039 = vmatprep.subr.mxu0 %v1236
  %2040 = vmatpush1.msra.mxu0 %v1235
  %2041 = vmatprep.subr.mxu0 %v1220
  %2042 = vmatpush1.msra.mxu0 %v1219
  %2043 = vmatprep.subr.mxu0 %v1204
  %2044 = vmatpush1.msra.mxu0 %v1203
  %2045 = vmatprep.subr.mxu0 %v1188
  %2046 = vmatpush1.msra.mxu0 %v1187
  %2047 = vmatprep.subr.mxu0 %v1172
  %2048 = vmatpush1.msra.mxu0 %v1171
  %2049 = vmatprep.subr.mxu0 %v1156
  %2050 = vmatpush1.msra.mxu0 %v1155
  %2051 = vmatprep.subr.mxu0 %v1140
  %2052 = vmatpush1.msra.mxu0 %v1139
  %2053 = vmatprep.subr.mxu0 %v1124
  %2054 = vmatpush1.msra.mxu0 %v1123
  %2055 = vmatprep.subr.mxu0 %v1108
  %2056 = vmatpush1.msra.mxu0 %v1107
  %2057 = vmatprep.subr.mxu0 %v1092
  %2058 = vmatpush1.msra.mxu0 %v1091
  %2059 = vmatprep.subr.mxu0 %v1076
  %2060 = vmatpush1.msra.mxu0 %v1075
  %2061 = vmatprep.subr.mxu0 %v1060
  %2062 = vmatpush1.msra.mxu0 %v1059
  %2063 = vmatprep.subr.mxu0 %v1556
  %2064 = vmatpush2.msra.mxu0 %v1555
  %2065 = vmatprep.subr.mxu0 %v1540
  %2066 = vmatpush2.msra.mxu0 %v1539
  %2067 = vmatprep.subr.mxu0 %v1524
  %2068 = vmatpush2.msra.mxu0 %v1523
  %2069 = vmatprep.subr.mxu0 %v1508
  %2070 = vmatpush2.msra.mxu0 %v1507
  %2071 = vmatprep.subr.mxu0 %v1492
  %2072 = vmatpush2.msra.mxu0 %v1491
  %2073 = vmatprep.subr.mxu0 %v1476
  %2074 = vmatpush2.msra.mxu0 %v1475
  %2075 = vmatprep.subr.mxu0 %v1460
  %2076 = vmatpush2.msra.mxu0 %v1459
  %2077 = vmatprep.subr.mxu0 %v1444
  %2078 = vmatpush2.msra.mxu0 %v1443
  %2079 = vmatprep.subr.mxu0 %v1428
  %2080 = vmatpush2.msra.mxu0 %v1427
  %2081 = vmatprep.subr.mxu0 %v1412
  %2082 = vmatpush2.msra.mxu0 %v1411
  %2083 = vmatprep.subr.mxu0 %v1396
  %2084 = vmatpush2.msra.mxu0 %v1395
  %2085 = vmatprep.subr.mxu0 %v1380
  %2086 = vmatpush2.msra.mxu0 %v1379
  %2087 = vmatprep.subr.mxu0 %v1364
  %2088 = vmatpush2.msra.mxu0 %v1363
  %2089 = vmatprep.subr.mxu0 %v1348
  %2090 = vmatpush2.msra.mxu0 %v1347
  %2091 = vmatprep.subr.mxu0 %v1332
  %2092 = vmatpush2.msra.mxu0 %v1331
  %2093 = vmatprep.subr.mxu0 %v1316
  %2094 = vmatpush2.msra.mxu0 %v1315
  %2095 = vmatprep.mubr.f32.mxu0 %v31
  %2096 = vmatmul.mubr.f32.gmra.mxu0 %v30
  %v2097 = vpop.f32.mrf.mxu0
  %v2098 = vadd.f32 %v2027, %v2097
  %v2099 = vpop.f32.mrf.mxu0
  %v2100 = vadd.f32 %v2029, %v2099
  %2101 = vdwg.mxu0
  %2102 = vmatprep.subr.mxu0 0.0
  %2103 = vmatpush1.msra.mxu0 0.0
  %2104 = vmatprep.subr.mxu0 0.0
  %2105 = vmatpush1.msra.mxu0 0.0
  %2106 = vmatprep.subr.mxu0 0.0
  %2107 = vmatpush1.msra.mxu0 0.0
  %2108 = vmatprep.subr.mxu0 0.0
  %2109 = vmatpush1.msra.mxu0 0.0
  %2110 = vmatprep.subr.mxu0 0.0
  %2111 = vmatpush1.msra.mxu0 0.0
  %2112 = vmatprep.subr.mxu0 0.0
  %2113 = vmatpush1.msra.mxu0 0.0
  %2114 = vmatprep.subr.mxu0 0.0
  %2115 = vmatpush1.msra.mxu0 0.0
  %2116 = vmatprep.subr.mxu0 0.0
  %2117 = vmatpush1.msra.mxu0 0.0
  %2118 = vmatprep.subr.mxu0 0.0
  %2119 = vmatpush1.msra.mxu0 0.0
  %2120 = vmatprep.subr.mxu0 0.0
  %2121 = vmatpush1.msra.mxu0 0.0
  %2122 = vmatprep.subr.mxu0 0.0
  %2123 = vmatpush1.msra.mxu0 0.0
  %2124 = vmatprep.subr.mxu0 0.0
  %2125 = vmatpush1.msra.mxu0 0.0
  %2126 = vmatprep.subr.mxu0 0.0
  %2127 = vmatpush1.msra.mxu0 0.0
  %2128 = vmatprep.subr.mxu0 0.0
  %2129 = vmatpush1.msra.mxu0 0.0
  %2130 = vmatprep.subr.mxu0 %v1588
  %2131 = vmatpush1.msra.mxu0 %v1587
  %2132 = vmatprep.subr.mxu0 %v1572
  %2133 = vmatpush1.msra.mxu0 %v1571
  %2134 = vmatprep.subr.mxu0 0.0
  %2135 = vmatpush2.msra.mxu0 0.0
  %2136 = vmatprep.subr.mxu0 0.0
  %2137 = vmatpush2.msra.mxu0 0.0
  %2138 = vmatprep.subr.mxu0 0.0
  %2139 = vmatpush2.msra.mxu0 0.0
  %2140 = vmatprep.subr.mxu0 0.0
  %2141 = vmatpush2.msra.mxu0 0.0
  %2142 = vmatprep.subr.mxu0 0.0
  %2143 = vmatpush2.msra.mxu0 0.0
  %2144 = vmatprep.subr.mxu0 0.0
  %2145 = vmatpush2.msra.mxu0 0.0
  %2146 = vmatprep.subr.mxu0 0.0
  %2147 = vmatpush2.msra.mxu0 0.0
  %2148 = vmatprep.subr.mxu0 0.0
  %2149 = vmatpush2.msra.mxu0 0.0
  %2150 = vmatprep.subr.mxu0 0.0
  %2151 = vmatpush2.msra.mxu0 0.0
  %2152 = vmatprep.subr.mxu0 0.0
  %2153 = vmatpush2.msra.mxu0 0.0
  %2154 = vmatprep.subr.mxu0 0.0
  %2155 = vmatpush2.msra.mxu0 0.0
  %2156 = vmatprep.subr.mxu0 0.0
  %2157 = vmatpush2.msra.mxu0 0.0
  %2158 = vmatprep.subr.mxu0 0.0
  %2159 = vmatpush2.msra.mxu0 0.0
  %2160 = vmatprep.subr.mxu0 0.0
  %2161 = vmatpush2.msra.mxu0 0.0
  %2162 = vmatprep.subr.mxu0 0.0
  %2163 = vmatpush2.msra.mxu0 0.0
  %2164 = vmatprep.subr.mxu0 0.0
  %2165 = vmatpush2.msra.mxu0 0.0
  %2166 = vmatprep.mubr.f32.mxu0 0.0
  %2167 = vmatmul.mubr.f32.gmra.mxu0 %v1603
  %v2168 = vpop.f32.mrf.mxu0
  %v2169 = vadd.f32 %v2098, %v2168
  %v2170 = vpop.f32.mrf.mxu0
  %v2171 = vadd.f32 %v2100, %v2170
  %2172 = vdwg.mxu0
  %2173 = vmatprep.subr.mxu0 %v278
  %2174 = vmatpush1.msra.mxu0 %v277
  %2175 = vmatprep.subr.mxu0 %v262
  %2176 = vmatpush1.msra.mxu0 %v261
  %2177 = vmatprep.subr.mxu0 %v246
  %2178 = vmatpush1.msra.mxu0 %v245
  %2179 = vmatprep.subr.mxu0 %v230
  %2180 = vmatpush1.msra.mxu0 %v229
  %2181 = vmatprep.subr.mxu0 %v214
  %2182 = vmatpush1.msra.mxu0 %v213
  %2183 = vmatprep.subr.mxu0 %v198
  %2184 = vmatpush1.msra.mxu0 %v197
  %2185 = vmatprep.subr.mxu0 %v182
  %2186 = vmatpush1.msra.mxu0 %v181
  %2187 = vmatprep.subr.mxu0 %v166
  %2188 = vmatpush1.msra.mxu0 %v165
  %2189 = vmatprep.subr.mxu0 %v150
  %2190 = vmatpush1.msra.mxu0 %v149
  %2191 = vmatprep.subr.mxu0 %v134
  %2192 = vmatpush1.msra.mxu0 %v133
  %2193 = vmatprep.subr.mxu0 %v118
  %2194 = vmatpush1.msra.mxu0 %v117
  %2195 = vmatprep.subr.mxu0 %v102
  %2196 = vmatpush1.msra.mxu0 %v101
  %2197 = vmatprep.subr.mxu0 %v86
  %2198 = vmatpush1.msra.mxu0 %v85
  %2199 = vmatprep.subr.mxu0 %v70
  %2200 = vmatpush1.msra.mxu0 %v69
  %2201 = vmatprep.subr.mxu0 %v54
  %2202 = vmatpush1.msra.mxu0 %v53
  %2203 = vmatprep.subr.mxu0 %v38
  %2204 = vmatpush1.msra.mxu0 %v37
  %2205 = vmatprep.subr.mxu0 %v534
  %2206 = vmatpush2.msra.mxu0 %v533
  %2207 = vmatprep.subr.mxu0 %v518
  %2208 = vmatpush2.msra.mxu0 %v517
  %2209 = vmatprep.subr.mxu0 %v502
  %2210 = vmatpush2.msra.mxu0 %v501
  %2211 = vmatprep.subr.mxu0 %v486
  %2212 = vmatpush2.msra.mxu0 %v485
  %2213 = vmatprep.subr.mxu0 %v470
  %2214 = vmatpush2.msra.mxu0 %v469
  %2215 = vmatprep.subr.mxu0 %v454
  %2216 = vmatpush2.msra.mxu0 %v453
  %2217 = vmatprep.subr.mxu0 %v438
  %2218 = vmatpush2.msra.mxu0 %v437
  %2219 = vmatprep.subr.mxu0 %v422
  %2220 = vmatpush2.msra.mxu0 %v421
  %2221 = vmatprep.subr.mxu0 %v406
  %2222 = vmatpush2.msra.mxu0 %v405
  %2223 = vmatprep.subr.mxu0 %v390
  %2224 = vmatpush2.msra.mxu0 %v389
  %2225 = vmatprep.subr.mxu0 %v374
  %2226 = vmatpush2.msra.mxu0 %v373
  %2227 = vmatprep.subr.mxu0 %v358
  %2228 = vmatpush2.msra.mxu0 %v357
  %2229 = vmatprep.subr.mxu0 %v342
  %2230 = vmatpush2.msra.mxu0 %v341
  %2231 = vmatprep.subr.mxu0 %v326
  %2232 = vmatpush2.msra.mxu0 %v325
  %2233 = vmatprep.subr.mxu0 %v310
  %2234 = vmatpush2.msra.mxu0 %v309
  %2235 = vmatprep.subr.mxu0 %v294
  %2236 = vmatpush2.msra.mxu0 %v293
  %2237 = vmatprep.mubr.f32.mxu0 %v27
  %2238 = vmatmul.mubr.f32.gmra.mxu0 %v26
  %v2239 = vpop.f32.mrf.mxu0
  %v2240 = vadd.f32 0.0, %v2239
  %v2241 = vpop.f32.mrf.mxu0
  %v2242 = vadd.f32 0.0, %v2241
  %2243 = vdwg.mxu0
  %2244 = vmatprep.subr.mxu0 %v790
  %2245 = vmatpush1.msra.mxu0 %v789
  %2246 = vmatprep.subr.mxu0 %v774
  %2247 = vmatpush1.msra.mxu0 %v773
  %2248 = vmatprep.subr.mxu0 %v758
  %2249 = vmatpush1.msra.mxu0 %v757
  %2250 = vmatprep.subr.mxu0 %v742
  %2251 = vmatpush1.msra.mxu0 %v741
  %2252 = vmatprep.subr.mxu0 %v726
  %2253 = vmatpush1.msra.mxu0 %v725
  %2254 = vmatprep.subr.mxu0 %v710
  %2255 = vmatpush1.msra.mxu0 %v709
  %2256 = vmatprep.subr.mxu0 %v694
  %2257 = vmatpush1.msra.mxu0 %v693
  %2258 = vmatprep.subr.mxu0 %v678
  %2259 = vmatpush1.msra.mxu0 %v677
  %2260 = vmatprep.subr.mxu0 %v662
  %2261 = vmatpush1.msra.mxu0 %v661
  %2262 = vmatprep.subr.mxu0 %v646
  %2263 = vmatpush1.msra.mxu0 %v645
  %2264 = vmatprep.subr.mxu0 %v630
  %2265 = vmatpush1.msra.mxu0 %v629
  %2266 = vmatprep.subr.mxu0 %v614
  %2267 = vmatpush1.msra.mxu0 %v613
  %2268 = vmatprep.subr.mxu0 %v598
  %2269 = vmatpush1.msra.mxu0 %v597
  %2270 = vmatprep.subr.mxu0 %v582
  %2271 = vmatpush1.msra.mxu0 %v581
  %2272 = vmatprep.subr.mxu0 %v566
  %2273 = vmatpush1.msra.mxu0 %v565
  %2274 = vmatprep.subr.mxu0 %v550
  %2275 = vmatpush1.msra.mxu0 %v549
  %2276 = vmatprep.subr.mxu0 %v1046
  %2277 = vmatpush2.msra.mxu0 %v1045
  %2278 = vmatprep.subr.mxu0 %v1030
  %2279 = vmatpush2.msra.mxu0 %v1029
  %2280 = vmatprep.subr.mxu0 %v1014
  %2281 = vmatpush2.msra.mxu0 %v1013
  %2282 = vmatprep.subr.mxu0 %v998
  %2283 = vmatpush2.msra.mxu0 %v997
  %2284 = vmatprep.subr.mxu0 %v982
  %2285 = vmatpush2.msra.mxu0 %v981
  %2286 = vmatprep.subr.mxu0 %v966
  %2287 = vmatpush2.msra.mxu0 %v965
  %2288 = vmatprep.subr.mxu0 %v950
  %2289 = vmatpush2.msra.mxu0 %v949
  %2290 = vmatprep.subr.mxu0 %v934
  %2291 = vmatpush2.msra.mxu0 %v933
  %2292 = vmatprep.subr.mxu0 %v918
  %2293 = vmatpush2.msra.mxu0 %v917
  %2294 = vmatprep.subr.mxu0 %v902
  %2295 = vmatpush2.msra.mxu0 %v901
  %2296 = vmatprep.subr.mxu0 %v886
  %2297 = vmatpush2.msra.mxu0 %v885
  %2298 = vmatprep.subr.mxu0 %v870
  %2299 = vmatpush2.msra.mxu0 %v869
  %2300 = vmatprep.subr.mxu0 %v854
  %2301 = vmatpush2.msra.mxu0 %v853
  %2302 = vmatprep.subr.mxu0 %v838
  %2303 = vmatpush2.msra.mxu0 %v837
  %2304 = vmatprep.subr.mxu0 %v822
  %2305 = vmatpush2.msra.mxu0 %v821
  %2306 = vmatprep.subr.mxu0 %v806
  %2307 = vmatpush2.msra.mxu0 %v805
  %2308 = vmatprep.mubr.f32.mxu0 %v29
  %2309 = vmatmul.mubr.f32.gmra.mxu0 %v28
  %v2310 = vpop.f32.mrf.mxu0
  %v2311 = vadd.f32 %v2240, %v2310
  %v2312 = vpop.f32.mrf.mxu0
  %v2313 = vadd.f32 %v2242, %v2312
  %2314 = vdwg.mxu0
  %2315 = vmatprep.subr.mxu0 %v1302
  %2316 = vmatpush1.msra.mxu0 %v1301
  %2317 = vmatprep.subr.mxu0 %v1286
  %2318 = vmatpush1.msra.mxu0 %v1285
  %2319 = vmatprep.subr.mxu0 %v1270
  %2320 = vmatpush1.msra.mxu0 %v1269
  %2321 = vmatprep.subr.mxu0 %v1254
  %2322 = vmatpush1.msra.mxu0 %v1253
  %2323 = vmatprep.subr.mxu0 %v1238
  %2324 = vmatpush1.msra.mxu0 %v1237
  %2325 = vmatprep.subr.mxu0 %v1222
  %2326 = vmatpush1.msra.mxu0 %v1221
  %2327 = vmatprep.subr.mxu0 %v1206
  %2328 = vmatpush1.msra.mxu0 %v1205
  %2329 = vmatprep.subr.mxu0 %v1190
  %2330 = vmatpush1.msra.mxu0 %v1189
  %2331 = vmatprep.subr.mxu0 %v1174
  %2332 = vmatpush1.msra.mxu0 %v1173
  %2333 = vmatprep.subr.mxu0 %v1158
  %2334 = vmatpush1.msra.mxu0 %v1157
  %2335 = vmatprep.subr.mxu0 %v1142
  %2336 = vmatpush1.msra.mxu0 %v1141
  %2337 = vmatprep.subr.mxu0 %v1126
  %2338 = vmatpush1.msra.mxu0 %v1125
  %2339 = vmatprep.subr.mxu0 %v1110
  %2340 = vmatpush1.msra.mxu0 %v1109
  %2341 = vmatprep.subr.mxu0 %v1094
  %2342 = vmatpush1.msra.mxu0 %v1093
  %2343 = vmatprep.subr.mxu0 %v1078
  %2344 = vmatpush1.msra.mxu0 %v1077
  %2345 = vmatprep.subr.mxu0 %v1062
  %2346 = vmatpush1.msra.mxu0 %v1061
  %2347 = vmatprep.subr.mxu0 %v1558
  %2348 = vmatpush2.msra.mxu0 %v1557
  %2349 = vmatprep.subr.mxu0 %v1542
  %2350 = vmatpush2.msra.mxu0 %v1541
  %2351 = vmatprep.subr.mxu0 %v1526
  %2352 = vmatpush2.msra.mxu0 %v1525
  %2353 = vmatprep.subr.mxu0 %v1510
  %2354 = vmatpush2.msra.mxu0 %v1509
  %2355 = vmatprep.subr.mxu0 %v1494
  %2356 = vmatpush2.msra.mxu0 %v1493
  %2357 = vmatprep.subr.mxu0 %v1478
  %2358 = vmatpush2.msra.mxu0 %v1477
  %2359 = vmatprep.subr.mxu0 %v1462
  %2360 = vmatpush2.msra.mxu0 %v1461
  %2361 = vmatprep.subr.mxu0 %v1446
  %2362 = vmatpush2.msra.mxu0 %v1445
  %2363 = vmatprep.subr.mxu0 %v1430
  %2364 = vmatpush2.msra.mxu0 %v1429
  %2365 = vmatprep.subr.mxu0 %v1414
  %2366 = vmatpush2.msra.mxu0 %v1413
  %2367 = vmatprep.subr.mxu0 %v1398
  %2368 = vmatpush2.msra.mxu0 %v1397
  %2369 = vmatprep.subr.mxu0 %v1382
  %2370 = vmatpush2.msra.mxu0 %v1381
  %2371 = vmatprep.subr.mxu0 %v1366
  %2372 = vmatpush2.msra.mxu0 %v1365
  %2373 = vmatprep.subr.mxu0 %v1350
  %2374 = vmatpush2.msra.mxu0 %v1349
  %2375 = vmatprep.subr.mxu0 %v1334
  %2376 = vmatpush2.msra.mxu0 %v1333
  %2377 = vmatprep.subr.mxu0 %v1318
  %2378 = vmatpush2.msra.mxu0 %v1317
  %2379 = vmatprep.mubr.f32.mxu0 %v31
  %2380 = vmatmul.mubr.f32.gmra.mxu0 %v30
  %v2381 = vpop.f32.mrf.mxu0
  %v2382 = vadd.f32 %v2311, %v2381
  %v2383 = vpop.f32.mrf.mxu0
  %v2384 = vadd.f32 %v2313, %v2383
  %2385 = vdwg.mxu0
  %2386 = vmatprep.subr.mxu0 0.0
  %2387 = vmatpush1.msra.mxu0 0.0
  %2388 = vmatprep.subr.mxu0 0.0
  %2389 = vmatpush1.msra.mxu0 0.0
  %2390 = vmatprep.subr.mxu0 0.0
  %2391 = vmatpush1.msra.mxu0 0.0
  %2392 = vmatprep.subr.mxu0 0.0
  %2393 = vmatpush1.msra.mxu0 0.0
  %2394 = vmatprep.subr.mxu0 0.0
  %2395 = vmatpush1.msra.mxu0 0.0
  %2396 = vmatprep.subr.mxu0 0.0
  %2397 = vmatpush1.msra.mxu0 0.0
  %2398 = vmatprep.subr.mxu0 0.0
  %2399 = vmatpush1.msra.mxu0 0.0
  %2400 = vmatprep.subr.mxu0 0.0
  %2401 = vmatpush1.msra.mxu0 0.0
  %2402 = vmatprep.subr.mxu0 0.0
  %2403 = vmatpush1.msra.mxu0 0.0
  %2404 = vmatprep.subr.mxu0 0.0
  %2405 = vmatpush1.msra.mxu0 0.0
  %2406 = vmatprep.subr.mxu0 0.0
  %2407 = vmatpush1.msra.mxu0 0.0
  %2408 = vmatprep.subr.mxu0 0.0
  %2409 = vmatpush1.msra.mxu0 0.0
  %2410 = vmatprep.subr.mxu0 0.0
  %2411 = vmatpush1.msra.mxu0 0.0
  %2412 = vmatprep.subr.mxu0 0.0
  %2413 = vmatpush1.msra.mxu0 0.0
  %2414 = vmatprep.subr.mxu0 %v1590
  %2415 = vmatpush1.msra.mxu0 %v1589
  %2416 = vmatprep.subr.mxu0 %v1574
  %2417 = vmatpush1.msra.mxu0 %v1573
  %2418 = vmatprep.subr.mxu0 0.0
  %2419 = vmatpush2.msra.mxu0 0.0
  %2420 = vmatprep.subr.mxu0 0.0
  %2421 = vmatpush2.msra.mxu0 0.0
  %2422 = vmatprep.subr.mxu0 0.0
  %2423 = vmatpush2.msra.mxu0 0.0
  %2424 = vmatprep.subr.mxu0 0.0
  %2425 = vmatpush2.msra.mxu0 0.0
  %2426 = vmatprep.subr.mxu0 0.0
  %2427 = vmatpush2.msra.mxu0 0.0
  %2428 = vmatprep.subr.mxu0 0.0
  %2429 = vmatpush2.msra.mxu0 0.0
  %2430 = vmatprep.subr.mxu0 0.0
  %2431 = vmatpush2.msra.mxu0 0.0
  %2432 = vmatprep.subr.mxu0 0.0
  %2433 = vmatpush2.msra.mxu0 0.0
  %2434 = vmatprep.subr.mxu0 0.0
  %2435 = vmatpush2.msra.mxu0 0.0
  %2436 = vmatprep.subr.mxu0 0.0
  %2437 = vmatpush2.msra.mxu0 0.0
  %2438 = vmatprep.subr.mxu0 0.0
  %2439 = vmatpush2.msra.mxu0 0.0
  %2440 = vmatprep.subr.mxu0 0.0
  %2441 = vmatpush2.msra.mxu0 0.0
  %2442 = vmatprep.subr.mxu0 0.0
  %2443 = vmatpush2.msra.mxu0 0.0
  %2444 = vmatprep.subr.mxu0 0.0
  %2445 = vmatpush2.msra.mxu0 0.0
  %2446 = vmatprep.subr.mxu0 0.0
  %2447 = vmatpush2.msra.mxu0 0.0
  %2448 = vmatprep.subr.mxu0 0.0
  %2449 = vmatpush2.msra.mxu0 0.0
  %2450 = vmatprep.mubr.f32.mxu0 0.0
  %2451 = vmatmul.mubr.f32.gmra.mxu0 %v1603
  %v2452 = vpop.f32.mrf.mxu0
  %v2453 = vadd.f32 %v2382, %v2452
  %v2454 = vpop.f32.mrf.mxu0
  %v2455 = vadd.f32 %v2384, %v2454
  %2456 = vdwg.mxu0
  %2457 = vmatprep.subr.mxu0 %v280
  %2458 = vmatpush1.msra.mxu0 %v279
  %2459 = vmatprep.subr.mxu0 %v264
  %2460 = vmatpush1.msra.mxu0 %v263
  %2461 = vmatprep.subr.mxu0 %v248
  %2462 = vmatpush1.msra.mxu0 %v247
  %2463 = vmatprep.subr.mxu0 %v232
  %2464 = vmatpush1.msra.mxu0 %v231
  %2465 = vmatprep.subr.mxu0 %v216
  %2466 = vmatpush1.msra.mxu0 %v215
  %2467 = vmatprep.subr.mxu0 %v200
  %2468 = vmatpush1.msra.mxu0 %v199
  %2469 = vmatprep.subr.mxu0 %v184
  %2470 = vmatpush1.msra.mxu0 %v183
  %2471 = vmatprep.subr.mxu0 %v168
  %2472 = vmatpush1.msra.mxu0 %v167
  %2473 = vmatprep.subr.mxu0 %v152
  %2474 = vmatpush1.msra.mxu0 %v151
  %2475 = vmatprep.subr.mxu0 %v136
  %2476 = vmatpush1.msra.mxu0 %v135
  %2477 = vmatprep.subr.mxu0 %v120
  %2478 = vmatpush1.msra.mxu0 %v119
  %2479 = vmatprep.subr.mxu0 %v104
  %2480 = vmatpush1.msra.mxu0 %v103
  %2481 = vmatprep.subr.mxu0 %v88
  %2482 = vmatpush1.msra.mxu0 %v87
  %2483 = vmatprep.subr.mxu0 %v72
  %2484 = vmatpush1.msra.mxu0 %v71
  %2485 = vmatprep.subr.mxu0 %v56
  %2486 = vmatpush1.msra.mxu0 %v55
  %2487 = vmatprep.subr.mxu0 %v40
  %2488 = vmatpush1.msra.mxu0 %v39
  %2489 = vmatprep.subr.mxu0 %v536
  %2490 = vmatpush2.msra.mxu0 %v535
  %2491 = vmatprep.subr.mxu0 %v520
  %2492 = vmatpush2.msra.mxu0 %v519
  %2493 = vmatprep.subr.mxu0 %v504
  %2494 = vmatpush2.msra.mxu0 %v503
  %2495 = vmatprep.subr.mxu0 %v488
  %2496 = vmatpush2.msra.mxu0 %v487
  %2497 = vmatprep.subr.mxu0 %v472
  %2498 = vmatpush2.msra.mxu0 %v471
  %2499 = vmatprep.subr.mxu0 %v456
  %2500 = vmatpush2.msra.mxu0 %v455
  %2501 = vmatprep.subr.mxu0 %v440
  %2502 = vmatpush2.msra.mxu0 %v439
  %2503 = vmatprep.subr.mxu0 %v424
  %2504 = vmatpush2.msra.mxu0 %v423
  %2505 = vmatprep.subr.mxu0 %v408
  %2506 = vmatpush2.msra.mxu0 %v407
  %2507 = vmatprep.subr.mxu0 %v392
  %2508 = vmatpush2.msra.mxu0 %v391
  %2509 = vmatprep.subr.mxu0 %v376
  %2510 = vmatpush2.msra.mxu0 %v375
  %2511 = vmatprep.subr.mxu0 %v360
  %2512 = vmatpush2.msra.mxu0 %v359
  %2513 = vmatprep.subr.mxu0 %v344
  %2514 = vmatpush2.msra.mxu0 %v343
  %2515 = vmatprep.subr.mxu0 %v328
  %2516 = vmatpush2.msra.mxu0 %v327
  %2517 = vmatprep.subr.mxu0 %v312
  %2518 = vmatpush2.msra.mxu0 %v311
  %2519 = vmatprep.subr.mxu0 %v296
  %2520 = vmatpush2.msra.mxu0 %v295
  %2521 = vmatprep.mubr.f32.mxu0 %v27
  %2522 = vmatmul.mubr.f32.gmra.mxu0 %v26
  %v2523 = vpop.f32.mrf.mxu0
  %v2524 = vadd.f32 0.0, %v2523
  %v2525 = vpop.f32.mrf.mxu0
  %v2526 = vadd.f32 0.0, %v2525
  %2527 = vdwg.mxu0
  %2528 = vmatprep.subr.mxu0 %v792
  %2529 = vmatpush1.msra.mxu0 %v791
  %2530 = vmatprep.subr.mxu0 %v776
  %2531 = vmatpush1.msra.mxu0 %v775
  %2532 = vmatprep.subr.mxu0 %v760
  %2533 = vmatpush1.msra.mxu0 %v759
  %2534 = vmatprep.subr.mxu0 %v744
  %2535 = vmatpush1.msra.mxu0 %v743
  %2536 = vmatprep.subr.mxu0 %v728
  %2537 = vmatpush1.msra.mxu0 %v727
  %2538 = vmatprep.subr.mxu0 %v712
  %2539 = vmatpush1.msra.mxu0 %v711
  %2540 = vmatprep.subr.mxu0 %v696
  %2541 = vmatpush1.msra.mxu0 %v695
  %2542 = vmatprep.subr.mxu0 %v680
  %2543 = vmatpush1.msra.mxu0 %v679
  %2544 = vmatprep.subr.mxu0 %v664
  %2545 = vmatpush1.msra.mxu0 %v663
  %2546 = vmatprep.subr.mxu0 %v648
  %2547 = vmatpush1.msra.mxu0 %v647
  %2548 = vmatprep.subr.mxu0 %v632
  %2549 = vmatpush1.msra.mxu0 %v631
  %2550 = vmatprep.subr.mxu0 %v616
  %2551 = vmatpush1.msra.mxu0 %v615
  %2552 = vmatprep.subr.mxu0 %v600
  %2553 = vmatpush1.msra.mxu0 %v599
  %2554 = vmatprep.subr.mxu0 %v584
  %2555 = vmatpush1.msra.mxu0 %v583
  %2556 = vmatprep.subr.mxu0 %v568
  %2557 = vmatpush1.msra.mxu0 %v567
  %2558 = vmatprep.subr.mxu0 %v552
  %2559 = vmatpush1.msra.mxu0 %v551
  %2560 = vmatprep.subr.mxu0 %v1048
  %2561 = vmatpush2.msra.mxu0 %v1047
  %2562 = vmatprep.subr.mxu0 %v1032
  %2563 = vmatpush2.msra.mxu0 %v1031
  %2564 = vmatprep.subr.mxu0 %v1016
  %2565 = vmatpush2.msra.mxu0 %v1015
  %2566 = vmatprep.subr.mxu0 %v1000
  %2567 = vmatpush2.msra.mxu0 %v999
  %2568 = vmatprep.subr.mxu0 %v984
  %2569 = vmatpush2.msra.mxu0 %v983
  %2570 = vmatprep.subr.mxu0 %v968
  %2571 = vmatpush2.msra.mxu0 %v967
  %2572 = vmatprep.subr.mxu0 %v952
  %2573 = vmatpush2.msra.mxu0 %v951
  %2574 = vmatprep.subr.mxu0 %v936
  %2575 = vmatpush2.msra.mxu0 %v935
  %2576 = vmatprep.subr.mxu0 %v920
  %2577 = vmatpush2.msra.mxu0 %v919
  %2578 = vmatprep.subr.mxu0 %v904
  %2579 = vmatpush2.msra.mxu0 %v903
  %2580 = vmatprep.subr.mxu0 %v888
  %2581 = vmatpush2.msra.mxu0 %v887
  %2582 = vmatprep.subr.mxu0 %v872
  %2583 = vmatpush2.msra.mxu0 %v871
  %2584 = vmatprep.subr.mxu0 %v856
  %2585 = vmatpush2.msra.mxu0 %v855
  %2586 = vmatprep.subr.mxu0 %v840
  %2587 = vmatpush2.msra.mxu0 %v839
  %2588 = vmatprep.subr.mxu0 %v824
  %2589 = vmatpush2.msra.mxu0 %v823
  %2590 = vmatprep.subr.mxu0 %v808
  %2591 = vmatpush2.msra.mxu0 %v807
  %2592 = vmatprep.mubr.f32.mxu0 %v29
  %2593 = vmatmul.mubr.f32.gmra.mxu0 %v28
  %v2594 = vpop.f32.mrf.mxu0
  %v2595 = vadd.f32 %v2524, %v2594
  %v2596 = vpop.f32.mrf.mxu0
  %v2597 = vadd.f32 %v2526, %v2596
  %2598 = vdwg.mxu0
  %2599 = vmatprep.subr.mxu0 %v1304
  %2600 = vmatpush1.msra.mxu0 %v1303
  %2601 = vmatprep.subr.mxu0 %v1288
  %2602 = vmatpush1.msra.mxu0 %v1287
  %2603 = vmatprep.subr.mxu0 %v1272
  %2604 = vmatpush1.msra.mxu0 %v1271
  %2605 = vmatprep.subr.mxu0 %v1256
  %2606 = vmatpush1.msra.mxu0 %v1255
  %2607 = vmatprep.subr.mxu0 %v1240
  %2608 = vmatpush1.msra.mxu0 %v1239
  %2609 = vmatprep.subr.mxu0 %v1224
  %2610 = vmatpush1.msra.mxu0 %v1223
  %2611 = vmatprep.subr.mxu0 %v1208
  %2612 = vmatpush1.msra.mxu0 %v1207
  %2613 = vmatprep.subr.mxu0 %v1192
  %2614 = vmatpush1.msra.mxu0 %v1191
  %2615 = vmatprep.subr.mxu0 %v1176
  %2616 = vmatpush1.msra.mxu0 %v1175
  %2617 = vmatprep.subr.mxu0 %v1160
  %2618 = vmatpush1.msra.mxu0 %v1159
  %2619 = vmatprep.subr.mxu0 %v1144
  %2620 = vmatpush1.msra.mxu0 %v1143
  %2621 = vmatprep.subr.mxu0 %v1128
  %2622 = vmatpush1.msra.mxu0 %v1127
  %2623 = vmatprep.subr.mxu0 %v1112
  %2624 = vmatpush1.msra.mxu0 %v1111
  %2625 = vmatprep.subr.mxu0 %v1096
  %2626 = vmatpush1.msra.mxu0 %v1095
  %2627 = vmatprep.subr.mxu0 %v1080
  %2628 = vmatpush1.msra.mxu0 %v1079
  %2629 = vmatprep.subr.mxu0 %v1064
  %2630 = vmatpush1.msra.mxu0 %v1063
  %2631 = vmatprep.subr.mxu0 %v1560
  %2632 = vmatpush2.msra.mxu0 %v1559
  %2633 = vmatprep.subr.mxu0 %v1544
  %2634 = vmatpush2.msra.mxu0 %v1543
  %2635 = vmatprep.subr.mxu0 %v1528
  %2636 = vmatpush2.msra.mxu0 %v1527
  %2637 = vmatprep.subr.mxu0 %v1512
  %2638 = vmatpush2.msra.mxu0 %v1511
  %2639 = vmatprep.subr.mxu0 %v1496
  %2640 = vmatpush2.msra.mxu0 %v1495
  %2641 = vmatprep.subr.mxu0 %v1480
  %2642 = vmatpush2.msra.mxu0 %v1479
  %2643 = vmatprep.subr.mxu0 %v1464
  %2644 = vmatpush2.msra.mxu0 %v1463
  %2645 = vmatprep.subr.mxu0 %v1448
  %2646 = vmatpush2.msra.mxu0 %v1447
  %2647 = vmatprep.subr.mxu0 %v1432
  %2648 = vmatpush2.msra.mxu0 %v1431
  %2649 = vmatprep.subr.mxu0 %v1416
  %2650 = vmatpush2.msra.mxu0 %v1415
  %2651 = vmatprep.subr.mxu0 %v1400
  %2652 = vmatpush2.msra.mxu0 %v1399
  %2653 = vmatprep.subr.mxu0 %v1384
  %2654 = vmatpush2.msra.mxu0 %v1383
  %2655 = vmatprep.subr.mxu0 %v1368
  %2656 = vmatpush2.msra.mxu0 %v1367
  %2657 = vmatprep.subr.mxu0 %v1352
  %2658 = vmatpush2.msra.mxu0 %v1351
  %2659 = vmatprep.subr.mxu0 %v1336
  %2660 = vmatpush2.msra.mxu0 %v1335
  %2661 = vmatprep.subr.mxu0 %v1320
  %2662 = vmatpush2.msra.mxu0 %v1319
  %2663 = vmatprep.mubr.f32.mxu0 %v31
  %2664 = vmatmul.mubr.f32.gmra.mxu0 %v30
  %v2665 = vpop.f32.mrf.mxu0
  %v2666 = vadd.f32 %v2595, %v2665
  %v2667 = vpop.f32.mrf.mxu0
  %v2668 = vadd.f32 %v2597, %v2667
  %2669 = vdwg.mxu0
  %2670 = vmatprep.subr.mxu0 0.0
  %2671 = vmatpush1.msra.mxu0 0.0
  %2672 = vmatprep.subr.mxu0 0.0
  %2673 = vmatpush1.msra.mxu0 0.0
  %2674 = vmatprep.subr.mxu0 0.0
  %2675 = vmatpush1.msra.mxu0 0.0
  %2676 = vmatprep.subr.mxu0 0.0
  %2677 = vmatpush1.msra.mxu0 0.0
  %2678 = vmatprep.subr.mxu0 0.0
  %2679 = vmatpush1.msra.mxu0 0.0
  %2680 = vmatprep.subr.mxu0 0.0
  %2681 = vmatpush1.msra.mxu0 0.0
  %2682 = vmatprep.subr.mxu0 0.0
  %2683 = vmatpush1.msra.mxu0 0.0
  %2684 = vmatprep.subr.mxu0 0.0
  %2685 = vmatpush1.msra.mxu0 0.0
  %2686 = vmatprep.subr.mxu0 0.0
  %2687 = vmatpush1.msra.mxu0 0.0
  %2688 = vmatprep.subr.mxu0 0.0
  %2689 = vmatpush1.msra.mxu0 0.0
  %2690 = vmatprep.subr.mxu0 0.0
  %2691 = vmatpush1.msra.mxu0 0.0
  %2692 = vmatprep.subr.mxu0 0.0
  %2693 = vmatpush1.msra.mxu0 0.0
  %2694 = vmatprep.subr.mxu0 0.0
  %2695 = vmatpush1.msra.mxu0 0.0
  %2696 = vmatprep.subr.mxu0 0.0
  %2697 = vmatpush1.msra.mxu0 0.0
  %2698 = vmatprep.subr.mxu0 %v1592
  %2699 = vmatpush1.msra.mxu0 %v1591
  %2700 = vmatprep.subr.mxu0 %v1576
  %2701 = vmatpush1.msra.mxu0 %v1575
  %2702 = vmatprep.subr.mxu0 0.0
  %2703 = vmatpush2.msra.mxu0 0.0
  %2704 = vmatprep.subr.mxu0 0.0
  %2705 = vmatpush2.msra.mxu0 0.0
  %2706 = vmatprep.subr.mxu0 0.0
  %2707 = vmatpush2.msra.mxu0 0.0
  %2708 = vmatprep.subr.mxu0 0.0
  %2709 = vmatpush2.msra.mxu0 0.0
  %2710 = vmatprep.subr.mxu0 0.0
  %2711 = vmatpush2.msra.mxu0 0.0
  %2712 = vmatprep.subr.mxu0 0.0
  %2713 = vmatpush2.msra.mxu0 0.0
  %2714 = vmatprep.subr.mxu0 0.0
  %2715 = vmatpush2.msra.mxu0 0.0
  %2716 = vmatprep.subr.mxu0 0.0
  %2717 = vmatpush2.msra.mxu0 0.0
  %2718 = vmatprep.subr.mxu0 0.0
  %2719 = vmatpush2.msra.mxu0 0.0
  %2720 = vmatprep.subr.mxu0 0.0
  %2721 = vmatpush2.msra.mxu0 0.0
  %2722 = vmatprep.subr.mxu0 0.0
  %2723 = vmatpush2.msra.mxu0 0.0
  %2724 = vmatprep.subr.mxu0 0.0
  %2725 = vmatpush2.msra.mxu0 0.0
  %2726 = vmatprep.subr.mxu0 0.0
  %2727 = vmatpush2.msra.mxu0 0.0
  %2728 = vmatprep.subr.mxu0 0.0
  %2729 = vmatpush2.msra.mxu0 0.0
  %2730 = vmatprep.subr.mxu0 0.0
  %2731 = vmatpush2.msra.mxu0 0.0
  %2732 = vmatprep.subr.mxu0 0.0
  %2733 = vmatpush2.msra.mxu0 0.0
  %2734 = vmatprep.mubr.f32.mxu0 0.0
  %2735 = vmatmul.mubr.f32.gmra.mxu0 %v1603
  %v2736 = vpop.f32.mrf.mxu0
  %v2737 = vadd.f32 %v2666, %v2736
  %v2738 = vpop.f32.mrf.mxu0
  %v2739 = vadd.f32 %v2668, %v2738
  %2740 = vdwg.mxu0
  %2741 = vmatprep.subr.mxu0 %v282
  %2742 = vmatpush1.msra.mxu0 %v281
  %2743 = vmatprep.subr.mxu0 %v266
  %2744 = vmatpush1.msra.mxu0 %v265
  %2745 = vmatprep.subr.mxu0 %v250
  %2746 = vmatpush1.msra.mxu0 %v249
  %2747 = vmatprep.subr.mxu0 %v234
  %2748 = vmatpush1.msra.mxu0 %v233
  %2749 = vmatprep.subr.mxu0 %v218
  %2750 = vmatpush1.msra.mxu0 %v217
  %2751 = vmatprep.subr.mxu0 %v202
  %2752 = vmatpush1.msra.mxu0 %v201
  %2753 = vmatprep.subr.mxu0 %v186
  %2754 = vmatpush1.msra.mxu0 %v185
  %2755 = vmatprep.subr.mxu0 %v170
  %2756 = vmatpush1.msra.mxu0 %v169
  %2757 = vmatprep.subr.mxu0 %v154
  %2758 = vmatpush1.msra.mxu0 %v153
  %2759 = vmatprep.subr.mxu0 %v138
  %2760 = vmatpush1.msra.mxu0 %v137
  %2761 = vmatprep.subr.mxu0 %v122
  %2762 = vmatpush1.msra.mxu0 %v121
  %2763 = vmatprep.subr.mxu0 %v106
  %2764 = vmatpush1.msra.mxu0 %v105
  %2765 = vmatprep.subr.mxu0 %v90
  %2766 = vmatpush1.msra.mxu0 %v89
  %2767 = vmatprep.subr.mxu0 %v74
  %2768 = vmatpush1.msra.mxu0 %v73
  %2769 = vmatprep.subr.mxu0 %v58
  %2770 = vmatpush1.msra.mxu0 %v57
  %2771 = vmatprep.subr.mxu0 %v42
  %2772 = vmatpush1.msra.mxu0 %v41
  %2773 = vmatprep.subr.mxu0 %v538
  %2774 = vmatpush2.msra.mxu0 %v537
  %2775 = vmatprep.subr.mxu0 %v522
  %2776 = vmatpush2.msra.mxu0 %v521
  %2777 = vmatprep.subr.mxu0 %v506
  %2778 = vmatpush2.msra.mxu0 %v505
  %2779 = vmatprep.subr.mxu0 %v490
  %2780 = vmatpush2.msra.mxu0 %v489
  %2781 = vmatprep.subr.mxu0 %v474
  %2782 = vmatpush2.msra.mxu0 %v473
  %2783 = vmatprep.subr.mxu0 %v458
  %2784 = vmatpush2.msra.mxu0 %v457
  %2785 = vmatprep.subr.mxu0 %v442
  %2786 = vmatpush2.msra.mxu0 %v441
  %2787 = vmatprep.subr.mxu0 %v426
  %2788 = vmatpush2.msra.mxu0 %v425
  %2789 = vmatprep.subr.mxu0 %v410
  %2790 = vmatpush2.msra.mxu0 %v409
  %2791 = vmatprep.subr.mxu0 %v394
  %2792 = vmatpush2.msra.mxu0 %v393
  %2793 = vmatprep.subr.mxu0 %v378
  %2794 = vmatpush2.msra.mxu0 %v377
  %2795 = vmatprep.subr.mxu0 %v362
  %2796 = vmatpush2.msra.mxu0 %v361
  %2797 = vmatprep.subr.mxu0 %v346
  %2798 = vmatpush2.msra.mxu0 %v345
  %2799 = vmatprep.subr.mxu0 %v330
  %2800 = vmatpush2.msra.mxu0 %v329
  %2801 = vmatprep.subr.mxu0 %v314
  %2802 = vmatpush2.msra.mxu0 %v313
  %2803 = vmatprep.subr.mxu0 %v298
  %2804 = vmatpush2.msra.mxu0 %v297
  %2805 = vmatprep.mubr.f32.mxu0 %v27
  %2806 = vmatmul.mubr.f32.gmra.mxu0 %v26
  %v2807 = vpop.f32.mrf.mxu0
  %v2808 = vadd.f32 0.0, %v2807
  %v2809 = vpop.f32.mrf.mxu0
  %v2810 = vadd.f32 0.0, %v2809
  %2811 = vdwg.mxu0
  %2812 = vmatprep.subr.mxu0 %v794
  %2813 = vmatpush1.msra.mxu0 %v793
  %2814 = vmatprep.subr.mxu0 %v778
  %2815 = vmatpush1.msra.mxu0 %v777
  %2816 = vmatprep.subr.mxu0 %v762
  %2817 = vmatpush1.msra.mxu0 %v761
  %2818 = vmatprep.subr.mxu0 %v746
  %2819 = vmatpush1.msra.mxu0 %v745
  %2820 = vmatprep.subr.mxu0 %v730
  %2821 = vmatpush1.msra.mxu0 %v729
  %2822 = vmatprep.subr.mxu0 %v714
  %2823 = vmatpush1.msra.mxu0 %v713
  %2824 = vmatprep.subr.mxu0 %v698
  %2825 = vmatpush1.msra.mxu0 %v697
  %2826 = vmatprep.subr.mxu0 %v682
  %2827 = vmatpush1.msra.mxu0 %v681
  %2828 = vmatprep.subr.mxu0 %v666
  %2829 = vmatpush1.msra.mxu0 %v665
  %2830 = vmatprep.subr.mxu0 %v650
  %2831 = vmatpush1.msra.mxu0 %v649
  %2832 = vmatprep.subr.mxu0 %v634
  %2833 = vmatpush1.msra.mxu0 %v633
  %2834 = vmatprep.subr.mxu0 %v618
  %2835 = vmatpush1.msra.mxu0 %v617
  %2836 = vmatprep.subr.mxu0 %v602
  %2837 = vmatpush1.msra.mxu0 %v601
  %2838 = vmatprep.subr.mxu0 %v586
  %2839 = vmatpush1.msra.mxu0 %v585
  %2840 = vmatprep.subr.mxu0 %v570
  %2841 = vmatpush1.msra.mxu0 %v569
  %2842 = vmatprep.subr.mxu0 %v554
  %2843 = vmatpush1.msra.mxu0 %v553
  %2844 = vmatprep.subr.mxu0 %v1050
  %2845 = vmatpush2.msra.mxu0 %v1049
  %2846 = vmatprep.subr.mxu0 %v1034
  %2847 = vmatpush2.msra.mxu0 %v1033
  %2848 = vmatprep.subr.mxu0 %v1018
  %2849 = vmatpush2.msra.mxu0 %v1017
  %2850 = vmatprep.subr.mxu0 %v1002
  %2851 = vmatpush2.msra.mxu0 %v1001
  %2852 = vmatprep.subr.mxu0 %v986
  %2853 = vmatpush2.msra.mxu0 %v985
  %2854 = vmatprep.subr.mxu0 %v970
  %2855 = vmatpush2.msra.mxu0 %v969
  %2856 = vmatprep.subr.mxu0 %v954
  %2857 = vmatpush2.msra.mxu0 %v953
  %2858 = vmatprep.subr.mxu0 %v938
  %2859 = vmatpush2.msra.mxu0 %v937
  %2860 = vmatprep.subr.mxu0 %v922
  %2861 = vmatpush2.msra.mxu0 %v921
  %2862 = vmatprep.subr.mxu0 %v906
  %2863 = vmatpush2.msra.mxu0 %v905
  %2864 = vmatprep.subr.mxu0 %v890
  %2865 = vmatpush2.msra.mxu0 %v889
  %2866 = vmatprep.subr.mxu0 %v874
  %2867 = vmatpush2.msra.mxu0 %v873
  %2868 = vmatprep.subr.mxu0 %v858
  %2869 = vmatpush2.msra.mxu0 %v857
  %2870 = vmatprep.subr.mxu0 %v842
  %2871 = vmatpush2.msra.mxu0 %v841
  %2872 = vmatprep.subr.mxu0 %v826
  %2873 = vmatpush2.msra.mxu0 %v825
  %2874 = vmatprep.subr.mxu0 %v810
  %2875 = vmatpush2.msra.mxu0 %v809
  %2876 = vmatprep.mubr.f32.mxu0 %v29
  %2877 = vmatmul.mubr.f32.gmra.mxu0 %v28
  %v2878 = vpop.f32.mrf.mxu0
  %v2879 = vadd.f32 %v2808, %v2878
  %v2880 = vpop.f32.mrf.mxu0
  %v2881 = vadd.f32 %v2810, %v2880
  %2882 = vdwg.mxu0
  %2883 = vmatprep.subr.mxu0 %v1306
  %2884 = vmatpush1.msra.mxu0 %v1305
  %2885 = vmatprep.subr.mxu0 %v1290
  %2886 = vmatpush1.msra.mxu0 %v1289
  %2887 = vmatprep.subr.mxu0 %v1274
  %2888 = vmatpush1.msra.mxu0 %v1273
  %2889 = vmatprep.subr.mxu0 %v1258
  %2890 = vmatpush1.msra.mxu0 %v1257
  %2891 = vmatprep.subr.mxu0 %v1242
  %2892 = vmatpush1.msra.mxu0 %v1241
  %2893 = vmatprep.subr.mxu0 %v1226
  %2894 = vmatpush1.msra.mxu0 %v1225
  %2895 = vmatprep.subr.mxu0 %v1210
  %2896 = vmatpush1.msra.mxu0 %v1209
  %2897 = vmatprep.subr.mxu0 %v1194
  %2898 = vmatpush1.msra.mxu0 %v1193
  %2899 = vmatprep.subr.mxu0 %v1178
  %2900 = vmatpush1.msra.mxu0 %v1177
  %2901 = vmatprep.subr.mxu0 %v1162
  %2902 = vmatpush1.msra.mxu0 %v1161
  %2903 = vmatprep.subr.mxu0 %v1146
  %2904 = vmatpush1.msra.mxu0 %v1145
  %2905 = vmatprep.subr.mxu0 %v1130
  %2906 = vmatpush1.msra.mxu0 %v1129
  %2907 = vmatprep.subr.mxu0 %v1114
  %2908 = vmatpush1.msra.mxu0 %v1113
  %2909 = vmatprep.subr.mxu0 %v1098
  %2910 = vmatpush1.msra.mxu0 %v1097
  %2911 = vmatprep.subr.mxu0 %v1082
  %2912 = vmatpush1.msra.mxu0 %v1081
  %2913 = vmatprep.subr.mxu0 %v1066
  %2914 = vmatpush1.msra.mxu0 %v1065
  %2915 = vmatprep.subr.mxu0 %v1562
  %2916 = vmatpush2.msra.mxu0 %v1561
  %2917 = vmatprep.subr.mxu0 %v1546
  %2918 = vmatpush2.msra.mxu0 %v1545
  %2919 = vmatprep.subr.mxu0 %v1530
  %2920 = vmatpush2.msra.mxu0 %v1529
  %2921 = vmatprep.subr.mxu0 %v1514
  %2922 = vmatpush2.msra.mxu0 %v1513
  %2923 = vmatprep.subr.mxu0 %v1498
  %2924 = vmatpush2.msra.mxu0 %v1497
  %2925 = vmatprep.subr.mxu0 %v1482
  %2926 = vmatpush2.msra.mxu0 %v1481
  %2927 = vmatprep.subr.mxu0 %v1466
  %2928 = vmatpush2.msra.mxu0 %v1465
  %2929 = vmatprep.subr.mxu0 %v1450
  %2930 = vmatpush2.msra.mxu0 %v1449
  %2931 = vmatprep.subr.mxu0 %v1434
  %2932 = vmatpush2.msra.mxu0 %v1433
  %2933 = vmatprep.subr.mxu0 %v1418
  %2934 = vmatpush2.msra.mxu0 %v1417
  %2935 = vmatprep.subr.mxu0 %v1402
  %2936 = vmatpush2.msra.mxu0 %v1401
  %2937 = vmatprep.subr.mxu0 %v1386
  %2938 = vmatpush2.msra.mxu0 %v1385
  %2939 = vmatprep.subr.mxu0 %v1370
  %2940 = vmatpush2.msra.mxu0 %v1369
  %2941 = vmatprep.subr.mxu0 %v1354
  %2942 = vmatpush2.msra.mxu0 %v1353
  %2943 = vmatprep.subr.mxu0 %v1338
  %2944 = vmatpush2.msra.mxu0 %v1337
  %2945 = vmatprep.subr.mxu0 %v1322
  %2946 = vmatpush2.msra.mxu0 %v1321
  %2947 = vmatprep.mubr.f32.mxu0 %v31
  %2948 = vmatmul.mubr.f32.gmra.mxu0 %v30
  %v2949 = vpop.f32.mrf.mxu0
  %v2950 = vadd.f32 %v2879, %v2949
  %v2951 = vpop.f32.mrf.mxu0
  %v2952 = vadd.f32 %v2881, %v2951
  %2953 = vdwg.mxu0
  %2954 = vmatprep.subr.mxu0 0.0
  %2955 = vmatpush1.msra.mxu0 0.0
  %2956 = vmatprep.subr.mxu0 0.0
  %2957 = vmatpush1.msra.mxu0 0.0
  %2958 = vmatprep.subr.mxu0 0.0
  %2959 = vmatpush1.msra.mxu0 0.0
  %2960 = vmatprep.subr.mxu0 0.0
  %2961 = vmatpush1.msra.mxu0 0.0
  %2962 = vmatprep.subr.mxu0 0.0
  %2963 = vmatpush1.msra.mxu0 0.0
  %2964 = vmatprep.subr.mxu0 0.0
  %2965 = vmatpush1.msra.mxu0 0.0
  %2966 = vmatprep.subr.mxu0 0.0
  %2967 = vmatpush1.msra.mxu0 0.0
  %2968 = vmatprep.subr.mxu0 0.0
  %2969 = vmatpush1.msra.mxu0 0.0
  %2970 = vmatprep.subr.mxu0 0.0
  %2971 = vmatpush1.msra.mxu0 0.0
  %2972 = vmatprep.subr.mxu0 0.0
  %2973 = vmatpush1.msra.mxu0 0.0
  %2974 = vmatprep.subr.mxu0 0.0
  %2975 = vmatpush1.msra.mxu0 0.0
  %2976 = vmatprep.subr.mxu0 0.0
  %2977 = vmatpush1.msra.mxu0 0.0
  %2978 = vmatprep.subr.mxu0 0.0
  %2979 = vmatpush1.msra.mxu0 0.0
  %2980 = vmatprep.subr.mxu0 0.0
  %2981 = vmatpush1.msra.mxu0 0.0
  %2982 = vmatprep.subr.mxu0 %v1594
  %2983 = vmatpush1.msra.mxu0 %v1593
  %2984 = vmatprep.subr.mxu0 %v1578
  %2985 = vmatpush1.msra.mxu0 %v1577
  %2986 = vmatprep.subr.mxu0 0.0
  %2987 = vmatpush2.msra.mxu0 0.0
  %2988 = vmatprep.subr.mxu0 0.0
  %2989 = vmatpush2.msra.mxu0 0.0
  %2990 = vmatprep.subr.mxu0 0.0
  %2991 = vmatpush2.msra.mxu0 0.0
  %2992 = vmatprep.subr.mxu0 0.0
  %2993 = vmatpush2.msra.mxu0 0.0
  %2994 = vmatprep.subr.mxu0 0.0
  %2995 = vmatpush2.msra.mxu0 0.0
  %2996 = vmatprep.subr.mxu0 0.0
  %2997 = vmatpush2.msra.mxu0 0.0
  %2998 = vmatprep.subr.mxu0 0.0
  %2999 = vmatpush2.msra.mxu0 0.0
  %3000 = vmatprep.subr.mxu0 0.0
  %3001 = vmatpush2.msra.mxu0 0.0
  %3002 = vmatprep.subr.mxu0 0.0
  %3003 = vmatpush2.msra.mxu0 0.0
  %3004 = vmatprep.subr.mxu0 0.0
  %3005 = vmatpush2.msra.mxu0 0.0
  %3006 = vmatprep.subr.mxu0 0.0
  %3007 = vmatpush2.msra.mxu0 0.0
  %3008 = vmatprep.subr.mxu0 0.0
  %3009 = vmatpush2.msra.mxu0 0.0
  %3010 = vmatprep.subr.mxu0 0.0
  %3011 = vmatpush2.msra.mxu0 0.0
  %3012 = vmatprep.subr.mxu0 0.0
  %3013 = vmatpush2.msra.mxu0 0.0
  %3014 = vmatprep.subr.mxu0 0.0
  %3015 = vmatpush2.msra.mxu0 0.0
  %3016 = vmatprep.subr.mxu0 0.0
  %3017 = vmatpush2.msra.mxu0 0.0
  %3018 = vmatprep.mubr.f32.mxu0 0.0
  %3019 = vmatmul.mubr.f32.gmra.mxu0 %v1603
  %v3020 = vpop.f32.mrf.mxu0
  %v3021 = vadd.f32 %v2950, %v3020
  %v3022 = vpop.f32.mrf.mxu0
  %v3023 = vadd.f32 %v2952, %v3022
  %3024 = vdwg.mxu0
  %3025 = vmatprep.subr.mxu0 %v284
  %3026 = vmatpush1.msra.mxu0 %v283
  %3027 = vmatprep.subr.mxu0 %v268
  %3028 = vmatpush1.msra.mxu0 %v267
  %3029 = vmatprep.subr.mxu0 %v252
  %3030 = vmatpush1.msra.mxu0 %v251
  %3031 = vmatprep.subr.mxu0 %v236
  %3032 = vmatpush1.msra.mxu0 %v235
  %3033 = vmatprep.subr.mxu0 %v220
  %3034 = vmatpush1.msra.mxu0 %v219
  %3035 = vmatprep.subr.mxu0 %v204
  %3036 = vmatpush1.msra.mxu0 %v203
  %3037 = vmatprep.subr.mxu0 %v188
  %3038 = vmatpush1.msra.mxu0 %v187
  %3039 = vmatprep.subr.mxu0 %v172
  %3040 = vmatpush1.msra.mxu0 %v171
  %3041 = vmatprep.subr.mxu0 %v156
  %3042 = vmatpush1.msra.mxu0 %v155
  %3043 = vmatprep.subr.mxu0 %v140
  %3044 = vmatpush1.msra.mxu0 %v139
  %3045 = vmatprep.subr.mxu0 %v124
  %3046 = vmatpush1.msra.mxu0 %v123
  %3047 = vmatprep.subr.mxu0 %v108
  %3048 = vmatpush1.msra.mxu0 %v107
  %3049 = vmatprep.subr.mxu0 %v92
  %3050 = vmatpush1.msra.mxu0 %v91
  %3051 = vmatprep.subr.mxu0 %v76
  %3052 = vmatpush1.msra.mxu0 %v75
  %3053 = vmatprep.subr.mxu0 %v60
  %3054 = vmatpush1.msra.mxu0 %v59
  %3055 = vmatprep.subr.mxu0 %v44
  %3056 = vmatpush1.msra.mxu0 %v43
  %3057 = vmatprep.subr.mxu0 %v540
  %3058 = vmatpush2.msra.mxu0 %v539
  %3059 = vmatprep.subr.mxu0 %v524
  %3060 = vmatpush2.msra.mxu0 %v523
  %3061 = vmatprep.subr.mxu0 %v508
  %3062 = vmatpush2.msra.mxu0 %v507
  %3063 = vmatprep.subr.mxu0 %v492
  %3064 = vmatpush2.msra.mxu0 %v491
  %3065 = vmatprep.subr.mxu0 %v476
  %3066 = vmatpush2.msra.mxu0 %v475
  %3067 = vmatprep.subr.mxu0 %v460
  %3068 = vmatpush2.msra.mxu0 %v459
  %3069 = vmatprep.subr.mxu0 %v444
  %3070 = vmatpush2.msra.mxu0 %v443
  %3071 = vmatprep.subr.mxu0 %v428
  %3072 = vmatpush2.msra.mxu0 %v427
  %3073 = vmatprep.subr.mxu0 %v412
  %3074 = vmatpush2.msra.mxu0 %v411
  %3075 = vmatprep.subr.mxu0 %v396
  %3076 = vmatpush2.msra.mxu0 %v395
  %3077 = vmatprep.subr.mxu0 %v380
  %3078 = vmatpush2.msra.mxu0 %v379
  %3079 = vmatprep.subr.mxu0 %v364
  %3080 = vmatpush2.msra.mxu0 %v363
  %3081 = vmatprep.subr.mxu0 %v348
  %3082 = vmatpush2.msra.mxu0 %v347
  %3083 = vmatprep.subr.mxu0 %v332
  %3084 = vmatpush2.msra.mxu0 %v331
  %3085 = vmatprep.subr.mxu0 %v316
  %3086 = vmatpush2.msra.mxu0 %v315
  %3087 = vmatprep.subr.mxu0 %v300
  %3088 = vmatpush2.msra.mxu0 %v299
  %3089 = vmatprep.mubr.f32.mxu0 %v27
  %3090 = vmatmul.mubr.f32.gmra.mxu0 %v26
  %v3091 = vpop.f32.mrf.mxu0
  %v3092 = vadd.f32 0.0, %v3091
  %v3093 = vpop.f32.mrf.mxu0
  %v3094 = vadd.f32 0.0, %v3093
  %3095 = vdwg.mxu0
  %3096 = vmatprep.subr.mxu0 %v796
  %3097 = vmatpush1.msra.mxu0 %v795
  %3098 = vmatprep.subr.mxu0 %v780
  %3099 = vmatpush1.msra.mxu0 %v779
  %3100 = vmatprep.subr.mxu0 %v764
  %3101 = vmatpush1.msra.mxu0 %v763
  %3102 = vmatprep.subr.mxu0 %v748
  %3103 = vmatpush1.msra.mxu0 %v747
  %3104 = vmatprep.subr.mxu0 %v732
  %3105 = vmatpush1.msra.mxu0 %v731
  %3106 = vmatprep.subr.mxu0 %v716
  %3107 = vmatpush1.msra.mxu0 %v715
  %3108 = vmatprep.subr.mxu0 %v700
  %3109 = vmatpush1.msra.mxu0 %v699
  %3110 = vmatprep.subr.mxu0 %v684
  %3111 = vmatpush1.msra.mxu0 %v683
  %3112 = vmatprep.subr.mxu0 %v668
  %3113 = vmatpush1.msra.mxu0 %v667
  %3114 = vmatprep.subr.mxu0 %v652
  %3115 = vmatpush1.msra.mxu0 %v651
  %3116 = vmatprep.subr.mxu0 %v636
  %3117 = vmatpush1.msra.mxu0 %v635
  %3118 = vmatprep.subr.mxu0 %v620
  %3119 = vmatpush1.msra.mxu0 %v619
  %3120 = vmatprep.subr.mxu0 %v604
  %3121 = vmatpush1.msra.mxu0 %v603
  %3122 = vmatprep.subr.mxu0 %v588
  %3123 = vmatpush1.msra.mxu0 %v587
  %3124 = vmatprep.subr.mxu0 %v572
  %3125 = vmatpush1.msra.mxu0 %v571
  %3126 = vmatprep.subr.mxu0 %v556
  %3127 = vmatpush1.msra.mxu0 %v555
  %3128 = vmatprep.subr.mxu0 %v1052
  %3129 = vmatpush2.msra.mxu0 %v1051
  %3130 = vmatprep.subr.mxu0 %v1036
  %3131 = vmatpush2.msra.mxu0 %v1035
  %3132 = vmatprep.subr.mxu0 %v1020
  %3133 = vmatpush2.msra.mxu0 %v1019
  %3134 = vmatprep.subr.mxu0 %v1004
  %3135 = vmatpush2.msra.mxu0 %v1003
  %3136 = vmatprep.subr.mxu0 %v988
  %3137 = vmatpush2.msra.mxu0 %v987
  %3138 = vmatprep.subr.mxu0 %v972
  %3139 = vmatpush2.msra.mxu0 %v971
  %3140 = vmatprep.subr.mxu0 %v956
  %3141 = vmatpush2.msra.mxu0 %v955
  %3142 = vmatprep.subr.mxu0 %v940
  %3143 = vmatpush2.msra.mxu0 %v939
  %3144 = vmatprep.subr.mxu0 %v924
  %3145 = vmatpush2.msra.mxu0 %v923
  %3146 = vmatprep.subr.mxu0 %v908
  %3147 = vmatpush2.msra.mxu0 %v907
  %3148 = vmatprep.subr.mxu0 %v892
  %3149 = vmatpush2.msra.mxu0 %v891
  %3150 = vmatprep.subr.mxu0 %v876
  %3151 = vmatpush2.msra.mxu0 %v875
  %3152 = vmatprep.subr.mxu0 %v860
  %3153 = vmatpush2.msra.mxu0 %v859
  %3154 = vmatprep.subr.mxu0 %v844
  %3155 = vmatpush2.msra.mxu0 %v843
  %3156 = vmatprep.subr.mxu0 %v828
  %3157 = vmatpush2.msra.mxu0 %v827
  %3158 = vmatprep.subr.mxu0 %v812
  %3159 = vmatpush2.msra.mxu0 %v811
  %3160 = vmatprep.mubr.f32.mxu0 %v29
  %3161 = vmatmul.mubr.f32.gmra.mxu0 %v28
  %v3162 = vpop.f32.mrf.mxu0
  %v3163 = vadd.f32 %v3092, %v3162
  %v3164 = vpop.f32.mrf.mxu0
  %v3165 = vadd.f32 %v3094, %v3164
  %3166 = vdwg.mxu0
  %3167 = vmatprep.subr.mxu0 %v1308
  %3168 = vmatpush1.msra.mxu0 %v1307
  %3169 = vmatprep.subr.mxu0 %v1292
  %3170 = vmatpush1.msra.mxu0 %v1291
  %3171 = vmatprep.subr.mxu0 %v1276
  %3172 = vmatpush1.msra.mxu0 %v1275
  %3173 = vmatprep.subr.mxu0 %v1260
  %3174 = vmatpush1.msra.mxu0 %v1259
  %3175 = vmatprep.subr.mxu0 %v1244
  %3176 = vmatpush1.msra.mxu0 %v1243
  %3177 = vmatprep.subr.mxu0 %v1228
  %3178 = vmatpush1.msra.mxu0 %v1227
  %3179 = vmatprep.subr.mxu0 %v1212
  %3180 = vmatpush1.msra.mxu0 %v1211
  %3181 = vmatprep.subr.mxu0 %v1196
  %3182 = vmatpush1.msra.mxu0 %v1195
  %3183 = vmatprep.subr.mxu0 %v1180
  %3184 = vmatpush1.msra.mxu0 %v1179
  %3185 = vmatprep.subr.mxu0 %v1164
  %3186 = vmatpush1.msra.mxu0 %v1163
  %3187 = vmatprep.subr.mxu0 %v1148
  %3188 = vmatpush1.msra.mxu0 %v1147
  %3189 = vmatprep.subr.mxu0 %v1132
  %3190 = vmatpush1.msra.mxu0 %v1131
  %3191 = vmatprep.subr.mxu0 %v1116
  %3192 = vmatpush1.msra.mxu0 %v1115
  %3193 = vmatprep.subr.mxu0 %v1100
  %3194 = vmatpush1.msra.mxu0 %v1099
  %3195 = vmatprep.subr.mxu0 %v1084
  %3196 = vmatpush1.msra.mxu0 %v1083
  %3197 = vmatprep.subr.mxu0 %v1068
  %3198 = vmatpush1.msra.mxu0 %v1067
  %3199 = vmatprep.subr.mxu0 %v1564
  %3200 = vmatpush2.msra.mxu0 %v1563
  %3201 = vmatprep.subr.mxu0 %v1548
  %3202 = vmatpush2.msra.mxu0 %v1547
  %3203 = vmatprep.subr.mxu0 %v1532
  %3204 = vmatpush2.msra.mxu0 %v1531
  %3205 = vmatprep.subr.mxu0 %v1516
  %3206 = vmatpush2.msra.mxu0 %v1515
  %3207 = vmatprep.subr.mxu0 %v1500
  %3208 = vmatpush2.msra.mxu0 %v1499
  %3209 = vmatprep.subr.mxu0 %v1484
  %3210 = vmatpush2.msra.mxu0 %v1483
  %3211 = vmatprep.subr.mxu0 %v1468
  %3212 = vmatpush2.msra.mxu0 %v1467
  %3213 = vmatprep.subr.mxu0 %v1452
  %3214 = vmatpush2.msra.mxu0 %v1451
  %3215 = vmatprep.subr.mxu0 %v1436
  %3216 = vmatpush2.msra.mxu0 %v1435
  %3217 = vmatprep.subr.mxu0 %v1420
  %3218 = vmatpush2.msra.mxu0 %v1419
  %3219 = vmatprep.subr.mxu0 %v1404
  %3220 = vmatpush2.msra.mxu0 %v1403
  %3221 = vmatprep.subr.mxu0 %v1388
  %3222 = vmatpush2.msra.mxu0 %v1387
  %3223 = vmatprep.subr.mxu0 %v1372
  %3224 = vmatpush2.msra.mxu0 %v1371
  %3225 = vmatprep.subr.mxu0 %v1356
  %3226 = vmatpush2.msra.mxu0 %v1355
  %3227 = vmatprep.subr.mxu0 %v1340
  %3228 = vmatpush2.msra.mxu0 %v1339
  %3229 = vmatprep.subr.mxu0 %v1324
  %3230 = vmatpush2.msra.mxu0 %v1323
  %3231 = vmatprep.mubr.f32.mxu0 %v31
  %3232 = vmatmul.mubr.f32.gmra.mxu0 %v30
  %v3233 = vpop.f32.mrf.mxu0
  %v3234 = vadd.f32 %v3163, %v3233
  %v3235 = vpop.f32.mrf.mxu0
  %v3236 = vadd.f32 %v3165, %v3235
  %3237 = vdwg.mxu0
  %3238 = vmatprep.subr.mxu0 0.0
  %3239 = vmatpush1.msra.mxu0 0.0
  %3240 = vmatprep.subr.mxu0 0.0
  %3241 = vmatpush1.msra.mxu0 0.0
  %3242 = vmatprep.subr.mxu0 0.0
  %3243 = vmatpush1.msra.mxu0 0.0
  %3244 = vmatprep.subr.mxu0 0.0
  %3245 = vmatpush1.msra.mxu0 0.0
  %3246 = vmatprep.subr.mxu0 0.0
  %3247 = vmatpush1.msra.mxu0 0.0
  %3248 = vmatprep.subr.mxu0 0.0
  %3249 = vmatpush1.msra.mxu0 0.0
  %3250 = vmatprep.subr.mxu0 0.0
  %3251 = vmatpush1.msra.mxu0 0.0
  %3252 = vmatprep.subr.mxu0 0.0
  %3253 = vmatpush1.msra.mxu0 0.0
  %3254 = vmatprep.subr.mxu0 0.0
  %3255 = vmatpush1.msra.mxu0 0.0
  %3256 = vmatprep.subr.mxu0 0.0
  %3257 = vmatpush1.msra.mxu0 0.0
  %3258 = vmatprep.subr.mxu0 0.0
  %3259 = vmatpush1.msra.mxu0 0.0
  %3260 = vmatprep.subr.mxu0 0.0
  %3261 = vmatpush1.msra.mxu0 0.0
  %3262 = vmatprep.subr.mxu0 0.0
  %3263 = vmatpush1.msra.mxu0 0.0
  %3264 = vmatprep.subr.mxu0 0.0
  %3265 = vmatpush1.msra.mxu0 0.0
  %3266 = vmatprep.subr.mxu0 %v1596
  %3267 = vmatpush1.msra.mxu0 %v1595
  %3268 = vmatprep.subr.mxu0 %v1580
  %3269 = vmatpush1.msra.mxu0 %v1579
  %3270 = vmatprep.subr.mxu0 0.0
  %3271 = vmatpush2.msra.mxu0 0.0
  %3272 = vmatprep.subr.mxu0 0.0
  %3273 = vmatpush2.msra.mxu0 0.0
  %3274 = vmatprep.subr.mxu0 0.0
  %3275 = vmatpush2.msra.mxu0 0.0
  %3276 = vmatprep.subr.mxu0 0.0
  %3277 = vmatpush2.msra.mxu0 0.0
  %3278 = vmatprep.subr.mxu0 0.0
  %3279 = vmatpush2.msra.mxu0 0.0
  %3280 = vmatprep.subr.mxu0 0.0
  %3281 = vmatpush2.msra.mxu0 0.0
  %3282 = vmatprep.subr.mxu0 0.0
  %3283 = vmatpush2.msra.mxu0 0.0
  %3284 = vmatprep.subr.mxu0 0.0
  %3285 = vmatpush2.msra.mxu0 0.0
  %3286 = vmatprep.subr.mxu0 0.0
  %3287 = vmatpush2.msra.mxu0 0.0
  %3288 = vmatprep.subr.mxu0 0.0
  %3289 = vmatpush2.msra.mxu0 0.0
  %3290 = vmatprep.subr.mxu0 0.0
  %3291 = vmatpush2.msra.mxu0 0.0
  %3292 = vmatprep.subr.mxu0 0.0
  %3293 = vmatpush2.msra.mxu0 0.0
  %3294 = vmatprep.subr.mxu0 0.0
  %3295 = vmatpush2.msra.mxu0 0.0
  %3296 = vmatprep.subr.mxu0 0.0
  %3297 = vmatpush2.msra.mxu0 0.0
  %3298 = vmatprep.subr.mxu0 0.0
  %3299 = vmatpush2.msra.mxu0 0.0
  %3300 = vmatprep.subr.mxu0 0.0
  %3301 = vmatpush2.msra.mxu0 0.0
  %3302 = vmatprep.mubr.f32.mxu0 0.0
  %3303 = vmatmul.mubr.f32.gmra.mxu0 %v1603
  %v3304 = vpop.f32.mrf.mxu0
  %v3305 = vadd.f32 %v3234, %v3304
  %v3306 = vpop.f32.mrf.mxu0
  %v3307 = vadd.f32 %v3236, %v3306
  %3308 = vdwg.mxu0
  %3309 = vmatprep.subr.mxu0 %v286
  %3310 = vmatpush1.msra.mxu0 %v285
  %3311 = vmatprep.subr.mxu0 %v270
  %3312 = vmatpush1.msra.mxu0 %v269
  %3313 = vmatprep.subr.mxu0 %v254
  %3314 = vmatpush1.msra.mxu0 %v253
  %3315 = vmatprep.subr.mxu0 %v238
  %3316 = vmatpush1.msra.mxu0 %v237
  %3317 = vmatprep.subr.mxu0 %v222
  %3318 = vmatpush1.msra.mxu0 %v221
  %3319 = vmatprep.subr.mxu0 %v206
  %3320 = vmatpush1.msra.mxu0 %v205
  %3321 = vmatprep.subr.mxu0 %v190
  %3322 = vmatpush1.msra.mxu0 %v189
  %3323 = vmatprep.subr.mxu0 %v174
  %3324 = vmatpush1.msra.mxu0 %v173
  %3325 = vmatprep.subr.mxu0 %v158
  %3326 = vmatpush1.msra.mxu0 %v157
  %3327 = vmatprep.subr.mxu0 %v142
  %3328 = vmatpush1.msra.mxu0 %v141
  %3329 = vmatprep.subr.mxu0 %v126
  %3330 = vmatpush1.msra.mxu0 %v125
  %3331 = vmatprep.subr.mxu0 %v110
  %3332 = vmatpush1.msra.mxu0 %v109
  %3333 = vmatprep.subr.mxu0 %v94
  %3334 = vmatpush1.msra.mxu0 %v93
  %3335 = vmatprep.subr.mxu0 %v78
  %3336 = vmatpush1.msra.mxu0 %v77
  %3337 = vmatprep.subr.mxu0 %v62
  %3338 = vmatpush1.msra.mxu0 %v61
  %3339 = vmatprep.subr.mxu0 %v46
  %3340 = vmatpush1.msra.mxu0 %v45
  %3341 = vmatprep.subr.mxu0 %v542
  %3342 = vmatpush2.msra.mxu0 %v541
  %3343 = vmatprep.subr.mxu0 %v526
  %3344 = vmatpush2.msra.mxu0 %v525
  %3345 = vmatprep.subr.mxu0 %v510
  %3346 = vmatpush2.msra.mxu0 %v509
  %3347 = vmatprep.subr.mxu0 %v494
  %3348 = vmatpush2.msra.mxu0 %v493
  %3349 = vmatprep.subr.mxu0 %v478
  %3350 = vmatpush2.msra.mxu0 %v477
  %3351 = vmatprep.subr.mxu0 %v462
  %3352 = vmatpush2.msra.mxu0 %v461
  %3353 = vmatprep.subr.mxu0 %v446
  %3354 = vmatpush2.msra.mxu0 %v445
  %3355 = vmatprep.subr.mxu0 %v430
  %3356 = vmatpush2.msra.mxu0 %v429
  %3357 = vmatprep.subr.mxu0 %v414
  %3358 = vmatpush2.msra.mxu0 %v413
  %3359 = vmatprep.subr.mxu0 %v398
  %3360 = vmatpush2.msra.mxu0 %v397
  %3361 = vmatprep.subr.mxu0 %v382
  %3362 = vmatpush2.msra.mxu0 %v381
  %3363 = vmatprep.subr.mxu0 %v366
  %3364 = vmatpush2.msra.mxu0 %v365
  %3365 = vmatprep.subr.mxu0 %v350
  %3366 = vmatpush2.msra.mxu0 %v349
  %3367 = vmatprep.subr.mxu0 %v334
  %3368 = vmatpush2.msra.mxu0 %v333
  %3369 = vmatprep.subr.mxu0 %v318
  %3370 = vmatpush2.msra.mxu0 %v317
  %3371 = vmatprep.subr.mxu0 %v302
  %3372 = vmatpush2.msra.mxu0 %v301
  %3373 = vmatprep.mubr.f32.mxu0 %v27
  %3374 = vmatmul.mubr.f32.gmra.mxu0 %v26
  %v3375 = vpop.f32.mrf.mxu0
  %v3376 = vadd.f32 0.0, %v3375
  %v3377 = vpop.f32.mrf.mxu0
  %v3378 = vadd.f32 0.0, %v3377
  %3379 = vdwg.mxu0
  %3380 = vmatprep.subr.mxu0 %v798
  %3381 = vmatpush1.msra.mxu0 %v797
  %3382 = vmatprep.subr.mxu0 %v782
  %3383 = vmatpush1.msra.mxu0 %v781
  %3384 = vmatprep.subr.mxu0 %v766
  %3385 = vmatpush1.msra.mxu0 %v765
  %3386 = vmatprep.subr.mxu0 %v750
  %3387 = vmatpush1.msra.mxu0 %v749
  %3388 = vmatprep.subr.mxu0 %v734
  %3389 = vmatpush1.msra.mxu0 %v733
  %3390 = vmatprep.subr.mxu0 %v718
  %3391 = vmatpush1.msra.mxu0 %v717
  %3392 = vmatprep.subr.mxu0 %v702
  %3393 = vmatpush1.msra.mxu0 %v701
  %3394 = vmatprep.subr.mxu0 %v686
  %3395 = vmatpush1.msra.mxu0 %v685
  %3396 = vmatprep.subr.mxu0 %v670
  %3397 = vmatpush1.msra.mxu0 %v669
  %3398 = vmatprep.subr.mxu0 %v654
  %3399 = vmatpush1.msra.mxu0 %v653
  %3400 = vmatprep.subr.mxu0 %v638
  %3401 = vmatpush1.msra.mxu0 %v637
  %3402 = vmatprep.subr.mxu0 %v622
  %3403 = vmatpush1.msra.mxu0 %v621
  %3404 = vmatprep.subr.mxu0 %v606
  %3405 = vmatpush1.msra.mxu0 %v605
  %3406 = vmatprep.subr.mxu0 %v590
  %3407 = vmatpush1.msra.mxu0 %v589
  %3408 = vmatprep.subr.mxu0 %v574
  %3409 = vmatpush1.msra.mxu0 %v573
  %3410 = vmatprep.subr.mxu0 %v558
  %3411 = vmatpush1.msra.mxu0 %v557
  %3412 = vmatprep.subr.mxu0 %v1054
  %3413 = vmatpush2.msra.mxu0 %v1053
  %3414 = vmatprep.subr.mxu0 %v1038
  %3415 = vmatpush2.msra.mxu0 %v1037
  %3416 = vmatprep.subr.mxu0 %v1022
  %3417 = vmatpush2.msra.mxu0 %v1021
  %3418 = vmatprep.subr.mxu0 %v1006
  %3419 = vmatpush2.msra.mxu0 %v1005
  %3420 = vmatprep.subr.mxu0 %v990
  %3421 = vmatpush2.msra.mxu0 %v989
  %3422 = vmatprep.subr.mxu0 %v974
  %3423 = vmatpush2.msra.mxu0 %v973
  %3424 = vmatprep.subr.mxu0 %v958
  %3425 = vmatpush2.msra.mxu0 %v957
  %3426 = vmatprep.subr.mxu0 %v942
  %3427 = vmatpush2.msra.mxu0 %v941
  %3428 = vmatprep.subr.mxu0 %v926
  %3429 = vmatpush2.msra.mxu0 %v925
  %3430 = vmatprep.subr.mxu0 %v910
  %3431 = vmatpush2.msra.mxu0 %v909
  %3432 = vmatprep.subr.mxu0 %v894
  %3433 = vmatpush2.msra.mxu0 %v893
  %3434 = vmatprep.subr.mxu0 %v878
  %3435 = vmatpush2.msra.mxu0 %v877
  %3436 = vmatprep.subr.mxu0 %v862
  %3437 = vmatpush2.msra.mxu0 %v861
  %3438 = vmatprep.subr.mxu0 %v846
  %3439 = vmatpush2.msra.mxu0 %v845
  %3440 = vmatprep.subr.mxu0 %v830
  %3441 = vmatpush2.msra.mxu0 %v829
  %3442 = vmatprep.subr.mxu0 %v814
  %3443 = vmatpush2.msra.mxu0 %v813
  %3444 = vmatprep.mubr.f32.mxu0 %v29
  %3445 = vmatmul.mubr.f32.gmra.mxu0 %v28
  %v3446 = vpop.f32.mrf.mxu0
  %v3447 = vadd.f32 %v3376, %v3446
  %v3448 = vpop.f32.mrf.mxu0
  %v3449 = vadd.f32 %v3378, %v3448
  %3450 = vdwg.mxu0
  %3451 = vmatprep.subr.mxu0 %v1310
  %3452 = vmatpush1.msra.mxu0 %v1309
  %3453 = vmatprep.subr.mxu0 %v1294
  %3454 = vmatpush1.msra.mxu0 %v1293
  %3455 = vmatprep.subr.mxu0 %v1278
  %3456 = vmatpush1.msra.mxu0 %v1277
  %3457 = vmatprep.subr.mxu0 %v1262
  %3458 = vmatpush1.msra.mxu0 %v1261
  %3459 = vmatprep.subr.mxu0 %v1246
  %3460 = vmatpush1.msra.mxu0 %v1245
  %3461 = vmatprep.subr.mxu0 %v1230
  %3462 = vmatpush1.msra.mxu0 %v1229
  %3463 = vmatprep.subr.mxu0 %v1214
  %3464 = vmatpush1.msra.mxu0 %v1213
  %3465 = vmatprep.subr.mxu0 %v1198
  %3466 = vmatpush1.msra.mxu0 %v1197
  %3467 = vmatprep.subr.mxu0 %v1182
  %3468 = vmatpush1.msra.mxu0 %v1181
  %3469 = vmatprep.subr.mxu0 %v1166
  %3470 = vmatpush1.msra.mxu0 %v1165
  %3471 = vmatprep.subr.mxu0 %v1150
  %3472 = vmatpush1.msra.mxu0 %v1149
  %3473 = vmatprep.subr.mxu0 %v1134
  %3474 = vmatpush1.msra.mxu0 %v1133
  %3475 = vmatprep.subr.mxu0 %v1118
  %3476 = vmatpush1.msra.mxu0 %v1117
  %3477 = vmatprep.subr.mxu0 %v1102
  %3478 = vmatpush1.msra.mxu0 %v1101
  %3479 = vmatprep.subr.mxu0 %v1086
  %3480 = vmatpush1.msra.mxu0 %v1085
  %3481 = vmatprep.subr.mxu0 %v1070
  %3482 = vmatpush1.msra.mxu0 %v1069
  %3483 = vmatprep.subr.mxu0 %v1566
  %3484 = vmatpush2.msra.mxu0 %v1565
  %3485 = vmatprep.subr.mxu0 %v1550
  %3486 = vmatpush2.msra.mxu0 %v1549
  %3487 = vmatprep.subr.mxu0 %v1534
  %3488 = vmatpush2.msra.mxu0 %v1533
  %3489 = vmatprep.subr.mxu0 %v1518
  %3490 = vmatpush2.msra.mxu0 %v1517
  %3491 = vmatprep.subr.mxu0 %v1502
  %3492 = vmatpush2.msra.mxu0 %v1501
  %3493 = vmatprep.subr.mxu0 %v1486
  %3494 = vmatpush2.msra.mxu0 %v1485
  %3495 = vmatprep.subr.mxu0 %v1470
  %3496 = vmatpush2.msra.mxu0 %v1469
  %3497 = vmatprep.subr.mxu0 %v1454
  %3498 = vmatpush2.msra.mxu0 %v1453
  %3499 = vmatprep.subr.mxu0 %v1438
  %3500 = vmatpush2.msra.mxu0 %v1437
  %3501 = vmatprep.subr.mxu0 %v1422
  %3502 = vmatpush2.msra.mxu0 %v1421
  %3503 = vmatprep.subr.mxu0 %v1406
  %3504 = vmatpush2.msra.mxu0 %v1405
  %3505 = vmatprep.subr.mxu0 %v1390
  %3506 = vmatpush2.msra.mxu0 %v1389
  %3507 = vmatprep.subr.mxu0 %v1374
  %3508 = vmatpush2.msra.mxu0 %v1373
  %3509 = vmatprep.subr.mxu0 %v1358
  %3510 = vmatpush2.msra.mxu0 %v1357
  %3511 = vmatprep.subr.mxu0 %v1342
  %3512 = vmatpush2.msra.mxu0 %v1341
  %3513 = vmatprep.subr.mxu0 %v1326
  %3514 = vmatpush2.msra.mxu0 %v1325
  %3515 = vmatprep.mubr.f32.mxu0 %v31
  %3516 = vmatmul.mubr.f32.gmra.mxu0 %v30
  %v3517 = vpop.f32.mrf.mxu0
  %v3518 = vadd.f32 %v3447, %v3517
  %v3519 = vpop.f32.mrf.mxu0
  %v3520 = vadd.f32 %v3449, %v3519
  %3521 = vdwg.mxu0
  %3522 = vmatprep.subr.mxu0 0.0
  %3523 = vmatpush1.msra.mxu0 0.0
  %3524 = vmatprep.subr.mxu0 0.0
  %3525 = vmatpush1.msra.mxu0 0.0
  %3526 = vmatprep.subr.mxu0 0.0
  %3527 = vmatpush1.msra.mxu0 0.0
  %3528 = vmatprep.subr.mxu0 0.0
  %3529 = vmatpush1.msra.mxu0 0.0
  %3530 = vmatprep.subr.mxu0 0.0
  %3531 = vmatpush1.msra.mxu0 0.0
  %3532 = vmatprep.subr.mxu0 0.0
  %3533 = vmatpush1.msra.mxu0 0.0
  %3534 = vmatprep.subr.mxu0 0.0
  %3535 = vmatpush1.msra.mxu0 0.0
  %3536 = vmatprep.subr.mxu0 0.0
  %3537 = vmatpush1.msra.mxu0 0.0
  %3538 = vmatprep.subr.mxu0 0.0
  %3539 = vmatpush1.msra.mxu0 0.0
  %3540 = vmatprep.subr.mxu0 0.0
  %3541 = vmatpush1.msra.mxu0 0.0
  %3542 = vmatprep.subr.mxu0 0.0
  %3543 = vmatpush1.msra.mxu0 0.0
  %3544 = vmatprep.subr.mxu0 0.0
  %3545 = vmatpush1.msra.mxu0 0.0
  %3546 = vmatprep.subr.mxu0 0.0
  %3547 = vmatpush1.msra.mxu0 0.0
  %3548 = vmatprep.subr.mxu0 0.0
  %3549 = vmatpush1.msra.mxu0 0.0
  %3550 = vmatprep.subr.mxu0 %v1598
  %3551 = vmatpush1.msra.mxu0 %v1597
  %3552 = vmatprep.subr.mxu0 %v1582
  %3553 = vmatpush1.msra.mxu0 %v1581
  %3554 = vmatprep.subr.mxu0 0.0
  %3555 = vmatpush2.msra.mxu0 0.0
  %3556 = vmatprep.subr.mxu0 0.0
  %3557 = vmatpush2.msra.mxu0 0.0
  %3558 = vmatprep.subr.mxu0 0.0
  %3559 = vmatpush2.msra.mxu0 0.0
  %3560 = vmatprep.subr.mxu0 0.0
  %3561 = vmatpush2.msra.mxu0 0.0
  %3562 = vmatprep.subr.mxu0 0.0
  %3563 = vmatpush2.msra.mxu0 0.0
  %3564 = vmatprep.subr.mxu0 0.0
  %3565 = vmatpush2.msra.mxu0 0.0
  %3566 = vmatprep.subr.mxu0 0.0
  %3567 = vmatpush2.msra.mxu0 0.0
  %3568 = vmatprep.subr.mxu0 0.0
  %3569 = vmatpush2.msra.mxu0 0.0
  %3570 = vmatprep.subr.mxu0 0.0
  %3571 = vmatpush2.msra.mxu0 0.0
  %3572 = vmatprep.subr.mxu0 0.0
  %3573 = vmatpush2.msra.mxu0 0.0
  %3574 = vmatprep.subr.mxu0 0.0
  %3575 = vmatpush2.msra.mxu0 0.0
  %3576 = vmatprep.subr.mxu0 0.0
  %3577 = vmatpush2.msra.mxu0 0.0
  %3578 = vmatprep.subr.mxu0 0.0
  %3579 = vmatpush2.msra.mxu0 0.0
  %3580 = vmatprep.subr.mxu0 0.0
  %3581 = vmatpush2.msra.mxu0 0.0
  %3582 = vmatprep.subr.mxu0 0.0
  %3583 = vmatpush2.msra.mxu0 0.0
  %3584 = vmatprep.subr.mxu0 0.0
  %3585 = vmatpush2.msra.mxu0 0.0
  %3586 = vmatprep.mubr.f32.mxu0 0.0
  %3587 = vmatmul.mubr.f32.gmra.mxu0 %v1603
  %v3588 = vpop.f32.mrf.mxu0
  %v3589 = vadd.f32 %v3518, %v3588
  %v3590 = vpop.f32.mrf.mxu0
  %v3591 = vadd.f32 %v3520, %v3590
  %3592 = vdwg.mxu0
  %3593 = vmatprep.subr.mxu0 %v288
  %3594 = vmatpush1.msra.mxu0 %v287
  %3595 = vmatprep.subr.mxu0 %v272
  %3596 = vmatpush1.msra.mxu0 %v271
  %3597 = vmatprep.subr.mxu0 %v256
  %3598 = vmatpush1.msra.mxu0 %v255
  %3599 = vmatprep.subr.mxu0 %v240
  %3600 = vmatpush1.msra.mxu0 %v239
  %3601 = vmatprep.subr.mxu0 %v224
  %3602 = vmatpush1.msra.mxu0 %v223
  %3603 = vmatprep.subr.mxu0 %v208
  %3604 = vmatpush1.msra.mxu0 %v207
  %3605 = vmatprep.subr.mxu0 %v192
  %3606 = vmatpush1.msra.mxu0 %v191
  %3607 = vmatprep.subr.mxu0 %v176
  %3608 = vmatpush1.msra.mxu0 %v175
  %3609 = vmatprep.subr.mxu0 %v160
  %3610 = vmatpush1.msra.mxu0 %v159
  %3611 = vmatprep.subr.mxu0 %v144
  %3612 = vmatpush1.msra.mxu0 %v143
  %3613 = vmatprep.subr.mxu0 %v128
  %3614 = vmatpush1.msra.mxu0 %v127
  %3615 = vmatprep.subr.mxu0 %v112
  %3616 = vmatpush1.msra.mxu0 %v111
  %3617 = vmatprep.subr.mxu0 %v96
  %3618 = vmatpush1.msra.mxu0 %v95
  %3619 = vmatprep.subr.mxu0 %v80
  %3620 = vmatpush1.msra.mxu0 %v79
  %3621 = vmatprep.subr.mxu0 %v64
  %3622 = vmatpush1.msra.mxu0 %v63
  %3623 = vmatprep.subr.mxu0 %v48
  %3624 = vmatpush1.msra.mxu0 %v47
  %3625 = vmatprep.subr.mxu0 %v544
  %3626 = vmatpush2.msra.mxu0 %v543
  %3627 = vmatprep.subr.mxu0 %v528
  %3628 = vmatpush2.msra.mxu0 %v527
  %3629 = vmatprep.subr.mxu0 %v512
  %3630 = vmatpush2.msra.mxu0 %v511
  %3631 = vmatprep.subr.mxu0 %v496
  %3632 = vmatpush2.msra.mxu0 %v495
  %3633 = vmatprep.subr.mxu0 %v480
  %3634 = vmatpush2.msra.mxu0 %v479
  %3635 = vmatprep.subr.mxu0 %v464
  %3636 = vmatpush2.msra.mxu0 %v463
  %3637 = vmatprep.subr.mxu0 %v448
  %3638 = vmatpush2.msra.mxu0 %v447
  %3639 = vmatprep.subr.mxu0 %v432
  %3640 = vmatpush2.msra.mxu0 %v431
  %3641 = vmatprep.subr.mxu0 %v416
  %3642 = vmatpush2.msra.mxu0 %v415
  %3643 = vmatprep.subr.mxu0 %v400
  %3644 = vmatpush2.msra.mxu0 %v399
  %3645 = vmatprep.subr.mxu0 %v384
  %3646 = vmatpush2.msra.mxu0 %v383
  %3647 = vmatprep.subr.mxu0 %v368
  %3648 = vmatpush2.msra.mxu0 %v367
  %3649 = vmatprep.subr.mxu0 %v352
  %3650 = vmatpush2.msra.mxu0 %v351
  %3651 = vmatprep.subr.mxu0 %v336
  %3652 = vmatpush2.msra.mxu0 %v335
  %3653 = vmatprep.subr.mxu0 %v320
  %3654 = vmatpush2.msra.mxu0 %v319
  %3655 = vmatprep.subr.mxu0 %v304
  %3656 = vmatpush2.msra.mxu0 %v303
  %3657 = vmatprep.mubr.f32.mxu0 %v27
  %3658 = vmatmul.mubr.f32.gmra.mxu0 %v26
  %v3659 = vpop.f32.mrf.mxu0
  %v3660 = vadd.f32 0.0, %v3659
  %v3661 = vpop.f32.mrf.mxu0
  %v3662 = vadd.f32 0.0, %v3661
  %3663 = vdwg.mxu0
  %3664 = vmatprep.subr.mxu0 %v800
  %3665 = vmatpush1.msra.mxu0 %v799
  %3666 = vmatprep.subr.mxu0 %v784
  %3667 = vmatpush1.msra.mxu0 %v783
  %3668 = vmatprep.subr.mxu0 %v768
  %3669 = vmatpush1.msra.mxu0 %v767
  %3670 = vmatprep.subr.mxu0 %v752
  %3671 = vmatpush1.msra.mxu0 %v751
  %3672 = vmatprep.subr.mxu0 %v736
  %3673 = vmatpush1.msra.mxu0 %v735
  %3674 = vmatprep.subr.mxu0 %v720
  %3675 = vmatpush1.msra.mxu0 %v719
  %3676 = vmatprep.subr.mxu0 %v704
  %3677 = vmatpush1.msra.mxu0 %v703
  %3678 = vmatprep.subr.mxu0 %v688
  %3679 = vmatpush1.msra.mxu0 %v687
  %3680 = vmatprep.subr.mxu0 %v672
  %3681 = vmatpush1.msra.mxu0 %v671
  %3682 = vmatprep.subr.mxu0 %v656
  %3683 = vmatpush1.msra.mxu0 %v655
  %3684 = vmatprep.subr.mxu0 %v640
  %3685 = vmatpush1.msra.mxu0 %v639
  %3686 = vmatprep.subr.mxu0 %v624
  %3687 = vmatpush1.msra.mxu0 %v623
  %3688 = vmatprep.subr.mxu0 %v608
  %3689 = vmatpush1.msra.mxu0 %v607
  %3690 = vmatprep.subr.mxu0 %v592
  %3691 = vmatpush1.msra.mxu0 %v591
  %3692 = vmatprep.subr.mxu0 %v576
  %3693 = vmatpush1.msra.mxu0 %v575
  %3694 = vmatprep.subr.mxu0 %v560
  %3695 = vmatpush1.msra.mxu0 %v559
  %3696 = vmatprep.subr.mxu0 %v1056
  %3697 = vmatpush2.msra.mxu0 %v1055
  %3698 = vmatprep.subr.mxu0 %v1040
  %3699 = vmatpush2.msra.mxu0 %v1039
  %3700 = vmatprep.subr.mxu0 %v1024
  %3701 = vmatpush2.msra.mxu0 %v1023
  %3702 = vmatprep.subr.mxu0 %v1008
  %3703 = vmatpush2.msra.mxu0 %v1007
  %3704 = vmatprep.subr.mxu0 %v992
  %3705 = vmatpush2.msra.mxu0 %v991
  %3706 = vmatprep.subr.mxu0 %v976
  %3707 = vmatpush2.msra.mxu0 %v975
  %3708 = vmatprep.subr.mxu0 %v960
  %3709 = vmatpush2.msra.mxu0 %v959
  %3710 = vmatprep.subr.mxu0 %v944
  %3711 = vmatpush2.msra.mxu0 %v943
  %3712 = vmatprep.subr.mxu0 %v928
  %3713 = vmatpush2.msra.mxu0 %v927
  %3714 = vmatprep.subr.mxu0 %v912
  %3715 = vmatpush2.msra.mxu0 %v911
  %3716 = vmatprep.subr.mxu0 %v896
  %3717 = vmatpush2.msra.mxu0 %v895
  %3718 = vmatprep.subr.mxu0 %v880
  %3719 = vmatpush2.msra.mxu0 %v879
  %3720 = vmatprep.subr.mxu0 %v864
  %3721 = vmatpush2.msra.mxu0 %v863
  %3722 = vmatprep.subr.mxu0 %v848
  %3723 = vmatpush2.msra.mxu0 %v847
  %3724 = vmatprep.subr.mxu0 %v832
  %3725 = vmatpush2.msra.mxu0 %v831
  %3726 = vmatprep.subr.mxu0 %v816
  %3727 = vmatpush2.msra.mxu0 %v815
  %3728 = vmatprep.mubr.f32.mxu0 %v29
  %3729 = vmatmul.mubr.f32.gmra.mxu0 %v28
  %v3730 = vpop.f32.mrf.mxu0
  %v3731 = vadd.f32 %v3660, %v3730
  %v3732 = vpop.f32.mrf.mxu0
  %v3733 = vadd.f32 %v3662, %v3732
  %3734 = vdwg.mxu0
  %3735 = vmatprep.subr.mxu0 %v1312
  %3736 = vmatpush1.msra.mxu0 %v1311
  %3737 = vmatprep.subr.mxu0 %v1296
  %3738 = vmatpush1.msra.mxu0 %v1295
  %3739 = vmatprep.subr.mxu0 %v1280
  %3740 = vmatpush1.msra.mxu0 %v1279
  %3741 = vmatprep.subr.mxu0 %v1264
  %3742 = vmatpush1.msra.mxu0 %v1263
  %3743 = vmatprep.subr.mxu0 %v1248
  %3744 = vmatpush1.msra.mxu0 %v1247
  %3745 = vmatprep.subr.mxu0 %v1232
  %3746 = vmatpush1.msra.mxu0 %v1231
  %3747 = vmatprep.subr.mxu0 %v1216
  %3748 = vmatpush1.msra.mxu0 %v1215
  %3749 = vmatprep.subr.mxu0 %v1200
  %3750 = vmatpush1.msra.mxu0 %v1199
  %3751 = vmatprep.subr.mxu0 %v1184
  %3752 = vmatpush1.msra.mxu0 %v1183
  %3753 = vmatprep.subr.mxu0 %v1168
  %3754 = vmatpush1.msra.mxu0 %v1167
  %3755 = vmatprep.subr.mxu0 %v1152
  %3756 = vmatpush1.msra.mxu0 %v1151
  %3757 = vmatprep.subr.mxu0 %v1136
  %3758 = vmatpush1.msra.mxu0 %v1135
  %3759 = vmatprep.subr.mxu0 %v1120
  %3760 = vmatpush1.msra.mxu0 %v1119
  %3761 = vmatprep.subr.mxu0 %v1104
  %3762 = vmatpush1.msra.mxu0 %v1103
  %3763 = vmatprep.subr.mxu0 %v1088
  %3764 = vmatpush1.msra.mxu0 %v1087
  %3765 = vmatprep.subr.mxu0 %v1072
  %3766 = vmatpush1.msra.mxu0 %v1071
  %3767 = vmatprep.subr.mxu0 %v1568
  %3768 = vmatpush2.msra.mxu0 %v1567
  %3769 = vmatprep.subr.mxu0 %v1552
  %3770 = vmatpush2.msra.mxu0 %v1551
  %3771 = vmatprep.subr.mxu0 %v1536
  %3772 = vmatpush2.msra.mxu0 %v1535
  %3773 = vmatprep.subr.mxu0 %v1520
  %3774 = vmatpush2.msra.mxu0 %v1519
  %3775 = vmatprep.subr.mxu0 %v1504
  %3776 = vmatpush2.msra.mxu0 %v1503
  %3777 = vmatprep.subr.mxu0 %v1488
  %3778 = vmatpush2.msra.mxu0 %v1487
  %3779 = vmatprep.subr.mxu0 %v1472
  %3780 = vmatpush2.msra.mxu0 %v1471
  %3781 = vmatprep.subr.mxu0 %v1456
  %3782 = vmatpush2.msra.mxu0 %v1455
  %3783 = vmatprep.subr.mxu0 %v1440
  %3784 = vmatpush2.msra.mxu0 %v1439
  %3785 = vmatprep.subr.mxu0 %v1424
  %3786 = vmatpush2.msra.mxu0 %v1423
  %3787 = vmatprep.subr.mxu0 %v1408
  %3788 = vmatpush2.msra.mxu0 %v1407
  %3789 = vmatprep.subr.mxu0 %v1392
  %3790 = vmatpush2.msra.mxu0 %v1391
  %3791 = vmatprep.subr.mxu0 %v1376
  %3792 = vmatpush2.msra.mxu0 %v1375
  %3793 = vmatprep.subr.mxu0 %v1360
  %3794 = vmatpush2.msra.mxu0 %v1359
  %3795 = vmatprep.subr.mxu0 %v1344
  %3796 = vmatpush2.msra.mxu0 %v1343
  %3797 = vmatprep.subr.mxu0 %v1328
  %3798 = vmatpush2.msra.mxu0 %v1327
  %3799 = vmatprep.mubr.f32.mxu0 %v31
  %3800 = vmatmul.mubr.f32.gmra.mxu0 %v30
  %v3801 = vpop.f32.mrf.mxu0
  %v3802 = vadd.f32 %v3731, %v3801
  %v3803 = vpop.f32.mrf.mxu0
  %v3804 = vadd.f32 %v3733, %v3803
  %3805 = vdwg.mxu0
  %3806 = vmatprep.subr.mxu0 0.0
  %3807 = vmatpush1.msra.mxu0 0.0
  %3808 = vmatprep.subr.mxu0 0.0
  %3809 = vmatpush1.msra.mxu0 0.0
  %3810 = vmatprep.subr.mxu0 0.0
  %3811 = vmatpush1.msra.mxu0 0.0
  %3812 = vmatprep.subr.mxu0 0.0
  %3813 = vmatpush1.msra.mxu0 0.0
  %3814 = vmatprep.subr.mxu0 0.0
  %3815 = vmatpush1.msra.mxu0 0.0
  %3816 = vmatprep.subr.mxu0 0.0
  %3817 = vmatpush1.msra.mxu0 0.0
  %3818 = vmatprep.subr.mxu0 0.0
  %3819 = vmatpush1.msra.mxu0 0.0
  %3820 = vmatprep.subr.mxu0 0.0
  %3821 = vmatpush1.msra.mxu0 0.0
  %3822 = vmatprep.subr.mxu0 0.0
  %3823 = vmatpush1.msra.mxu0 0.0
  %3824 = vmatprep.subr.mxu0 0.0
  %3825 = vmatpush1.msra.mxu0 0.0
  %3826 = vmatprep.subr.mxu0 0.0
  %3827 = vmatpush1.msra.mxu0 0.0
  %3828 = vmatprep.subr.mxu0 0.0
  %3829 = vmatpush1.msra.mxu0 0.0
  %3830 = vmatprep.subr.mxu0 0.0
  %3831 = vmatpush1.msra.mxu0 0.0
  %3832 = vmatprep.subr.mxu0 0.0
  %3833 = vmatpush1.msra.mxu0 0.0
  %3834 = vmatprep.subr.mxu0 %v1600
  %3835 = vmatpush1.msra.mxu0 %v1599
  %3836 = vmatprep.subr.mxu0 %v1584
  %3837 = vmatpush1.msra.mxu0 %v1583
  %3838 = vmatprep.subr.mxu0 0.0
  %3839 = vmatpush2.msra.mxu0 0.0
  %3840 = vmatprep.subr.mxu0 0.0
  %3841 = vmatpush2.msra.mxu0 0.0
  %3842 = vmatprep.subr.mxu0 0.0
  %3843 = vmatpush2.msra.mxu0 0.0
  %3844 = vmatprep.subr.mxu0 0.0
  %3845 = vmatpush2.msra.mxu0 0.0
  %3846 = vmatprep.subr.mxu0 0.0
  %3847 = vmatpush2.msra.mxu0 0.0
  %3848 = vmatprep.subr.mxu0 0.0
  %3849 = vmatpush2.msra.mxu0 0.0
  %3850 = vmatprep.subr.mxu0 0.0
  %3851 = vmatpush2.msra.mxu0 0.0
  %3852 = vmatprep.subr.mxu0 0.0
  %3853 = vmatpush2.msra.mxu0 0.0
  %3854 = vmatprep.subr.mxu0 0.0
  %3855 = vmatpush2.msra.mxu0 0.0
  %3856 = vmatprep.subr.mxu0 0.0
  %3857 = vmatpush2.msra.mxu0 0.0
  %3858 = vmatprep.subr.mxu0 0.0
  %3859 = vmatpush2.msra.mxu0 0.0
  %3860 = vmatprep.subr.mxu0 0.0
  %3861 = vmatpush2.msra.mxu0 0.0
  %3862 = vmatprep.subr.mxu0 0.0
  %3863 = vmatpush2.msra.mxu0 0.0
  %3864 = vmatprep.subr.mxu0 0.0
  %3865 = vmatpush2.msra.mxu0 0.0
  %3866 = vmatprep.subr.mxu0 0.0
  %3867 = vmatpush2.msra.mxu0 0.0
  %3868 = vmatprep.subr.mxu0 0.0
  %3869 = vmatpush2.msra.mxu0 0.0
  %3870 = vmatprep.mubr.f32.mxu0 0.0
  %3871 = vmatmul.mubr.f32.gmra.mxu0 %v1603
  %v3872 = vpop.f32.mrf.mxu0
  %v3873 = vadd.f32 %v3802, %v3872
  %v3874 = vpop.f32.mrf.mxu0
  %v3875 = vadd.f32 %v3804, %v3874
  %3876 = vdwg.mxu0
  %v3877 = vmax.f32 %v1885, %v2453
  %v3878 = vmax.f32 %v1887, %v2455
  %v3879 = vmax.f32 %v2169, %v2737
  %v3880 = vmax.f32 %v2171, %v2739
  %v3881 = vmax.f32 %v3021, %v3589
  %v3882 = vmax.f32 %v3023, %v3591
  %v3883 = vmax.f32 %v3305, %v3873
  %v3884 = vmax.f32 %v3307, %v3875
  %v3885 = vmax.f32 %v3877, %v3881
  %v3886 = vmax.f32 %v3878, %v3882
  %v3887 = vmax.f32 %v3879, %v3883
  %v3888 = vmax.f32 %v3880, %v3884
  %v3889 = vld [vmem:[%s2] sm:$0xf]
  %v3891 = vlaneseq
  %v3892 = vshrl.u32 %v3891, 7
  %v3893 = vsub.s32 0, %v3892
  %v3894 = vrot.slane %v3889, %v3893
  %v3895 = vlaneseq
  %v3896 = vshrl.u32 %v3895, 7
  %v3897 = vsub.s32 1, %v3896
  %v3898 = vrot.slane %v3889, %v3897
  %v3899 = vlaneseq
  %v3900 = vshrl.u32 %v3899, 7
  %v3901 = vsub.s32 2, %v3900
  %v3902 = vrot.slane %v3889, %v3901
  %v3903 = vlaneseq
  %v3904 = vshrl.u32 %v3903, 7
  %v3905 = vsub.s32 3, %v3904
  %v3906 = vrot.slane %v3889, %v3905
  %v3911 = vadd.f32 %v3885, %v3894
  %v3912 = vadd.f32 %v3886, %v3898
  %v3913 = vadd.f32 %v3887, %v3902
  %v3914 = vadd.f32 %v3888, %v3906
  %v3915 = vld [vmem:[%s3] sm:$0xff]
  %v3916 = vld [vmem:[%s3 + $0x8] sm:$0xff]
  %v3917 = vld [vmem:[%s3 + $0x10] sm:$0xff]
  %v3918 = vld [vmem:[%s3 + $0x18] sm:$0xff]
  %v3919 = vld [vmem:[%s3 + $0x20] sm:$0xff]
  %v3920 = vld [vmem:[%s3 + $0x28] sm:$0xff]
  %v3921 = vld [vmem:[%s3 + $0x30] sm:$0xff]
  %v3922 = vld [vmem:[%s3 + $0x38] sm:$0xff]
  %v3923 = vld [vmem:[%s3 + $0x40] sm:$0xff]
  %v3924 = vld [vmem:[%s3 + $0x48] sm:$0xff]
  %v3925 = vld [vmem:[%s3 + $0x50] sm:$0xff]
  %v3926 = vld [vmem:[%s3 + $0x58] sm:$0xff]
  %v3927 = vld [vmem:[%s3 + $0x60] sm:$0xff]
  %v3928 = vld [vmem:[%s3 + $0x68] sm:$0xff]
  %v3929 = vld [vmem:[%s3 + $0x70] sm:$0xff]
  %v3930 = vld [vmem:[%s3 + $0x78] sm:$0xff]
  %v3931 = vld [vmem:[%s3 + $0x80] sm:$0xff]
  %v3932 = vld [vmem:[%s3 + $0x88] sm:$0xff]
  %v3933 = vld [vmem:[%s3 + $0x90] sm:$0xff]
  %v3934 = vld [vmem:[%s3 + $0x98] sm:$0xff]
  %v3935 = vld [vmem:[%s3 + $0xa0] sm:$0xff]
  %v3936 = vld [vmem:[%s3 + $0xa8] sm:$0xff]
  %v3937 = vld [vmem:[%s3 + $0xb0] sm:$0xff]
  %v3938 = vld [vmem:[%s3 + $0xb8] sm:$0xff]
  %v3939 = vld [vmem:[%s3 + $0xc0] sm:$0xff]
  %v3940 = vld [vmem:[%s3 + $0xc8] sm:$0xff]
  %v3941 = vld [vmem:[%s3 + $0xd0] sm:$0xff]
  %v3942 = vld [vmem:[%s3 + $0xd8] sm:$0xff]
  %v3943 = vld [vmem:[%s3 + $0xe0] sm:$0xff]
  %v3944 = vld [vmem:[%s3 + $0xe8] sm:$0xff]
  %v3945 = vld [vmem:[%s3 + $0xf0] sm:$0xff]
  %v3946 = vld [vmem:[%s3 + $0xf8] sm:$0xff]
  %v3947 = vld [vmem:[%s3 + $0x100] sm:$0xff]
  %v3948 = vld [vmem:[%s3 + $0x108] sm:$0xff]
  %v3949 = vld [vmem:[%s3 + $0x110] sm:$0xff]
  %v3950 = vld [vmem:[%s3 + $0x118] sm:$0xff]
  %v3951 = vld [vmem:[%s3 + $0x120] sm:$0xff]
  %v3952 = vld [vmem:[%s3 + $0x128] sm:$0xff]
  %v3953 = vld [vmem:[%s3 + $0x130] sm:$0xff]
  %v3954 = vld [vmem:[%s3 + $0x138] sm:$0xff]
  %v3955 = vld [vmem:[%s3 + $0x140] sm:$0xff]
  %v3956 = vld [vmem:[%s3 + $0x148] sm:$0xff]
  %v3957 = vld [vmem:[%s3 + $0x150] sm:$0xff]
  %v3958 = vld [vmem:[%s3 + $0x158] sm:$0xff]
  %v3959 = vld [vmem:[%s3 + $0x160] sm:$0xff]
  %v3960 = vld [vmem:[%s3 + $0x168] sm:$0xff]
  %v3961 = vld [vmem:[%s3 + $0x170] sm:$0xff]
  %v3962 = vld [vmem:[%s3 + $0x178] sm:$0xff]
  %v3963 = vld [vmem:[%s3 + $0x180] sm:$0xff]
  %v3964 = vld [vmem:[%s3 + $0x188] sm:$0xff]
  %v3965 = vld [vmem:[%s3 + $0x190] sm:$0xff]
  %v3966 = vld [vmem:[%s3 + $0x198] sm:$0xff]
  %v3967 = vld [vmem:[%s3 + $0x1a0] sm:$0xff]
  %v3968 = vld [vmem:[%s3 + $0x1a8] sm:$0xff]
  %v3969 = vld [vmem:[%s3 + $0x1b0] sm:$0xff]
  %v3970 = vld [vmem:[%s3 + $0x1b8] sm:$0xff]
  %v3971 = vld [vmem:[%s3 + $0x1c0] sm:$0xff]
  %v3972 = vld [vmem:[%s3 + $0x1c8] sm:$0xff]
  %v3973 = vld [vmem:[%s3 + $0x1d0] sm:$0xff]
  %v3974 = vld [vmem:[%s3 + $0x1d8] sm:$0xff]
  %v3975 = vld [vmem:[%s3 + $0x1e0] sm:$0xff]
  %v3976 = vld [vmem:[%s3 + $0x1e8] sm:$0xff]
  %v3977 = vld [vmem:[%s3 + $0x1f0] sm:$0xff]
  %v3978 = vld [vmem:[%s3 + $0x1f8] sm:$0xff]
  %v3979 = vld [vmem:[%s3 + $0x200] sm:$0xff]
  %v3980 = vld [vmem:[%s3 + $0x208] sm:$0xff]
  %v3981 = vld [vmem:[%s3 + $0x210] sm:$0xff]
  %v3982 = vld [vmem:[%s3 + $0x218] sm:$0xff]
  %v3983 = vld [vmem:[%s3 + $0x220] sm:$0xff]
  %v3984 = vld [vmem:[%s3 + $0x228] sm:$0xff]
  %v3985 = vld [vmem:[%s3 + $0x230] sm:$0xff]
  %v3986 = vld [vmem:[%s3 + $0x238] sm:$0xff]
  %v3987 = vld [vmem:[%s3 + $0x240] sm:$0xff]
  %v3988 = vld [vmem:[%s3 + $0x248] sm:$0xff]
  %v3989 = vld [vmem:[%s3 + $0x250] sm:$0xff]
  %v3990 = vld [vmem:[%s3 + $0x258] sm:$0xff]
  %v3991 = vld [vmem:[%s3 + $0x260] sm:$0xff]
  %v3992 = vld [vmem:[%s3 + $0x268] sm:$0xff]
  %v3993 = vld [vmem:[%s3 + $0x270] sm:$0xff]
  %v3994 = vld [vmem:[%s3 + $0x278] sm:$0xff]
  %v3995 = vld [vmem:[%s3 + $0x280] sm:$0xff]
  %v3996 = vld [vmem:[%s3 + $0x288] sm:$0xff]
  %v3997 = vld [vmem:[%s3 + $0x290] sm:$0xff]
  %v3998 = vld [vmem:[%s3 + $0x298] sm:$0xff]
  %v3999 = vld [vmem:[%s3 + $0x2a0] sm:$0xff]
  %v4000 = vld [vmem:[%s3 + $0x2a8] sm:$0xff]
  %v4001 = vld [vmem:[%s3 + $0x2b0] sm:$0xff]
  %v4002 = vld [vmem:[%s3 + $0x2b8] sm:$0xff]
  %v4003 = vld [vmem:[%s3 + $0x2c0] sm:$0xff]
  %v4004 = vld [vmem:[%s3 + $0x2c8] sm:$0xff]
  %v4005 = vld [vmem:[%s3 + $0x2d0] sm:$0xff]
  %v4006 = vld [vmem:[%s3 + $0x2d8] sm:$0xff]
  %v4007 = vld [vmem:[%s3 + $0x2e0] sm:$0xff]
  %v4008 = vld [vmem:[%s3 + $0x2e8] sm:$0xff]
  %v4009 = vld [vmem:[%s3 + $0x2f0] sm:$0xff]
  %v4010 = vld [vmem:[%s3 + $0x2f8] sm:$0xff]
  %v4011 = vld [vmem:[%s3 + $0x300] sm:$0xff]
  %v4012 = vld [vmem:[%s3 + $0x308] sm:$0xff]
  %v4013 = vld [vmem:[%s3 + $0x310] sm:$0xff]
  %v4014 = vld [vmem:[%s3 + $0x318] sm:$0xff]
  %v4015 = vld [vmem:[%s3 + $0x320] sm:$0xff]
  %v4016 = vld [vmem:[%s3 + $0x328] sm:$0xff]
  %v4017 = vld [vmem:[%s3 + $0x330] sm:$0xff]
  %v4018 = vld [vmem:[%s3 + $0x338] sm:$0xff]
  %v4019 = vld [vmem:[%s3 + $0x340] sm:$0xff]
  %v4020 = vld [vmem:[%s3 + $0x348] sm:$0xff]
  %v4021 = vld [vmem:[%s3 + $0x350] sm:$0xff]
  %v4022 = vld [vmem:[%s3 + $0x358] sm:$0xff]
  %v4023 = vld [vmem:[%s3 + $0x360] sm:$0xff]
  %v4024 = vld [vmem:[%s3 + $0x368] sm:$0xff]
  %v4025 = vld [vmem:[%s3 + $0x370] sm:$0xff]
  %v4026 = vld [vmem:[%s3 + $0x378] sm:$0xff]
  %v4027 = vld [vmem:[%s3 + $0x380] sm:$0xff]
  %v4028 = vld [vmem:[%s3 + $0x388] sm:$0xff]
  %v4029 = vld [vmem:[%s3 + $0x390] sm:$0xff]
  %v4030 = vld [vmem:[%s3 + $0x398] sm:$0xff]
  %v4031 = vld [vmem:[%s3 + $0x3a0] sm:$0xff]
  %v4032 = vld [vmem:[%s3 + $0x3a8] sm:$0xff]
  %v4033 = vld [vmem:[%s3 + $0x3b0] sm:$0xff]
  %v4034 = vld [vmem:[%s3 + $0x3b8] sm:$0xff]
  %v4035 = vld [vmem:[%s3 + $0x3c0] sm:$0xff]
  %v4036 = vld [vmem:[%s3 + $0x3c8] sm:$0xff]
  %v4037 = vld [vmem:[%s3 + $0x3d0] sm:$0xff]
  %v4038 = vld [vmem:[%s3 + $0x3d8] sm:$0xff]
  %v4039 = vld [vmem:[%s3 + $0x3e0] sm:$0xff]
  %v4040 = vld [vmem:[%s3 + $0x3e8] sm:$0xff]
  %v4041 = vld [vmem:[%s3 + $0x3f0] sm:$0xff]
  %v4042 = vld [vmem:[%s3 + $0x3f8] sm:$0xff]
  %v4043 = vld [vmem:[%s3 + $0x400] sm:$0xff]
  %v4044 = vld [vmem:[%s3 + $0x408] sm:$0xff]
  %v4045 = vld [vmem:[%s3 + $0x410] sm:$0xff]
  %v4046 = vld [vmem:[%s3 + $0x418] sm:$0xff]
  %v4047 = vld [vmem:[%s3 + $0x420] sm:$0xff]
  %v4048 = vld [vmem:[%s3 + $0x428] sm:$0xff]
  %v4049 = vld [vmem:[%s3 + $0x430] sm:$0xff]
  %v4050 = vld [vmem:[%s3 + $0x438] sm:$0xff]
  %v4051 = vld [vmem:[%s3 + $0x440] sm:$0xff]
  %v4052 = vld [vmem:[%s3 + $0x448] sm:$0xff]
  %v4053 = vld [vmem:[%s3 + $0x450] sm:$0xff]
  %v4054 = vld [vmem:[%s3 + $0x458] sm:$0xff]
  %v4055 = vld [vmem:[%s3 + $0x460] sm:$0xff]
  %v4056 = vld [vmem:[%s3 + $0x468] sm:$0xff]
  %v4057 = vld [vmem:[%s3 + $0x470] sm:$0xff]
  %v4058 = vld [vmem:[%s3 + $0x478] sm:$0xff]
  %v4059 = vld [vmem:[%s3 + $0x480] sm:$0xff]
  %v4060 = vld [vmem:[%s3 + $0x488] sm:$0xff]
  %v4061 = vld [vmem:[%s3 + $0x490] sm:$0xff]
  %v4062 = vld [vmem:[%s3 + $0x498] sm:$0xff]
  %v4063 = vld [vmem:[%s3 + $0x4a0] sm:$0xff]
  %v4064 = vld [vmem:[%s3 + $0x4a8] sm:$0xff]
  %v4065 = vld [vmem:[%s3 + $0x4b0] sm:$0xff]
  %v4066 = vld [vmem:[%s3 + $0x4b8] sm:$0xff]
  %v4067 = vld [vmem:[%s3 + $0x4c0] sm:$0xff]
  %v4068 = vld [vmem:[%s3 + $0x4c8] sm:$0xff]
  %v4069 = vld [vmem:[%s3 + $0x4d0] sm:$0xff]
  %v4070 = vld [vmem:[%s3 + $0x4d8] sm:$0xff]
  %v4071 = vld [vmem:[%s3 + $0x4e0] sm:$0xff]
  %v4072 = vld [vmem:[%s3 + $0x4e8] sm:$0xff]
  %v4073 = vld [vmem:[%s3 + $0x4f0] sm:$0xff]
  %v4074 = vld [vmem:[%s3 + $0x4f8] sm:$0xff]
  %v4075 = vld [vmem:[%s3 + $0x500] sm:$0xff]
  %v4076 = vld [vmem:[%s3 + $0x508] sm:$0xff]
  %v4077 = vld [vmem:[%s3 + $0x510] sm:$0xff]
  %v4078 = vld [vmem:[%s3 + $0x518] sm:$0xff]
  %v4079 = vld [vmem:[%s3 + $0x520] sm:$0xff]
  %v4080 = vld [vmem:[%s3 + $0x528] sm:$0xff]
  %v4081 = vld [vmem:[%s3 + $0x530] sm:$0xff]
  %v4082 = vld [vmem:[%s3 + $0x538] sm:$0xff]
  %v4083 = vld [vmem:[%s3 + $0x540] sm:$0xff]
  %v4084 = vld [vmem:[%s3 + $0x548] sm:$0xff]
  %v4085 = vld [vmem:[%s3 + $0x550] sm:$0xff]
  %v4086 = vld [vmem:[%s3 + $0x558] sm:$0xff]
  %v4087 = vld [vmem:[%s3 + $0x560] sm:$0xff]
  %v4088 = vld [vmem:[%s3 + $0x568] sm:$0xff]
  %v4089 = vld [vmem:[%s3 + $0x570] sm:$0xff]
  %v4090 = vld [vmem:[%s3 + $0x578] sm:$0xff]
  %v4091 = vld [vmem:[%s3 + $0x580] sm:$0xff]
  %v4092 = vld [vmem:[%s3 + $0x588] sm:$0xff]
  %v4093 = vld [vmem:[%s3 + $0x590] sm:$0xff]
  %v4094 = vld [vmem:[%s3 + $0x598] sm:$0xff]
  %v4095 = vld [vmem:[%s3 + $0x5a0] sm:$0xff]
  %v4096 = vld [vmem:[%s3 + $0x5a8] sm:$0xff]
  %v4097 = vld [vmem:[%s3 + $0x5b0] sm:$0xff]
  %v4098 = vld [vmem:[%s3 + $0x5b8] sm:$0xff]
  %v4099 = vld [vmem:[%s3 + $0x5c0] sm:$0xff]
  %v4100 = vld [vmem:[%s3 + $0x5c8] sm:$0xff]
  %v4101 = vld [vmem:[%s3 + $0x5d0] sm:$0xff]
  %v4102 = vld [vmem:[%s3 + $0x5d8] sm:$0xff]
  %v4103 = vld [vmem:[%s3 + $0x5e0] sm:$0xff]
  %v4104 = vld [vmem:[%s3 + $0x5e8] sm:$0xff]
  %v4105 = vld [vmem:[%s3 + $0x5f0] sm:$0xff]
  %v4106 = vld [vmem:[%s3 + $0x5f8] sm:$0xff]
  %v4107 = vld [vmem:[%s3 + $0x600] sm:$0xff]
  %v4108 = vld [vmem:[%s3 + $0x608] sm:$0xff]
  %v4109 = vld [vmem:[%s3 + $0x610] sm:$0xff]
  %v4110 = vld [vmem:[%s3 + $0x618] sm:$0xff]
  %v4111 = vld [vmem:[%s3 + $0x620] sm:$0xff]
  %v4112 = vld [vmem:[%s3 + $0x628] sm:$0xff]
  %v4113 = vld [vmem:[%s3 + $0x630] sm:$0xff]
  %v4114 = vld [vmem:[%s3 + $0x638] sm:$0xff]
  %v4115 = vld [vmem:[%s3 + $0x640] sm:$0xff]
  %v4116 = vld [vmem:[%s3 + $0x648] sm:$0xff]
  %v4117 = vld [vmem:[%s3 + $0x650] sm:$0xff]
  %v4118 = vld [vmem:[%s3 + $0x658] sm:$0xff]
  %v4119 = vld [vmem:[%s3 + $0x660] sm:$0xff]
  %v4120 = vld [vmem:[%s3 + $0x668] sm:$0xff]
  %v4121 = vld [vmem:[%s3 + $0x670] sm:$0xff]
  %v4122 = vld [vmem:[%s3 + $0x678] sm:$0xff]
  %v4123 = vld [vmem:[%s3 + $0x680] sm:$0xff]
  %v4124 = vld [vmem:[%s3 + $0x688] sm:$0xff]
  %v4125 = vld [vmem:[%s3 + $0x690] sm:$0xff]
  %v4126 = vld [vmem:[%s3 + $0x698] sm:$0xff]
  %v4127 = vld [vmem:[%s3 + $0x6a0] sm:$0xff]
  %v4128 = vld [vmem:[%s3 + $0x6a8] sm:$0xff]
  %v4129 = vld [vmem:[%s3 + $0x6b0] sm:$0xff]
  %v4130 = vld [vmem:[%s3 + $0x6b8] sm:$0xff]
  %v4131 = vld [vmem:[%s3 + $0x6c0] sm:$0xff]
  %v4132 = vld [vmem:[%s3 + $0x6c8] sm:$0xff]
  %v4133 = vld [vmem:[%s3 + $0x6d0] sm:$0xff]
  %v4134 = vld [vmem:[%s3 + $0x6d8] sm:$0xff]
  %v4135 = vld [vmem:[%s3 + $0x6e0] sm:$0xff]
  %v4136 = vld [vmem:[%s3 + $0x6e8] sm:$0xff]
  %v4137 = vld [vmem:[%s3 + $0x6f0] sm:$0xff]
  %v4138 = vld [vmem:[%s3 + $0x6f8] sm:$0xff]
  %v4139 = vld [vmem:[%s3 + $0x700] sm:$0xff]
  %v4140 = vld [vmem:[%s3 + $0x708] sm:$0xff]
  %v4141 = vld [vmem:[%s3 + $0x710] sm:$0xff]
  %v4142 = vld [vmem:[%s3 + $0x718] sm:$0xff]
  %v4143 = vld [vmem:[%s3 + $0x720] sm:$0xff]
  %v4144 = vld [vmem:[%s3 + $0x728] sm:$0xff]
  %v4145 = vld [vmem:[%s3 + $0x730] sm:$0xff]
  %v4146 = vld [vmem:[%s3 + $0x738] sm:$0xff]
  %v4147 = vld [vmem:[%s3 + $0x740] sm:$0xff]
  %v4148 = vld [vmem:[%s3 + $0x748] sm:$0xff]
  %v4149 = vld [vmem:[%s3 + $0x750] sm:$0xff]
  %v4150 = vld [vmem:[%s3 + $0x758] sm:$0xff]
  %v4151 = vld [vmem:[%s3 + $0x760] sm:$0xff]
  %v4152 = vld [vmem:[%s3 + $0x768] sm:$0xff]
  %v4153 = vld [vmem:[%s3 + $0x770] sm:$0xff]
  %v4154 = vld [vmem:[%s3 + $0x778] sm:$0xff]
  %v4155 = vld [vmem:[%s3 + $0x780] sm:$0xff]
  %v4156 = vld [vmem:[%s3 + $0x788] sm:$0xff]
  %v4157 = vld [vmem:[%s3 + $0x790] sm:$0xff]
  %v4158 = vld [vmem:[%s3 + $0x798] sm:$0xff]
  %v4159 = vld [vmem:[%s3 + $0x7a0] sm:$0xff]
  %v4160 = vld [vmem:[%s3 + $0x7a8] sm:$0xff]
  %v4161 = vld [vmem:[%s3 + $0x7b0] sm:$0xff]
  %v4162 = vld [vmem:[%s3 + $0x7b8] sm:$0xff]
  %v4163 = vld [vmem:[%s3 + $0x7c0] sm:$0xff]
  %v4164 = vld [vmem:[%s3 + $0x7c8] sm:$0xff]
  %v4165 = vld [vmem:[%s3 + $0x7d0] sm:$0xff]
  %v4166 = vld [vmem:[%s3 + $0x7d8] sm:$0xff]
  %v4167 = vld [vmem:[%s3 + $0x7e0] sm:$0xff]
  %v4168 = vld [vmem:[%s3 + $0x7e8] sm:$0xff]
  %v4169 = vld [vmem:[%s3 + $0x7f0] sm:$0xff]
  %v4170 = vld [vmem:[%s3 + $0x7f8] sm:$0xff]
  %4171 = vmatprep.subr.mxu0 %v3976
  %4172 = vmatpush1.msra.mxu0 %v3975
  %4173 = vmatprep.subr.mxu0 %v3972
  %4174 = vmatpush1.msra.mxu0 %v3971
  %4175 = vmatprep.subr.mxu0 %v3968
  %4176 = vmatpush1.msra.mxu0 %v3967
  %4177 = vmatprep.subr.mxu0 %v3964
  %4178 = vmatpush1.msra.mxu0 %v3963
  %4179 = vmatprep.subr.mxu0 %v3960
  %4180 = vmatpush1.msra.mxu0 %v3959
  %4181 = vmatprep.subr.mxu0 %v3956
  %4182 = vmatpush1.msra.mxu0 %v3955
  %4183 = vmatprep.subr.mxu0 %v3952
  %4184 = vmatpush1.msra.mxu0 %v3951
  %4185 = vmatprep.subr.mxu0 %v3948
  %4186 = vmatpush1.msra.mxu0 %v3947
  %4187 = vmatprep.subr.mxu0 %v3944
  %4188 = vmatpush1.msra.mxu0 %v3943
  %4189 = vmatprep.subr.mxu0 %v3940
  %4190 = vmatpush1.msra.mxu0 %v3939
  %4191 = vmatprep.subr.mxu0 %v3936
  %4192 = vmatpush1.msra.mxu0 %v3935
  %4193 = vmatprep.subr.mxu0 %v3932
  %4194 = vmatpush1.msra.mxu0 %v3931
  %4195 = vmatprep.subr.mxu0 %v3928
  %4196 = vmatpush1.msra.mxu0 %v3927
  %4197 = vmatprep.subr.mxu0 %v3924
  %4198 = vmatpush1.msra.mxu0 %v3923
  %4199 = vmatprep.subr.mxu0 %v3920
  %4200 = vmatpush1.msra.mxu0 %v3919
  %4201 = vmatprep.subr.mxu0 %v3916
  %4202 = vmatpush1.msra.mxu0 %v3915
  %4203 = vmatprep.subr.mxu0 %v4040
  %4204 = vmatpush2.msra.mxu0 %v4039
  %4205 = vmatprep.subr.mxu0 %v4036
  %4206 = vmatpush2.msra.mxu0 %v4035
  %4207 = vmatprep.subr.mxu0 %v4032
  %4208 = vmatpush2.msra.mxu0 %v4031
  %4209 = vmatprep.subr.mxu0 %v4028
  %4210 = vmatpush2.msra.mxu0 %v4027
  %4211 = vmatprep.subr.mxu0 %v4024
  %4212 = vmatpush2.msra.mxu0 %v4023
  %4213 = vmatprep.subr.mxu0 %v4020
  %4214 = vmatpush2.msra.mxu0 %v4019
  %4215 = vmatprep.subr.mxu0 %v4016
  %4216 = vmatpush2.msra.mxu0 %v4015
  %4217 = vmatprep.subr.mxu0 %v4012
  %4218 = vmatpush2.msra.mxu0 %v4011
  %4219 = vmatprep.subr.mxu0 %v4008
  %4220 = vmatpush2.msra.mxu0 %v4007
  %4221 = vmatprep.subr.mxu0 %v4004
  %4222 = vmatpush2.msra.mxu0 %v4003
  %4223 = vmatprep.subr.mxu0 %v4000
  %4224 = vmatpush2.msra.mxu0 %v3999
  %4225 = vmatprep.subr.mxu0 %v3996
  %4226 = vmatpush2.msra.mxu0 %v3995
  %4227 = vmatprep.subr.mxu0 %v3992
  %4228 = vmatpush2.msra.mxu0 %v3991
  %4229 = vmatprep.subr.mxu0 %v3988
  %4230 = vmatpush2.msra.mxu0 %v3987
  %4231 = vmatprep.subr.mxu0 %v3984
  %4232 = vmatpush2.msra.mxu0 %v3983
  %4233 = vmatprep.subr.mxu0 %v3980
  %4234 = vmatpush2.msra.mxu0 %v3979
  %4235 = vmatprep.mubr.f32.mxu0 %v3912
  %4236 = vmatmul.mubr.f32.gmra.mxu0 %v3911
  %v4237 = vpop.f32.mrf.mxu0
  %v4238 = vadd.f32 0.0, %v4237
  %v4239 = vpop.f32.mrf.mxu0
  %v4240 = vadd.f32 0.0, %v4239
  %4241 = vdwg.mxu0
  %4242 = vmatprep.subr.mxu0 %v4104
  %4243 = vmatpush1.msra.mxu0 %v4103
  %4244 = vmatprep.subr.mxu0 %v4100
  %4245 = vmatpush1.msra.mxu0 %v4099
  %4246 = vmatprep.subr.mxu0 %v4096
  %4247 = vmatpush1.msra.mxu0 %v4095
  %4248 = vmatprep.subr.mxu0 %v4092
  %4249 = vmatpush1.msra.mxu0 %v4091
  %4250 = vmatprep.subr.mxu0 %v4088
  %4251 = vmatpush1.msra.mxu0 %v4087
  %4252 = vmatprep.subr.mxu0 %v4084
  %4253 = vmatpush1.msra.mxu0 %v4083
  %4254 = vmatprep.subr.mxu0 %v4080
  %4255 = vmatpush1.msra.mxu0 %v4079
  %4256 = vmatprep.subr.mxu0 %v4076
  %4257 = vmatpush1.msra.mxu0 %v4075
  %4258 = vmatprep.subr.mxu0 %v4072
  %4259 = vmatpush1.msra.mxu0 %v4071
  %4260 = vmatprep.subr.mxu0 %v4068
  %4261 = vmatpush1.msra.mxu0 %v4067
  %4262 = vmatprep.subr.mxu0 %v4064
  %4263 = vmatpush1.msra.mxu0 %v4063
  %4264 = vmatprep.subr.mxu0 %v4060
  %4265 = vmatpush1.msra.mxu0 %v4059
  %4266 = vmatprep.subr.mxu0 %v4056
  %4267 = vmatpush1.msra.mxu0 %v4055
  %4268 = vmatprep.subr.mxu0 %v4052
  %4269 = vmatpush1.msra.mxu0 %v4051
  %4270 = vmatprep.subr.mxu0 %v4048
  %4271 = vmatpush1.msra.mxu0 %v4047
  %4272 = vmatprep.subr.mxu0 %v4044
  %4273 = vmatpush1.msra.mxu0 %v4043
  %4274 = vmatprep.subr.mxu0 %v4168
  %4275 = vmatpush2.msra.mxu0 %v4167
  %4276 = vmatprep.subr.mxu0 %v4164
  %4277 = vmatpush2.msra.mxu0 %v4163
  %4278 = vmatprep.subr.mxu0 %v4160
  %4279 = vmatpush2.msra.mxu0 %v4159
  %4280 = vmatprep.subr.mxu0 %v4156
  %4281 = vmatpush2.msra.mxu0 %v4155
  %4282 = vmatprep.subr.mxu0 %v4152
  %4283 = vmatpush2.msra.mxu0 %v4151
  %4284 = vmatprep.subr.mxu0 %v4148
  %4285 = vmatpush2.msra.mxu0 %v4147
  %4286 = vmatprep.subr.mxu0 %v4144
  %4287 = vmatpush2.msra.mxu0 %v4143
  %4288 = vmatprep.subr.mxu0 %v4140
  %4289 = vmatpush2.msra.mxu0 %v4139
  %4290 = vmatprep.subr.mxu0 %v4136
  %4291 = vmatpush2.msra.mxu0 %v4135
  %4292 = vmatprep.subr.mxu0 %v4132
  %4293 = vmatpush2.msra.mxu0 %v4131
  %4294 = vmatprep.subr.mxu0 %v4128
  %4295 = vmatpush2.msra.mxu0 %v4127
  %4296 = vmatprep.subr.mxu0 %v4124
  %4297 = vmatpush2.msra.mxu0 %v4123
  %4298 = vmatprep.subr.mxu0 %v4120
  %4299 = vmatpush2.msra.mxu0 %v4119
  %4300 = vmatprep.subr.mxu0 %v4116
  %4301 = vmatpush2.msra.mxu0 %v4115
  %4302 = vmatprep.subr.mxu0 %v4112
  %4303 = vmatpush2.msra.mxu0 %v4111
  %4304 = vmatprep.subr.mxu0 %v4108
  %4305 = vmatpush2.msra.mxu0 %v4107
  %4306 = vmatprep.mubr.f32.mxu0 %v3914
  %4307 = vmatmul.mubr.f32.gmra.mxu0 %v3913
  %v4308 = vpop.f32.mrf.mxu0
  %v4309 = vadd.f32 %v4238, %v4308
  %v4310 = vpop.f32.mrf.mxu0
  %v4311 = vadd.f32 %v4240, %v4310
  %4312 = vdwg.mxu0
  %4313 = vmatprep.subr.mxu0 %v3978
  %4314 = vmatpush1.msra.mxu0 %v3977
  %4315 = vmatprep.subr.mxu0 %v3974
  %4316 = vmatpush1.msra.mxu0 %v3973
  %4317 = vmatprep.subr.mxu0 %v3970
  %4318 = vmatpush1.msra.mxu0 %v3969
  %4319 = vmatprep.subr.mxu0 %v3966
  %4320 = vmatpush1.msra.mxu0 %v3965
  %4321 = vmatprep.subr.mxu0 %v3962
  %4322 = vmatpush1.msra.mxu0 %v3961
  %4323 = vmatprep.subr.mxu0 %v3958
  %4324 = vmatpush1.msra.mxu0 %v3957
  %4325 = vmatprep.subr.mxu0 %v3954
  %4326 = vmatpush1.msra.mxu0 %v3953
  %4327 = vmatprep.subr.mxu0 %v3950
  %4328 = vmatpush1.msra.mxu0 %v3949
  %4329 = vmatprep.subr.mxu0 %v3946
  %4330 = vmatpush1.msra.mxu0 %v3945
  %4331 = vmatprep.subr.mxu0 %v3942
  %4332 = vmatpush1.msra.mxu0 %v3941
  %4333 = vmatprep.subr.mxu0 %v3938
  %4334 = vmatpush1.msra.mxu0 %v3937
  %4335 = vmatprep.subr.mxu0 %v3934
  %4336 = vmatpush1.msra.mxu0 %v3933
  %4337 = vmatprep.subr.mxu0 %v3930
  %4338 = vmatpush1.msra.mxu0 %v3929
  %4339 = vmatprep.subr.mxu0 %v3926
  %4340 = vmatpush1.msra.mxu0 %v3925
  %4341 = vmatprep.subr.mxu0 %v3922
  %4342 = vmatpush1.msra.mxu0 %v3921
  %4343 = vmatprep.subr.mxu0 %v3918
  %4344 = vmatpush1.msra.mxu0 %v3917
  %4345 = vmatprep.subr.mxu0 %v4042
  %4346 = vmatpush2.msra.mxu0 %v4041
  %4347 = vmatprep.subr.mxu0 %v4038
  %4348 = vmatpush2.msra.mxu0 %v4037
  %4349 = vmatprep.subr.mxu0 %v4034
  %4350 = vmatpush2.msra.mxu0 %v4033
  %4351 = vmatprep.subr.mxu0 %v4030
  %4352 = vmatpush2.msra.mxu0 %v4029
  %4353 = vmatprep.subr.mxu0 %v4026
  %4354 = vmatpush2.msra.mxu0 %v4025
  %4355 = vmatprep.subr.mxu0 %v4022
  %4356 = vmatpush2.msra.mxu0 %v4021
  %4357 = vmatprep.subr.mxu0 %v4018
  %4358 = vmatpush2.msra.mxu0 %v4017
  %4359 = vmatprep.subr.mxu0 %v4014
  %4360 = vmatpush2.msra.mxu0 %v4013
  %4361 = vmatprep.subr.mxu0 %v4010
  %4362 = vmatpush2.msra.mxu0 %v4009
  %4363 = vmatprep.subr.mxu0 %v4006
  %4364 = vmatpush2.msra.mxu0 %v4005
  %4365 = vmatprep.subr.mxu0 %v4002
  %4366 = vmatpush2.msra.mxu0 %v4001
  %4367 = vmatprep.subr.mxu0 %v3998
  %4368 = vmatpush2.msra.mxu0 %v3997
  %4369 = vmatprep.subr.mxu0 %v3994
  %4370 = vmatpush2.msra.mxu0 %v3993
  %4371 = vmatprep.subr.mxu0 %v3990
  %4372 = vmatpush2.msra.mxu0 %v3989
  %4373 = vmatprep.subr.mxu0 %v3986
  %4374 = vmatpush2.msra.mxu0 %v3985
  %4375 = vmatprep.subr.mxu0 %v3982
  %4376 = vmatpush2.msra.mxu0 %v3981
  %4377 = vmatprep.mubr.f32.mxu0 %v3912
  %4378 = vmatmul.mubr.f32.gmra.mxu0 %v3911
  %v4379 = vpop.f32.mrf.mxu0
  %v4380 = vadd.f32 0.0, %v4379
  %v4381 = vpop.f32.mrf.mxu0
  %v4382 = vadd.f32 0.0, %v4381
  %4383 = vdwg.mxu0
  %4384 = vmatprep.subr.mxu0 %v4106
  %4385 = vmatpush1.msra.mxu0 %v4105
  %4386 = vmatprep.subr.mxu0 %v4102
  %4387 = vmatpush1.msra.mxu0 %v4101
  %4388 = vmatprep.subr.mxu0 %v4098
  %4389 = vmatpush1.msra.mxu0 %v4097
  %4390 = vmatprep.subr.mxu0 %v4094
  %4391 = vmatpush1.msra.mxu0 %v4093
  %4392 = vmatprep.subr.mxu0 %v4090
  %4393 = vmatpush1.msra.mxu0 %v4089
  %4394 = vmatprep.subr.mxu0 %v4086
  %4395 = vmatpush1.msra.mxu0 %v4085
  %4396 = vmatprep.subr.mxu0 %v4082
  %4397 = vmatpush1.msra.mxu0 %v4081
  %4398 = vmatprep.subr.mxu0 %v4078
  %4399 = vmatpush1.msra.mxu0 %v4077
  %4400 = vmatprep.subr.mxu0 %v4074
  %4401 = vmatpush1.msra.mxu0 %v4073
  %4402 = vmatprep.subr.mxu0 %v4070
  %4403 = vmatpush1.msra.mxu0 %v4069
  %4404 = vmatprep.subr.mxu0 %v4066
  %4405 = vmatpush1.msra.mxu0 %v4065
  %4406 = vmatprep.subr.mxu0 %v4062
  %4407 = vmatpush1.msra.mxu0 %v4061
  %4408 = vmatprep.subr.mxu0 %v4058
  %4409 = vmatpush1.msra.mxu0 %v4057
  %4410 = vmatprep.subr.mxu0 %v4054
  %4411 = vmatpush1.msra.mxu0 %v4053
  %4412 = vmatprep.subr.mxu0 %v4050
  %4413 = vmatpush1.msra.mxu0 %v4049
  %4414 = vmatprep.subr.mxu0 %v4046
  %4415 = vmatpush1.msra.mxu0 %v4045
  %4416 = vmatprep.subr.mxu0 %v4170
  %4417 = vmatpush2.msra.mxu0 %v4169
  %4418 = vmatprep.subr.mxu0 %v4166
  %4419 = vmatpush2.msra.mxu0 %v4165
  %4420 = vmatprep.subr.mxu0 %v4162
  %4421 = vmatpush2.msra.mxu0 %v4161
  %4422 = vmatprep.subr.mxu0 %v4158
  %4423 = vmatpush2.msra.mxu0 %v4157
  %4424 = vmatprep.subr.mxu0 %v4154
  %4425 = vmatpush2.msra.mxu0 %v4153
  %4426 = vmatprep.subr.mxu0 %v4150
  %4427 = vmatpush2.msra.mxu0 %v4149
  %4428 = vmatprep.subr.mxu0 %v4146
  %4429 = vmatpush2.msra.mxu0 %v4145
  %4430 = vmatprep.subr.mxu0 %v4142
  %4431 = vmatpush2.msra.mxu0 %v4141
  %4432 = vmatprep.subr.mxu0 %v4138
  %4433 = vmatpush2.msra.mxu0 %v4137
  %4434 = vmatprep.subr.mxu0 %v4134
  %4435 = vmatpush2.msra.mxu0 %v4133
  %4436 = vmatprep.subr.mxu0 %v4130
  %4437 = vmatpush2.msra.mxu0 %v4129
  %4438 = vmatprep.subr.mxu0 %v4126
  %4439 = vmatpush2.msra.mxu0 %v4125
  %4440 = vmatprep.subr.mxu0 %v4122
  %4441 = vmatpush2.msra.mxu0 %v4121
  %4442 = vmatprep.subr.mxu0 %v4118
  %4443 = vmatpush2.msra.mxu0 %v4117
  %4444 = vmatprep.subr.mxu0 %v4114
  %4445 = vmatpush2.msra.mxu0 %v4113
  %4446 = vmatprep.subr.mxu0 %v4110
  %4447 = vmatpush2.msra.mxu0 %v4109
  %4448 = vmatprep.mubr.f32.mxu0 %v3914
  %4449 = vmatmul.mubr.f32.gmra.mxu0 %v3913
  %v4450 = vpop.f32.mrf.mxu0
  %v4451 = vadd.f32 %v4380, %v4450
  %v4452 = vpop.f32.mrf.mxu0
  %v4453 = vadd.f32 %v4382, %v4452
  %4454 = vdwg.mxu0
  %v4455 = vmax.f32 %v4309, %v4311
  %v4456 = vmax.f32 %v4451, %v4453
  %v4457 = vmax.f32 %v4455, %v4456
  %v4458 = vld [vmem:[%s4] sm:$0x1]
  %v4460 = vlaneseq
  %v4461 = vshrl.u32 %v4460, 7
  %v4462 = vsub.s32 0, %v4461
  %v4463 = vrot.slane %v4458, %v4462
  %v4465 = vadd.f32 %v4457, %v4463
  %v4466 = vld [vmem:[%s5] sm:$0xff]
  %v4467 = vld [vmem:[%s5 + $0x8] sm:$0xff]
  %v4468 = vld [vmem:[%s5 + $0x10] sm:$0xff]
  %v4469 = vld [vmem:[%s5 + $0x18] sm:$0xff]
  %v4470 = vld [vmem:[%s5 + $0x20] sm:$0xff]
  %v4471 = vld [vmem:[%s5 + $0x28] sm:$0xff]
  %v4472 = vld [vmem:[%s5 + $0x30] sm:$0xff]
  %v4473 = vld [vmem:[%s5 + $0x38] sm:$0xff]
  %v4474 = vld [vmem:[%s5 + $0x40] sm:$0xff]
  %v4475 = vld [vmem:[%s5 + $0x48] sm:$0xff]
  %v4476 = vld [vmem:[%s5 + $0x50] sm:$0xff]
  %v4477 = vld [vmem:[%s5 + $0x58] sm:$0xff]
  %v4478 = vld [vmem:[%s5 + $0x60] sm:$0xff]
  %v4479 = vld [vmem:[%s5 + $0x68] sm:$0xff]
  %v4480 = vld [vmem:[%s5 + $0x70] sm:$0xff]
  %v4481 = vld [vmem:[%s5 + $0x78] sm:$0xff]
  %v4482 = vld [vmem:[%s5 + $0x80] sm:$0xff]
  %v4483 = vld [vmem:[%s5 + $0x88] sm:$0xff]
  %v4484 = vld [vmem:[%s5 + $0x90] sm:$0xff]
  %v4485 = vld [vmem:[%s5 + $0x98] sm:$0xff]
  %v4486 = vld [vmem:[%s5 + $0xa0] sm:$0xff]
  %v4487 = vld [vmem:[%s5 + $0xa8] sm:$0xff]
  %v4488 = vld [vmem:[%s5 + $0xb0] sm:$0xff]
  %v4489 = vld [vmem:[%s5 + $0xb8] sm:$0xff]
  %v4490 = vld [vmem:[%s5 + $0xc0] sm:$0xff]
  %v4491 = vld [vmem:[%s5 + $0xc8] sm:$0xff]
  %v4492 = vld [vmem:[%s5 + $0xd0] sm:$0xff]
  %v4493 = vld [vmem:[%s5 + $0xd8] sm:$0xff]
  %v4494 = vld [vmem:[%s5 + $0xe0] sm:$0xff]
  %v4495 = vld [vmem:[%s5 + $0xe8] sm:$0xff]
  %v4496 = vld [vmem:[%s5 + $0xf0] sm:$0xff]
  %v4497 = vld [vmem:[%s5 + $0xf8] sm:$0xff]
  %v4498 = vld [vmem:[%s5 + $0x100] sm:$0xff]
  %v4499 = vld [vmem:[%s5 + $0x108] sm:$0xff]
  %v4500 = vld [vmem:[%s5 + $0x110] sm:$0xff]
  %v4501 = vld [vmem:[%s5 + $0x118] sm:$0xff]
  %v4502 = vld [vmem:[%s5 + $0x120] sm:$0xff]
  %v4503 = vld [vmem:[%s5 + $0x128] sm:$0xff]
  %v4504 = vld [vmem:[%s5 + $0x130] sm:$0xff]
  %v4505 = vld [vmem:[%s5 + $0x138] sm:$0xff]
  %v4506 = vld [vmem:[%s5 + $0x140] sm:$0xff]
  %v4507 = vld [vmem:[%s5 + $0x148] sm:$0xff]
  %v4508 = vld [vmem:[%s5 + $0x150] sm:$0xff]
  %v4509 = vld [vmem:[%s5 + $0x158] sm:$0xff]
  %v4510 = vld [vmem:[%s5 + $0x160] sm:$0xff]
  %v4511 = vld [vmem:[%s5 + $0x168] sm:$0xff]
  %v4512 = vld [vmem:[%s5 + $0x170] sm:$0xff]
  %v4513 = vld [vmem:[%s5 + $0x178] sm:$0xff]
  %v4514 = vld [vmem:[%s5 + $0x180] sm:$0xff]
  %v4515 = vld [vmem:[%s5 + $0x188] sm:$0xff]
  %v4516 = vld [vmem:[%s5 + $0x190] sm:$0xff]
  %v4517 = vld [vmem:[%s5 + $0x198] sm:$0xff]
  %v4518 = vld [vmem:[%s5 + $0x1a0] sm:$0xff]
  %v4519 = vld [vmem:[%s5 + $0x1a8] sm:$0xff]
  %v4520 = vld [vmem:[%s5 + $0x1b0] sm:$0xff]
  %v4521 = vld [vmem:[%s5 + $0x1b8] sm:$0xff]
  %v4522 = vld [vmem:[%s5 + $0x1c0] sm:$0xff]
  %v4523 = vld [vmem:[%s5 + $0x1c8] sm:$0xff]
  %v4524 = vld [vmem:[%s5 + $0x1d0] sm:$0xff]
  %v4525 = vld [vmem:[%s5 + $0x1d8] sm:$0xff]
  %v4526 = vld [vmem:[%s5 + $0x1e0] sm:$0xff]
  %v4527 = vld [vmem:[%s5 + $0x1e8] sm:$0xff]
  %v4528 = vld [vmem:[%s5 + $0x1f0] sm:$0xff]
  %v4529 = vld [vmem:[%s5 + $0x1f8] sm:$0xff]
  %v4530 = vld [vmem:[%s5 + $0x200] sm:$0xff]
  %v4531 = vld [vmem:[%s5 + $0x208] sm:$0xff]
  %v4532 = vld [vmem:[%s5 + $0x210] sm:$0xff]
  %v4533 = vld [vmem:[%s5 + $0x218] sm:$0xff]
  %v4534 = vld [vmem:[%s5 + $0x220] sm:$0xff]
  %v4535 = vld [vmem:[%s5 + $0x228] sm:$0xff]
  %v4536 = vld [vmem:[%s5 + $0x230] sm:$0xff]
  %v4537 = vld [vmem:[%s5 + $0x238] sm:$0xff]
  %v4538 = vld [vmem:[%s5 + $0x240] sm:$0xff]
  %v4539 = vld [vmem:[%s5 + $0x248] sm:$0xff]
  %v4540 = vld [vmem:[%s5 + $0x250] sm:$0xff]
  %v4541 = vld [vmem:[%s5 + $0x258] sm:$0xff]
  %v4542 = vld [vmem:[%s5 + $0x260] sm:$0xff]
  %v4543 = vld [vmem:[%s5 + $0x268] sm:$0xff]
  %v4544 = vld [vmem:[%s5 + $0x270] sm:$0xff]
  %v4545 = vld [vmem:[%s5 + $0x278] sm:$0xff]
  %v4546 = vld [vmem:[%s5 + $0x280] sm:$0xff]
  %v4547 = vld [vmem:[%s5 + $0x288] sm:$0xff]
  %v4548 = vld [vmem:[%s5 + $0x290] sm:$0xff]
  %v4549 = vld [vmem:[%s5 + $0x298] sm:$0xff]
  %v4550 = vld [vmem:[%s5 + $0x2a0] sm:$0xff]
  %v4551 = vld [vmem:[%s5 + $0x2a8] sm:$0xff]
  %v4552 = vld [vmem:[%s5 + $0x2b0] sm:$0xff]
  %v4553 = vld [vmem:[%s5 + $0x2b8] sm:$0xff]
  %v4554 = vld [vmem:[%s5 + $0x2c0] sm:$0xff]
  %v4555 = vld [vmem:[%s5 + $0x2c8] sm:$0xff]
  %v4556 = vld [vmem:[%s5 + $0x2d0] sm:$0xff]
  %v4557 = vld [vmem:[%s5 + $0x2d8] sm:$0xff]
  %v4558 = vld [vmem:[%s5 + $0x2e0] sm:$0xff]
  %v4559 = vld [vmem:[%s5 + $0x2e8] sm:$0xff]
  %v4560 = vld [vmem:[%s5 + $0x2f0] sm:$0xff]
  %v4561 = vld [vmem:[%s5 + $0x2f8] sm:$0xff]
  %v4562 = vld [vmem:[%s5 + $0x300] sm:$0xff]
  %v4563 = vld [vmem:[%s5 + $0x308] sm:$0xff]
  %v4564 = vld [vmem:[%s5 + $0x310] sm:$0xff]
  %v4565 = vld [vmem:[%s5 + $0x318] sm:$0xff]
  %v4566 = vld [vmem:[%s5 + $0x320] sm:$0xff]
  %v4567 = vld [vmem:[%s5 + $0x328] sm:$0xff]
  %v4568 = vld [vmem:[%s5 + $0x330] sm:$0xff]
  %v4569 = vld [vmem:[%s5 + $0x338] sm:$0xff]
  %v4570 = vld [vmem:[%s5 + $0x340] sm:$0xff]
  %v4571 = vld [vmem:[%s5 + $0x348] sm:$0xff]
  %v4572 = vld [vmem:[%s5 + $0x350] sm:$0xff]
  %v4573 = vld [vmem:[%s5 + $0x358] sm:$0xff]
  %v4574 = vld [vmem:[%s5 + $0x360] sm:$0xff]
  %v4575 = vld [vmem:[%s5 + $0x368] sm:$0xff]
  %v4576 = vld [vmem:[%s5 + $0x370] sm:$0xff]
  %v4577 = vld [vmem:[%s5 + $0x378] sm:$0xff]
  %v4578 = vld [vmem:[%s6] sm:$0x7f]
  %v4580 = vlaneseq
  %v4581 = vshrl.u32 %v4580, 7
  %v4582 = vsub.s32 0, %v4581
  %v4583 = vrot.slane %v4578, %v4582
  %v4584 = vlaneseq
  %v4585 = vshrl.u32 %v4584, 7
  %v4586 = vsub.s32 1, %v4585
  %v4587 = vrot.slane %v4578, %v4586
  %v4588 = vlaneseq
  %v4589 = vshrl.u32 %v4588, 7
  %v4590 = vsub.s32 2, %v4589
  %v4591 = vrot.slane %v4578, %v4590
  %v4592 = vlaneseq
  %v4593 = vshrl.u32 %v4592, 7
  %v4594 = vsub.s32 3, %v4593
  %v4595 = vrot.slane %v4578, %v4594
  %v4596 = vlaneseq
  %v4597 = vshrl.u32 %v4596, 7
  %v4598 = vsub.s32 4, %v4597
  %v4599 = vrot.slane %v4578, %v4598
  %v4600 = vlaneseq
  %v4601 = vshrl.u32 %v4600, 7
  %v4602 = vsub.s32 5, %v4601
  %v4603 = vrot.slane %v4578, %v4602
  %v4604 = vlaneseq
  %v4605 = vshrl.u32 %v4604, 7
  %v4606 = vsub.s32 6, %v4605
  %v4607 = vrot.slane %v4578, %v4606
  %4615 = vmatprep.subr.mxu0 %v4572
  %4616 = vmatpush1.msra.mxu0 %v4571
  %4617 = vmatprep.subr.mxu0 %v4565
  %4618 = vmatpush1.msra.mxu0 %v4564
  %4619 = vmatprep.subr.mxu0 %v4558
  %4620 = vmatpush1.msra.mxu0 %v4557
  %4621 = vmatprep.subr.mxu0 %v4551
  %4622 = vmatpush1.msra.mxu0 %v4550
  %4623 = vmatprep.subr.mxu0 %v4544
  %4624 = vmatpush1.msra.mxu0 %v4543
  %4625 = vmatprep.subr.mxu0 %v4537
  %4626 = vmatpush1.msra.mxu0 %v4536
  %4627 = vmatprep.subr.mxu0 %v4530
  %4628 = vmatpush1.msra.mxu0 %v4529
  %4629 = vmatprep.subr.mxu0 %v4523
  %4630 = vmatpush1.msra.mxu0 %v4522
  %4631 = vmatprep.subr.mxu0 %v4516
  %4632 = vmatpush1.msra.mxu0 %v4515
  %4633 = vmatprep.subr.mxu0 %v4509
  %4634 = vmatpush1.msra.mxu0 %v4508
  %4635 = vmatprep.subr.mxu0 %v4502
  %4636 = vmatpush1.msra.mxu0 %v4501
  %4637 = vmatprep.subr.mxu0 %v4495
  %4638 = vmatpush1.msra.mxu0 %v4494
  %4639 = vmatprep.subr.mxu0 %v4488
  %4640 = vmatpush1.msra.mxu0 %v4487
  %4641 = vmatprep.subr.mxu0 %v4481
  %4642 = vmatpush1.msra.mxu0 %v4480
  %4643 = vmatprep.subr.mxu0 %v4474
  %4644 = vmatpush1.msra.mxu0 %v4473
  %4645 = vmatprep.subr.mxu0 %v4467
  %4646 = vmatpush1.msra.mxu0 %v4466
  %4647 = vmatprep.subr.mxu0 0.0
  %4648 = vmatpush2.msra.mxu0 0.0
  %4649 = vmatprep.subr.mxu0 0.0
  %4650 = vmatpush2.msra.mxu0 0.0
  %4651 = vmatprep.subr.mxu0 0.0
  %4652 = vmatpush2.msra.mxu0 0.0
  %4653 = vmatprep.subr.mxu0 0.0
  %4654 = vmatpush2.msra.mxu0 0.0
  %4655 = vmatprep.subr.mxu0 0.0
  %4656 = vmatpush2.msra.mxu0 0.0
  %4657 = vmatprep.subr.mxu0 0.0
  %4658 = vmatpush2.msra.mxu0 0.0
  %4659 = vmatprep.subr.mxu0 0.0
  %4660 = vmatpush2.msra.mxu0 0.0
  %4661 = vmatprep.subr.mxu0 0.0
  %4662 = vmatpush2.msra.mxu0 0.0
  %4663 = vmatprep.subr.mxu0 0.0
  %4664 = vmatpush2.msra.mxu0 0.0
  %4665 = vmatprep.subr.mxu0 0.0
  %4666 = vmatpush2.msra.mxu0 0.0
  %4667 = vmatprep.subr.mxu0 0.0
  %4668 = vmatpush2.msra.mxu0 0.0
  %4669 = vmatprep.subr.mxu0 0.0
  %4670 = vmatpush2.msra.mxu0 0.0
  %4671 = vmatprep.subr.mxu0 0.0
  %4672 = vmatpush2.msra.mxu0 0.0
  %4673 = vmatprep.subr.mxu0 0.0
  %4674 = vmatpush2.msra.mxu0 0.0
  %4675 = vmatprep.subr.mxu0 0.0
  %4676 = vmatpush2.msra.mxu0 0.0
  %4677 = vmatprep.subr.mxu0 0.0
  %4678 = vmatpush2.msra.mxu0 0.0
  %4679 = vmatprep.mubr.f32.mxu0 0.0
  %4680 = vmatmul.mubr.f32.gmra.mxu0 %v4465
  %v4681 = vpop.f32.mrf.mxu0
  %v4682 = vadd.f32 %v4583, %v4681
  %v4683 = vpop.f32.mrf.mxu0
  %v4684 = vadd.f32 %v4587, %v4683
  %4685 = vdwg.mxu0
  %4686 = vmatprep.subr.mxu0 %v4574
  %4687 = vmatpush1.msra.mxu0 %v4573
  %4688 = vmatprep.subr.mxu0 %v4567
  %4689 = vmatpush1.msra.mxu0 %v4566
  %4690 = vmatprep.subr.mxu0 %v4560
  %4691 = vmatpush1.msra.mxu0 %v4559
  %4692 = vmatprep.subr.mxu0 %v4553
  %4693 = vmatpush1.msra.mxu0 %v4552
  %4694 = vmatprep.subr.mxu0 %v4546
  %4695 = vmatpush1.msra.mxu0 %v4545
  %4696 = vmatprep.subr.mxu0 %v4539
  %4697 = vmatpush1.msra.mxu0 %v4538
  %4698 = vmatprep.subr.mxu0 %v4532
  %4699 = vmatpush1.msra.mxu0 %v4531
  %4700 = vmatprep.subr.mxu0 %v4525
  %4701 = vmatpush1.msra.mxu0 %v4524
  %4702 = vmatprep.subr.mxu0 %v4518
  %4703 = vmatpush1.msra.mxu0 %v4517
  %4704 = vmatprep.subr.mxu0 %v4511
  %4705 = vmatpush1.msra.mxu0 %v4510
  %4706 = vmatprep.subr.mxu0 %v4504
  %4707 = vmatpush1.msra.mxu0 %v4503
  %4708 = vmatprep.subr.mxu0 %v4497
  %4709 = vmatpush1.msra.mxu0 %v4496
  %4710 = vmatprep.subr.mxu0 %v4490
  %4711 = vmatpush1.msra.mxu0 %v4489
  %4712 = vmatprep.subr.mxu0 %v4483
  %4713 = vmatpush1.msra.mxu0 %v4482
  %4714 = vmatprep.subr.mxu0 %v4476
  %4715 = vmatpush1.msra.mxu0 %v4475
  %4716 = vmatprep.subr.mxu0 %v4469
  %4717 = vmatpush1.msra.mxu0 %v4468
  %4718 = vmatprep.subr.mxu0 0.0
  %4719 = vmatpush2.msra.mxu0 0.0
  %4720 = vmatprep.subr.mxu0 0.0
  %4721 = vmatpush2.msra.mxu0 0.0
  %4722 = vmatprep.subr.mxu0 0.0
  %4723 = vmatpush2.msra.mxu0 0.0
  %4724 = vmatprep.subr.mxu0 0.0
  %4725 = vmatpush2.msra.mxu0 0.0
  %4726 = vmatprep.subr.mxu0 0.0
  %4727 = vmatpush2.msra.mxu0 0.0
  %4728 = vmatprep.subr.mxu0 0.0
  %4729 = vmatpush2.msra.mxu0 0.0
  %4730 = vmatprep.subr.mxu0 0.0
  %4731 = vmatpush2.msra.mxu0 0.0
  %4732 = vmatprep.subr.mxu0 0.0
  %4733 = vmatpush2.msra.mxu0 0.0
  %4734 = vmatprep.subr.mxu0 0.0
  %4735 = vmatpush2.msra.mxu0 0.0
  %4736 = vmatprep.subr.mxu0 0.0
  %4737 = vmatpush2.msra.mxu0 0.0
  %4738 = vmatprep.subr.mxu0 0.0
  %4739 = vmatpush2.msra.mxu0 0.0
  %4740 = vmatprep.subr.mxu0 0.0
  %4741 = vmatpush2.msra.mxu0 0.0
  %4742 = vmatprep.subr.mxu0 0.0
  %4743 = vmatpush2.msra.mxu0 0.0
  %4744 = vmatprep.subr.mxu0 0.0
  %4745 = vmatpush2.msra.mxu0 0.0
  %4746 = vmatprep.subr.mxu0 0.0
  %4747 = vmatpush2.msra.mxu0 0.0
  %4748 = vmatprep.subr.mxu0 0.0
  %4749 = vmatpush2.msra.mxu0 0.0
  %4750 = vmatprep.mubr.f32.mxu0 0.0
  %4751 = vmatmul.mubr.f32.gmra.mxu0 %v4465
  %v4752 = vpop.f32.mrf.mxu0
  %v4753 = vadd.f32 %v4591, %v4752
  %v4754 = vpop.f32.mrf.mxu0
  %v4755 = vadd.f32 %v4595, %v4754
  %4756 = vdwg.mxu0
  %4757 = vmatprep.subr.mxu0 %v4576
  %4758 = vmatpush1.msra.mxu0 %v4575
  %4759 = vmatprep.subr.mxu0 %v4569
  %4760 = vmatpush1.msra.mxu0 %v4568
  %4761 = vmatprep.subr.mxu0 %v4562
  %4762 = vmatpush1.msra.mxu0 %v4561
  %4763 = vmatprep.subr.mxu0 %v4555
  %4764 = vmatpush1.msra.mxu0 %v4554
  %4765 = vmatprep.subr.mxu0 %v4548
  %4766 = vmatpush1.msra.mxu0 %v4547
  %4767 = vmatprep.subr.mxu0 %v4541
  %4768 = vmatpush1.msra.mxu0 %v4540
  %4769 = vmatprep.subr.mxu0 %v4534
  %4770 = vmatpush1.msra.mxu0 %v4533
  %4771 = vmatprep.subr.mxu0 %v4527
  %4772 = vmatpush1.msra.mxu0 %v4526
  %4773 = vmatprep.subr.mxu0 %v4520
  %4774 = vmatpush1.msra.mxu0 %v4519
  %4775 = vmatprep.subr.mxu0 %v4513
  %4776 = vmatpush1.msra.mxu0 %v4512
  %4777 = vmatprep.subr.mxu0 %v4506
  %4778 = vmatpush1.msra.mxu0 %v4505
  %4779 = vmatprep.subr.mxu0 %v4499
  %4780 = vmatpush1.msra.mxu0 %v4498
  %4781 = vmatprep.subr.mxu0 %v4492
  %4782 = vmatpush1.msra.mxu0 %v4491
  %4783 = vmatprep.subr.mxu0 %v4485
  %4784 = vmatpush1.msra.mxu0 %v4484
  %4785 = vmatprep.subr.mxu0 %v4478
  %4786 = vmatpush1.msra.mxu0 %v4477
  %4787 = vmatprep.subr.mxu0 %v4471
  %4788 = vmatpush1.msra.mxu0 %v4470
  %4789 = vmatprep.subr.mxu0 0.0
  %4790 = vmatpush2.msra.mxu0 0.0
  %4791 = vmatprep.subr.mxu0 0.0
  %4792 = vmatpush2.msra.mxu0 0.0
  %4793 = vmatprep.subr.mxu0 0.0
  %4794 = vmatpush2.msra.mxu0 0.0
  %4795 = vmatprep.subr.mxu0 0.0
  %4796 = vmatpush2.msra.mxu0 0.0
  %4797 = vmatprep.subr.mxu0 0.0
  %4798 = vmatpush2.msra.mxu0 0.0
  %4799 = vmatprep.subr.mxu0 0.0
  %4800 = vmatpush2.msra.mxu0 0.0
  %4801 = vmatprep.subr.mxu0 0.0
  %4802 = vmatpush2.msra.mxu0 0.0
  %4803 = vmatprep.subr.mxu0 0.0
  %4804 = vmatpush2.msra.mxu0 0.0
  %4805 = vmatprep.subr.mxu0 0.0
  %4806 = vmatpush2.msra.mxu0 0.0
  %4807 = vmatprep.subr.mxu0 0.0
  %4808 = vmatpush2.msra.mxu0 0.0
  %4809 = vmatprep.subr.mxu0 0.0
  %4810 = vmatpush2.msra.mxu0 0.0
  %4811 = vmatprep.subr.mxu0 0.0
  %4812 = vmatpush2.msra.mxu0 0.0
  %4813 = vmatprep.subr.mxu0 0.0
  %4814 = vmatpush2.msra.mxu0 0.0
  %4815 = vmatprep.subr.mxu0 0.0
  %4816 = vmatpush2.msra.mxu0 0.0
  %4817 = vmatprep.subr.mxu0 0.0
  %4818 = vmatpush2.msra.mxu0 0.0
  %4819 = vmatprep.subr.mxu0 0.0
  %4820 = vmatpush2.msra.mxu0 0.0
  %4821 = vmatprep.mubr.f32.mxu0 0.0
  %4822 = vmatmul.mubr.f32.gmra.mxu0 %v4465
  %v4823 = vpop.f32.mrf.mxu0
  %v4824 = vadd.f32 %v4599, %v4823
  %v4825 = vpop.f32.mrf.mxu0
  %v4826 = vadd.f32 %v4603, %v4825
  %4827 = vdwg.mxu0
  %4828 = vmatprep.subr.mxu0 0.0
  %4829 = vmatpush1.msra.mxu0 %v4577
  %4830 = vmatprep.subr.mxu0 0.0
  %4831 = vmatpush1.msra.mxu0 %v4570
  %4832 = vmatprep.subr.mxu0 0.0
  %4833 = vmatpush1.msra.mxu0 %v4563
  %4834 = vmatprep.subr.mxu0 0.0
  %4835 = vmatpush1.msra.mxu0 %v4556
  %4836 = vmatprep.subr.mxu0 0.0
  %4837 = vmatpush1.msra.mxu0 %v4549
  %4838 = vmatprep.subr.mxu0 0.0
  %4839 = vmatpush1.msra.mxu0 %v4542
  %4840 = vmatprep.subr.mxu0 0.0
  %4841 = vmatpush1.msra.mxu0 %v4535
  %4842 = vmatprep.subr.mxu0 0.0
  %4843 = vmatpush1.msra.mxu0 %v4528
  %4844 = vmatprep.subr.mxu0 0.0
  %4845 = vmatpush1.msra.mxu0 %v4521
  %4846 = vmatprep.subr.mxu0 0.0
  %4847 = vmatpush1.msra.mxu0 %v4514
  %4848 = vmatprep.subr.mxu0 0.0
  %4849 = vmatpush1.msra.mxu0 %v4507
  %4850 = vmatprep.subr.mxu0 0.0
  %4851 = vmatpush1.msra.mxu0 %v4500
  %4852 = vmatprep.subr.mxu0 0.0
  %4853 = vmatpush1.msra.mxu0 %v4493
  %4854 = vmatprep.subr.mxu0 0.0
  %4855 = vmatpush1.msra.mxu0 %v4486
  %4856 = vmatprep.subr.mxu0 0.0
  %4857 = vmatpush1.msra.mxu0 %v4479
  %4858 = vmatprep.subr.mxu0 0.0
  %4859 = vmatpush1.msra.mxu0 %v4472
  %4860 = vmatprep.subr.mxu0 0.0
  %4861 = vmatpush2.msra.mxu0 0.0
  %4862 = vmatprep.subr.mxu0 0.0
  %4863 = vmatpush2.msra.mxu0 0.0
  %4864 = vmatprep.subr.mxu0 0.0
  %4865 = vmatpush2.msra.mxu0 0.0
  %4866 = vmatprep.subr.mxu0 0.0
  %4867 = vmatpush2.msra.mxu0 0.0
  %4868 = vmatprep.subr.mxu0 0.0
  %4869 = vmatpush2.msra.mxu0 0.0
  %4870 = vmatprep.subr.mxu0 0.0
  %4871 = vmatpush2.msra.mxu0 0.0
  %4872 = vmatprep.subr.mxu0 0.0
  %4873 = vmatpush2.msra.mxu0 0.0
  %4874 = vmatprep.subr.mxu0 0.0
  %4875 = vmatpush2.msra.mxu0 0.0
  %4876 = vmatprep.subr.mxu0 0.0
  %4877 = vmatpush2.msra.mxu0 0.0
  %4878 = vmatprep.subr.mxu0 0.0
  %4879 = vmatpush2.msra.mxu0 0.0
  %4880 = vmatprep.subr.mxu0 0.0
  %4881 = vmatpush2.msra.mxu0 0.0
  %4882 = vmatprep.subr.mxu0 0.0
  %4883 = vmatpush2.msra.mxu0 0.0
  %4884 = vmatprep.subr.mxu0 0.0
  %4885 = vmatpush2.msra.mxu0 0.0
  %4886 = vmatprep.subr.mxu0 0.0
  %4887 = vmatpush2.msra.mxu0 0.0
  %4888 = vmatprep.subr.mxu0 0.0
  %4889 = vmatpush2.msra.mxu0 0.0
  %4890 = vmatprep.subr.mxu0 0.0
  %4891 = vmatpush2.msra.mxu0 0.0
  %4892 = vmatprep.mubr.f32.mxu0 0.0
  %4893 = vmatmul.mubr.f32.gmra.mxu0 %v4465
  %v4894 = vpop.f32.mrf.mxu0
  %v4895 = vadd.f32 %v4607, %v4894
  %v4896 = vpop.f32.mrf.mxu0
  %4897 = vdwg.mxu0
  %4898 = vst [vmem:[%s7] sm:$0xff] %v4682
  %4899 = vst [vmem:[%s7 + $0x8] sm:$0xff] %v4684
  %4900 = vst [vmem:[%s7 + $0x10] sm:$0xff] %v4753
  %4901 = vst [vmem:[%s7 + $0x18] sm:$0xff] %v4755
  %4902 = vst [vmem:[%s7 + $0x20] sm:$0xff] %v4824
  %4903 = vst [vmem:[%s7 + $0x28] sm:$0xff] %v4826
  %4904 = vst.msk [vmem:[%s7 + $0x30] sm:$0xff] %vm1601, %v4895
  // Predicated region
  $region30: #{ae_forward.1} parent=0 // pred_check
    _
  $region31: #{ae_forward.1} parent=0 // pred_check_branch
    %4906 = sbr.rel (0) target = $region33
  $region32: #{ae_forward.1} parent=0 // pred_region
    _
  $region33: #{ae_forward.1} parent=0 // pred_fallthru
    _
  // Predicated region
  $region34: #{ae_forward.1} parent=0 // pred_check
    _
  $region35: #{ae_forward.1} parent=0 // pred_check_branch
    %4908 = sbr.rel (0) target = $region37
  $region36: #{ae_forward.1} parent=0 // pred_region
    _
  $region37: #{ae_forward.1} parent=0 // pred_fallthru
    _

</llo_original>
